<compile_context>
chip_gen: v7x
topology: tpu7x:2x2x1
jax: 0.10.0
libtpu: 0.0.40
codegen_flags: <defaults>
</compile_context>

<pallas_src>
from functools import partial

import jax
import jax.numpy as jnp
from jax.experimental import pallas as pl
from jax.experimental.pallas import tpu as pltpu


LEAK = 0.2


def _leaky_relu(v):
    return jnp.where(v >= 0, v, LEAK * v)


def ebm_kernel(num_choices,
               xT_ref,
               w0_ref, b0_ref,
               w1_ref, b1_ref,
               w2_ref, b2_ref,
               w3_ref, b3_ref,
               wc_ref, bc_ref,
               out_ref):
    # xT_ref: (D, bt) bf16; w*: (out, in) bf16; b*: (out, 1) f32.
    # Every matmul: bf16 inputs, f32 accumulation on the MXU.
    h = jnp.dot(w0_ref[...], xT_ref[...],
                preferred_element_type=jnp.float32) + b0_ref[...]

    for w_ref, b_ref in ((w1_ref, b1_ref), (w2_ref, b2_ref), (w3_ref, b3_ref)):
        h = _leaky_relu(h)                    # f32 elementwise (VPU)
        h = jnp.dot(w_ref[...], h.astype(jnp.bfloat16),
                    preferred_element_type=jnp.float32) + b_ref[...]

    h = _leaky_relu(h)                        # self.activate

    # class_output: (8, H) @ (H, bt) -> (8, bt).  Rows >= num_choices are
    # zero padding (sublane alignment only) and are ignored below.
    logits = jnp.dot(wc_ref[...], h.astype(jnp.bfloat16),
                     preferred_element_type=jnp.float32) + bc_ref[...]

    # logsumexp over the class axis, elementwise on (1, bt) row slices:
    # no cross-lane reduction, lane-dense result row.
    rows = [logits[c:c + 1, :] for c in range(num_choices)]
    m = rows[0]
    for r in rows[1:]:
        m = jnp.maximum(m, r)
    s = jnp.zeros_like(m)
    for r in rows:
        s = s + jnp.exp(r - m)
    out_ref[...] = m + jnp.log(s)


def _pick_batch_tile(batch):
    # Full MXU lane dimension (multiple of 128) while keeping >= 2 grid steps
    # when possible so v7x can shard the batch across both TensorCores.
    for cand in (512, 256, 128):
        if batch >= 2 * cand:
            return cand
    return 128


def mul_latent_ebm_forward(x, params, *, batch_tile=None):
    """MulLatentEBM forward (label=None): logsumexp(class_output(mlp(x)), 1).

    x: (B, latent_dim) float32
    params: w0..w3, wc in PyTorch (out, in) layout, bfloat16;
            b0..b3, bc as (out, 1) float32 columns.
    returns: (B,) float32
    """
    B, D = x.shape
    H = params["w0"].shape[0]
    C = params["wc"].shape[0]

    bt = batch_tile or _pick_batch_tile(B)
    assert bt % 128 == 0, "batch tile must be a multiple of 128 lanes"
    Bp = ((B + bt - 1) // bt) * bt

    # Feature-major bf16 activations: (D, Bp).  (Transpose + cast is a cheap
    # XLA op in the wrapper and halves the x DMA into the kernel.)
    xT = jnp.transpose(x).astype(jnp.bfloat16)
    if Bp != B:
        xT = jnp.pad(xT, ((0, 0), (0, Bp - B)))

    # Pad the tiny class head to 8 sublanes; extra rows are ignored in-kernel.
    C_pad = 8
    assert C <= C_pad
    wc = jnp.zeros((C_pad, H), jnp.bfloat16).at[:C].set(params["wc"])
    bc = jnp.zeros((C_pad, 1), jnp.float32).at[:C].set(params["bc"])

    def run(invariant_pipeline_mode):
        def resident(shape):
            # Whole tensor every grid step (constant index_map).
            return pl.BlockSpec(shape, lambda i: (0, 0),
                                pipeline_mode=invariant_pipeline_mode)

        in_specs = [
            pl.BlockSpec((D, bt), lambda i: (0, i)),     # x^T batch tile
            resident((H, D)), resident((H, 1)),          # w0, b0
            resident((H, H)), resident((H, 1)),          # w1, b1
            resident((H, H)), resident((H, 1)),          # w2, b2
            resident((H, H)), resident((H, 1)),          # w3, b3
            resident((C_pad, H)), resident((C_pad, 1)),  # wc, bc (padded)
        ]
        out_spec = pl.BlockSpec((1, bt), lambda i: (0, i))  # lane-dense row

        return pl.pallas_call(
            partial(ebm_kernel, C),
            out_shape=jax.ShapeDtypeStruct((1, Bp), jnp.float32),
            grid_spec=pltpu.PrefetchScalarGridSpec(
                num_scalar_prefetch=0,
                grid=(Bp // bt,),
                in_specs=in_specs,
                out_specs=out_spec,
            ),
            compiler_params=pltpu.CompilerParams(
                dimension_semantics=("parallel",)),
        )(xT,
          params["w0"], params["b0"],
          params["w1"], params["b1"],
          params["w2"], params["b2"],
          params["w3"], params["b3"],
          wc, bc)

    try:
        # Single-buffer the grid-invariant weight/bias blocks (~halves their
        # VMEM footprint -> headroom to grow bt, esp. on v7x's 64 MiB VMEM).
        out = run(pl.Buffered(1))
    except Exception:  # pragma: no cover - fall back to default buffering
        out = run(None)

    return out[0, :B]


def init_params(key, latent_dim, n_hidden, num_choices):
    """PyTorch nn.Linear-style init (uniform +-1/sqrt(fan_in)).

    Weights are stored in bfloat16 in the native (out, in) layout; biases stay
    float32 and are stored as (out, 1) columns for the feature-major kernel.
    """
    def linear(k, fan_in, fan_out):
        kw, kb = jax.random.split(k)
        bound = 1.0 / jnp.sqrt(fan_in)
        w = jax.random.uniform(kw, (fan_out, fan_in), jnp.float32,
                               -bound, bound).astype(jnp.bfloat16)
        b = jax.random.uniform(kb, (fan_out, 1), jnp.float32, -bound, bound)
        return w, b

    keys = jax.random.split(key, 5)
    p = {}
    p["w0"], p["b0"] = linear(keys[0], latent_dim, n_hidden)
    p["w1"], p["b1"] = linear(keys[1], n_hidden, n_hidden)
    p["w2"], p["b2"] = linear(keys[2], n_hidden, n_hidden)
    p["w3"], p["b3"] = linear(keys[3], n_hidden, n_hidden)
    p["wc"], p["bc"] = linear(keys[4], n_hidden, num_choices)
    return p


def reference_forward(x, p):
    """Pure-JAX reference mirroring the PyTorch forward (label=None) with the
    same bf16-input / f32-accumulation matmul math as the kernel."""
    def linear(h, w, b):   # w: (out, in) bf16, b: (out, 1) f32
        return jnp.dot(h.astype(jnp.bfloat16), jnp.transpose(w),
                       preferred_element_type=jnp.float32) + b[:, 0]

    h = linear(x, p["w0"], p["b0"])
    for w, b in ((p["w1"], p["b1"]), (p["w2"], p["b2"]), (p["w3"], p["b3"])):
        h = _leaky_relu(h)
        h = linear(h, w, b)
    h = _leaky_relu(h)
    logits = linear(h, p["wc"], p["bc"])
    return jax.scipy.special.logsumexp(logits, axis=1)


if __name__ == "__main__":
    # Scaled-down module config: latent_dim=128, n_hidden=256, n_classes=2.
    # B=256 with batch_tile=128 -> 2 grid steps (exercises the batch tiling
    # and v7x megacore sharding) while staying small.
    B, LATENT_DIM, N_HIDDEN, N_CLASSES = 256, 128, 256, 2
    NUM_CHOICES = N_CLASSES * (N_CLASSES - 1)   # len(permutations(range(2), 2)) = 2

    key = jax.random.PRNGKey(0)
    kx, kp = jax.random.split(key)
    x = jax.random.normal(kx, (B, LATENT_DIM), jnp.float32)
    params = init_params(kp, LATENT_DIM, N_HIDDEN, NUM_CHOICES)

    out = mul_latent_ebm_forward(x, params)
    out = jax.block_until_ready(out)

    ref = reference_forward(x, params)
    assert out.shape == (B,)
    assert jnp.allclose(out, ref, atol=2e-3, rtol=2e-3), (
        float(jnp.max(jnp.abs(out - ref))))

    print("KERNEL_OK")
</pallas_src>

<mosaic_0001>
module attributes {stable_mosaic.version = 11 : i64} {
  func.func @ebm_kernel(%arg0: i32, %arg1: memref<128x128xbf16, #tpu.memory_space<vmem>>, %arg2: memref<256x128xbf16, #tpu.memory_space<vmem>>, %arg3: memref<256x1xf32, #tpu.memory_space<vmem>>, %arg4: memref<256x256xbf16, #tpu.memory_space<vmem>>, %arg5: memref<256x1xf32, #tpu.memory_space<vmem>>, %arg6: memref<256x256xbf16, #tpu.memory_space<vmem>>, %arg7: memref<256x1xf32, #tpu.memory_space<vmem>>, %arg8: memref<256x256xbf16, #tpu.memory_space<vmem>>, %arg9: memref<256x1xf32, #tpu.memory_space<vmem>>, %arg10: memref<8x256xbf16, #tpu.memory_space<vmem>>, %arg11: memref<8x1xf32, #tpu.memory_space<vmem>>, %arg12: memref<1x128xf32, #tpu.memory_space<vmem>>) attributes {dimension_semantics = [#tpu.dimension_semantics<parallel>], iteration_bounds = array<i64: 2>, scalar_prefetch = 0 : i64, scratch_operands = 0 : i64, tpu.core_type = #tpu.core_type<tc>, window_params = [{transform_indices = @transform_0, window_bounds = array<i64: 128, 128>}, {pipeline_mode = #tpu.pipeline_mode<synchronous>, transform_indices = @transform_1, window_bounds = array<i64: 256, 128>}, {pipeline_mode = #tpu.pipeline_mode<synchronous>, transform_indices = @transform_2, window_bounds = array<i64: 256, 1>}, {pipeline_mode = #tpu.pipeline_mode<synchronous>, transform_indices = @transform_3, window_bounds = array<i64: 256, 256>}, {pipeline_mode = #tpu.pipeline_mode<synchronous>, transform_indices = @transform_4, window_bounds = array<i64: 256, 1>}, {pipeline_mode = #tpu.pipeline_mode<synchronous>, transform_indices = @transform_5, window_bounds = array<i64: 256, 256>}, {pipeline_mode = #tpu.pipeline_mode<synchronous>, transform_indices = @transform_6, window_bounds = array<i64: 256, 1>}, {pipeline_mode = #tpu.pipeline_mode<synchronous>, transform_indices = @transform_7, window_bounds = array<i64: 256, 256>}, {pipeline_mode = #tpu.pipeline_mode<synchronous>, transform_indices = @transform_8, window_bounds = array<i64: 256, 1>}, {pipeline_mode = #tpu.pipeline_mode<synchronous>, transform_indices = @transform_9, window_bounds = array<i64: 8, 256>}, {pipeline_mode = #tpu.pipeline_mode<synchronous>, transform_indices = @transform_10, window_bounds = array<i64: 8, 1>}, {transform_indices = @transform_11, window_bounds = array<i64: 1, 128>}]} {
    %c0 = arith.constant 0 : index
    %c0_0 = arith.constant 0 : index
    %0 = vector.load %arg2[%c0, %c0_0] : memref<256x128xbf16, #tpu.memory_space<vmem>>, vector<256x128xbf16>
    %c0_1 = arith.constant 0 : index
    %c0_2 = arith.constant 0 : index
    %1 = vector.load %arg1[%c0_1, %c0_2] : memref<128x128xbf16, #tpu.memory_space<vmem>>, vector<128x128xbf16>
    %cst = arith.constant dense<0.000000e+00> : vector<256x128xf32>
    %2 = tpu.matmul %0, %1, %cst {dimension_numbers = #tpu.dot_dimension_numbers<[1], [0], [0], [1], [0, 0, 1, 1], [], []>} : vector<256x128xbf16>, vector<128x128xbf16>, vector<256x128xf32> -> vector<256x128xf32>
    %c0_3 = arith.constant 0 : index
    %c0_4 = arith.constant 0 : index
    %3 = vector.load %arg3[%c0_3, %c0_4] : memref<256x1xf32, #tpu.memory_space<vmem>>, vector<256x1xf32>
    %4 = vector.broadcast %3 : vector<256x1xf32> to vector<256x128xf32>
    %5 = arith.addf %2, %4 : vector<256x128xf32>
    %cst_5 = arith.constant 0.000000e+00 : f32
    %6 = vector.broadcast %cst_5 : f32 to vector<256x128xf32>
    %7 = arith.cmpf oge, %5, %6 : vector<256x128xf32>
    %cst_6 = arith.constant 2.000000e-01 : f32
    %8 = vector.broadcast %cst_6 : f32 to vector<256x128xf32>
    %9 = arith.mulf %8, %5 : vector<256x128xf32>
    %10 = arith.select %7, %5, %9 : vector<256x128xi1>, vector<256x128xf32>
    %c0_7 = arith.constant 0 : index
    %c0_8 = arith.constant 0 : index
    %11 = vector.load %arg4[%c0_7, %c0_8] : memref<256x256xbf16, #tpu.memory_space<vmem>>, vector<256x256xbf16>
    %12 = arith.truncf %10 : vector<256x128xf32> to vector<256x128xbf16>
    %cst_9 = arith.constant dense<0.000000e+00> : vector<256x128xf32>
    %13 = tpu.matmul %11, %12, %cst_9 {dimension_numbers = #tpu.dot_dimension_numbers<[1], [0], [0], [1], [0, 0, 1, 1], [], []>} : vector<256x256xbf16>, vector<256x128xbf16>, vector<256x128xf32> -> vector<256x128xf32>
    %c0_10 = arith.constant 0 : index
    %c0_11 = arith.constant 0 : index
    %14 = vector.load %arg5[%c0_10, %c0_11] : memref<256x1xf32, #tpu.memory_space<vmem>>, vector<256x1xf32>
    %15 = vector.broadcast %14 : vector<256x1xf32> to vector<256x128xf32>
    %16 = arith.addf %13, %15 : vector<256x128xf32>
    %cst_12 = arith.constant 0.000000e+00 : f32
    %17 = vector.broadcast %cst_12 : f32 to vector<256x128xf32>
    %18 = arith.cmpf oge, %16, %17 : vector<256x128xf32>
    %cst_13 = arith.constant 2.000000e-01 : f32
    %19 = vector.broadcast %cst_13 : f32 to vector<256x128xf32>
    %20 = arith.mulf %19, %16 : vector<256x128xf32>
    %21 = arith.select %18, %16, %20 : vector<256x128xi1>, vector<256x128xf32>
    %c0_14 = arith.constant 0 : index
    %c0_15 = arith.constant 0 : index
    %22 = vector.load %arg6[%c0_14, %c0_15] : memref<256x256xbf16, #tpu.memory_space<vmem>>, vector<256x256xbf16>
    %23 = arith.truncf %21 : vector<256x128xf32> to vector<256x128xbf16>
    %cst_16 = arith.constant dense<0.000000e+00> : vector<256x128xf32>
    %24 = tpu.matmul %22, %23, %cst_16 {dimension_numbers = #tpu.dot_dimension_numbers<[1], [0], [0], [1], [0, 0, 1, 1], [], []>} : vector<256x256xbf16>, vector<256x128xbf16>, vector<256x128xf32> -> vector<256x128xf32>
    %c0_17 = arith.constant 0 : index
    %c0_18 = arith.constant 0 : index
    %25 = vector.load %arg7[%c0_17, %c0_18] : memref<256x1xf32, #tpu.memory_space<vmem>>, vector<256x1xf32>
    %26 = vector.broadcast %25 : vector<256x1xf32> to vector<256x128xf32>
    %27 = arith.addf %24, %26 : vector<256x128xf32>
    %cst_19 = arith.constant 0.000000e+00 : f32
    %28 = vector.broadcast %cst_19 : f32 to vector<256x128xf32>
    %29 = arith.cmpf oge, %27, %28 : vector<256x128xf32>
    %cst_20 = arith.constant 2.000000e-01 : f32
    %30 = vector.broadcast %cst_20 : f32 to vector<256x128xf32>
    %31 = arith.mulf %30, %27 : vector<256x128xf32>
    %32 = arith.select %29, %27, %31 : vector<256x128xi1>, vector<256x128xf32>
    %c0_21 = arith.constant 0 : index
    %c0_22 = arith.constant 0 : index
    %33 = vector.load %arg8[%c0_21, %c0_22] : memref<256x256xbf16, #tpu.memory_space<vmem>>, vector<256x256xbf16>
    %34 = arith.truncf %32 : vector<256x128xf32> to vector<256x128xbf16>
    %cst_23 = arith.constant dense<0.000000e+00> : vector<256x128xf32>
    %35 = tpu.matmul %33, %34, %cst_23 {dimension_numbers = #tpu.dot_dimension_numbers<[1], [0], [0], [1], [0, 0, 1, 1], [], []>} : vector<256x256xbf16>, vector<256x128xbf16>, vector<256x128xf32> -> vector<256x128xf32>
    %c0_24 = arith.constant 0 : index
    %c0_25 = arith.constant 0 : index
    %36 = vector.load %arg9[%c0_24, %c0_25] : memref<256x1xf32, #tpu.memory_space<vmem>>, vector<256x1xf32>
    %37 = vector.broadcast %36 : vector<256x1xf32> to vector<256x128xf32>
    %38 = arith.addf %35, %37 : vector<256x128xf32>
    %cst_26 = arith.constant 0.000000e+00 : f32
    %39 = vector.broadcast %cst_26 : f32 to vector<256x128xf32>
    %40 = arith.cmpf oge, %38, %39 : vector<256x128xf32>
    %cst_27 = arith.constant 2.000000e-01 : f32
    %41 = vector.broadcast %cst_27 : f32 to vector<256x128xf32>
    %42 = arith.mulf %41, %38 : vector<256x128xf32>
    %43 = arith.select %40, %38, %42 : vector<256x128xi1>, vector<256x128xf32>
    %c0_28 = arith.constant 0 : index
    %c0_29 = arith.constant 0 : index
    %44 = vector.load %arg10[%c0_28, %c0_29] : memref<8x256xbf16, #tpu.memory_space<vmem>>, vector<8x256xbf16>
    %45 = arith.truncf %43 : vector<256x128xf32> to vector<256x128xbf16>
    %cst_30 = arith.constant dense<0.000000e+00> : vector<8x128xf32>
    %46 = tpu.matmul %44, %45, %cst_30 {dimension_numbers = #tpu.dot_dimension_numbers<[1], [0], [0], [1], [0, 0, 1, 1], [], []>} : vector<8x256xbf16>, vector<256x128xbf16>, vector<8x128xf32> -> vector<8x128xf32>
    %c0_31 = arith.constant 0 : index
    %c0_32 = arith.constant 0 : index
    %47 = vector.load %arg11[%c0_31, %c0_32] : memref<8x1xf32, #tpu.memory_space<vmem>>, vector<8x1xf32>
    %48 = vector.broadcast %47 : vector<8x1xf32> to vector<8x128xf32>
    %49 = arith.addf %46, %48 : vector<8x128xf32>
    %50 = vector.extract_strided_slice %49 {offsets = [0, 0], sizes = [1, 128], strides = [1, 1]} : vector<8x128xf32> to vector<1x128xf32>
    %51 = vector.extract_strided_slice %49 {offsets = [1, 0], sizes = [1, 128], strides = [1, 1]} : vector<8x128xf32> to vector<1x128xf32>
    %52 = arith.maximumf %50, %51 : vector<1x128xf32>
    %cst_33 = arith.constant 0.000000e+00 : f32
    %53 = vector.broadcast %cst_33 : f32 to vector<1x128xf32>
    %54 = arith.subf %50, %52 : vector<1x128xf32>
    %55 = math.exp %54 : vector<1x128xf32>
    %56 = arith.addf %53, %55 : vector<1x128xf32>
    %57 = arith.subf %51, %52 : vector<1x128xf32>
    %58 = math.exp %57 : vector<1x128xf32>
    %59 = arith.addf %56, %58 : vector<1x128xf32>
    %60 = math.log %59 : vector<1x128xf32>
    %61 = arith.addf %52, %60 : vector<1x128xf32>
    %c0_34 = arith.constant 0 : index
    %c0_35 = arith.constant 0 : index
    %62 = vector.load %arg12[%c0_34, %c0_35] : memref<1x128xf32, #tpu.memory_space<vmem>>, vector<1x128xf32>
    tpu.vector_store %arg12[%c0_34, %c0_35], %61 {strides = array<i32>} : memref<1x128xf32, #tpu.memory_space<vmem>>, vector<1x128xf32>,
    return
  }
  func.func @transform_0(%arg0: i32) -> (i32, i32) {
    %c0_i32 = arith.constant 0 : i32
    %c0_i32_0 = arith.constant 0 : i32
    return %c0_i32, %arg0 : i32, i32
  }
  func.func @transform_1(%arg0: i32) -> (i32, i32) {
    %c0_i32 = arith.constant 0 : i32
    %c0_i32_0 = arith.constant 0 : i32
    %c0_i32_1 = arith.constant 0 : i32
    return %c0_i32, %c0_i32_0 : i32, i32
  }
  func.func @transform_2(%arg0: i32) -> (i32, i32) {
    %c0_i32 = arith.constant 0 : i32
    %c0_i32_0 = arith.constant 0 : i32
    %c0_i32_1 = arith.constant 0 : i32
    return %c0_i32, %c0_i32_0 : i32, i32
  }
  func.func @transform_3(%arg0: i32) -> (i32, i32) {
    %c0_i32 = arith.constant 0 : i32
    %c0_i32_0 = arith.constant 0 : i32
    %c0_i32_1 = arith.constant 0 : i32
    return %c0_i32, %c0_i32_0 : i32, i32
  }
  func.func @transform_4(%arg0: i32) -> (i32, i32) {
    %c0_i32 = arith.constant 0 : i32
    %c0_i32_0 = arith.constant 0 : i32
    %c0_i32_1 = arith.constant 0 : i32
    return %c0_i32, %c0_i32_0 : i32, i32
  }
  func.func @transform_5(%arg0: i32) -> (i32, i32) {
    %c0_i32 = arith.constant 0 : i32
    %c0_i32_0 = arith.constant 0 : i32
    %c0_i32_1 = arith.constant 0 : i32
    return %c0_i32, %c0_i32_0 : i32, i32
  }
  func.func @transform_6(%arg0: i32) -> (i32, i32) {
    %c0_i32 = arith.constant 0 : i32
    %c0_i32_0 = arith.constant 0 : i32
    %c0_i32_1 = arith.constant 0 : i32
    return %c0_i32, %c0_i32_0 : i32, i32
  }
  func.func @transform_7(%arg0: i32) -> (i32, i32) {
    %c0_i32 = arith.constant 0 : i32
    %c0_i32_0 = arith.constant 0 : i32
    %c0_i32_1 = arith.constant 0 : i32
    return %c0_i32, %c0_i32_0 : i32, i32
  }
  func.func @transform_8(%arg0: i32) -> (i32, i32) {
    %c0_i32 = arith.constant 0 : i32
    %c0_i32_0 = arith.constant 0 : i32
    %c0_i32_1 = arith.constant 0 : i32
    return %c0_i32, %c0_i32_0 : i32, i32
  }
  func.func @transform_9(%arg0: i32) -> (i32, i32) {
    %c0_i32 = arith.constant 0 : i32
    %c0_i32_0 = arith.constant 0 : i32
    %c0_i32_1 = arith.constant 0 : i32
    return %c0_i32, %c0_i32_0 : i32, i32
  }
  func.func @transform_10(%arg0: i32) -> (i32, i32) {
    %c0_i32 = arith.constant 0 : i32
    %c0_i32_0 = arith.constant 0 : i32
    %c0_i32_1 = arith.constant 0 : i32
    return %c0_i32, %c0_i32_0 : i32, i32
  }
  func.func @transform_11(%arg0: i32) -> (i32, i32) {
    %c0_i32 = arith.constant 0 : i32
    %c0_i32_0 = arith.constant 0 : i32
    return %c0_i32, %arg0 : i32, i32
  }
}

module attributes {stable_mosaic.version = 11 : i64} {
  func.func @ebm_kernel(%arg0: i32, %arg1: memref<128x128xbf16, #tpu.memory_space<vmem>>, %arg2: memref<256x128xbf16, #tpu.memory_space<vmem>>, %arg3: memref<256x1xf32, #tpu.memory_space<vmem>>, %arg4: memref<256x256xbf16, #tpu.memory_space<vmem>>, %arg5: memref<256x1xf32, #tpu.memory_space<vmem>>, %arg6: memref<256x256xbf16, #tpu.memory_space<vmem>>, %arg7: memref<256x1xf32, #tpu.memory_space<vmem>>, %arg8: memref<256x256xbf16, #tpu.memory_space<vmem>>, %arg9: memref<256x1xf32, #tpu.memory_space<vmem>>, %arg10: memref<8x256xbf16, #tpu.memory_space<vmem>>, %arg11: memref<8x1xf32, #tpu.memory_space<vmem>>, %arg12: memref<1x128xf32, #tpu.memory_space<vmem>>) attributes {dimension_semantics = [#tpu.dimension_semantics<parallel>], iteration_bounds = array<i64: 2>, scalar_prefetch = 0 : i64, scratch_operands = 0 : i64, tpu.core_type = #tpu.core_type<tc>, window_params = [{transform_indices = @transform_0, window_bounds = array<i64: 128, 128>}, {pipeline_mode = #tpu.pipeline_mode<synchronous>, transform_indices = @transform_1, window_bounds = array<i64: 256, 128>}, {pipeline_mode = #tpu.pipeline_mode<synchronous>, transform_indices = @transform_2, window_bounds = array<i64: 256, 1>}, {pipeline_mode = #tpu.pipeline_mode<synchronous>, transform_indices = @transform_3, window_bounds = array<i64: 256, 256>}, {pipeline_mode = #tpu.pipeline_mode<synchronous>, transform_indices = @transform_4, window_bounds = array<i64: 256, 1>}, {pipeline_mode = #tpu.pipeline_mode<synchronous>, transform_indices = @transform_5, window_bounds = array<i64: 256, 256>}, {pipeline_mode = #tpu.pipeline_mode<synchronous>, transform_indices = @transform_6, window_bounds = array<i64: 256, 1>}, {pipeline_mode = #tpu.pipeline_mode<synchronous>, transform_indices = @transform_7, window_bounds = array<i64: 256, 256>}, {pipeline_mode = #tpu.pipeline_mode<synchronous>, transform_indices = @transform_8, window_bounds = array<i64: 256, 1>}, {pipeline_mode = #tpu.pipeline_mode<synchronous>, transform_indices = @transform_9, window_bounds = array<i64: 8, 256>}, {pipeline_mode = #tpu.pipeline_mode<synchronous>, transform_indices = @transform_10, window_bounds = array<i64: 8, 1>}, {transform_indices = @transform_11, window_bounds = array<i64: 1, 128>}]} {
    %c0 = arith.constant 0 : index
    %c0_0 = arith.constant 0 : index
    %0 = vector.load %arg2[%c0, %c0_0] : memref<256x128xbf16, #tpu.memory_space<vmem>>, vector<256x128xbf16>
    %c0_1 = arith.constant 0 : index
    %c0_2 = arith.constant 0 : index
    %1 = vector.load %arg1[%c0_1, %c0_2] : memref<128x128xbf16, #tpu.memory_space<vmem>>, vector<128x128xbf16>
    %cst = arith.constant dense<0.000000e+00> : vector<256x128xf32>
    %2 = tpu.matmul %0, %1, %cst {dimension_numbers = #tpu.dot_dimension_numbers<[1], [0], [0], [1], [0, 0, 1, 1], [], []>} : vector<256x128xbf16>, vector<128x128xbf16>, vector<256x128xf32> -> vector<256x128xf32>
    %c0_3 = arith.constant 0 : index
    %c0_4 = arith.constant 0 : index
    %3 = vector.load %arg3[%c0_3, %c0_4] : memref<256x1xf32, #tpu.memory_space<vmem>>, vector<256x1xf32>
    %4 = vector.broadcast %3 : vector<256x1xf32> to vector<256x128xf32>
    %5 = arith.addf %2, %4 : vector<256x128xf32>
    %cst_5 = arith.constant 0.000000e+00 : f32
    %6 = vector.broadcast %cst_5 : f32 to vector<256x128xf32>
    %7 = arith.cmpf oge, %5, %6 : vector<256x128xf32>
    %cst_6 = arith.constant 2.000000e-01 : f32
    %8 = vector.broadcast %cst_6 : f32 to vector<256x128xf32>
    %9 = arith.mulf %8, %5 : vector<256x128xf32>
    %10 = arith.select %7, %5, %9 : vector<256x128xi1>, vector<256x128xf32>
    %c0_7 = arith.constant 0 : index
    %c0_8 = arith.constant 0 : index
    %11 = vector.load %arg4[%c0_7, %c0_8] : memref<256x256xbf16, #tpu.memory_space<vmem>>, vector<256x256xbf16>
    %12 = arith.truncf %10 : vector<256x128xf32> to vector<256x128xbf16>
    %cst_9 = arith.constant dense<0.000000e+00> : vector<256x128xf32>
    %13 = tpu.matmul %11, %12, %cst_9 {dimension_numbers = #tpu.dot_dimension_numbers<[1], [0], [0], [1], [0, 0, 1, 1], [], []>} : vector<256x256xbf16>, vector<256x128xbf16>, vector<256x128xf32> -> vector<256x128xf32>
    %c0_10 = arith.constant 0 : index
    %c0_11 = arith.constant 0 : index
    %14 = vector.load %arg5[%c0_10, %c0_11] : memref<256x1xf32, #tpu.memory_space<vmem>>, vector<256x1xf32>
    %15 = vector.broadcast %14 : vector<256x1xf32> to vector<256x128xf32>
    %16 = arith.addf %13, %15 : vector<256x128xf32>
    %cst_12 = arith.constant 0.000000e+00 : f32
    %17 = vector.broadcast %cst_12 : f32 to vector<256x128xf32>
    %18 = arith.cmpf oge, %16, %17 : vector<256x128xf32>
    %cst_13 = arith.constant 2.000000e-01 : f32
    %19 = vector.broadcast %cst_13 : f32 to vector<256x128xf32>
    %20 = arith.mulf %19, %16 : vector<256x128xf32>
    %21 = arith.select %18, %16, %20 : vector<256x128xi1>, vector<256x128xf32>
    %c0_14 = arith.constant 0 : index
    %c0_15 = arith.constant 0 : index
    %22 = vector.load %arg6[%c0_14, %c0_15] : memref<256x256xbf16, #tpu.memory_space<vmem>>, vector<256x256xbf16>
    %23 = arith.truncf %21 : vector<256x128xf32> to vector<256x128xbf16>
    %cst_16 = arith.constant dense<0.000000e+00> : vector<256x128xf32>
    %24 = tpu.matmul %22, %23, %cst_16 {dimension_numbers = #tpu.dot_dimension_numbers<[1], [0], [0], [1], [0, 0, 1, 1], [], []>} : vector<256x256xbf16>, vector<256x128xbf16>, vector<256x128xf32> -> vector<256x128xf32>
    %c0_17 = arith.constant 0 : index
    %c0_18 = arith.constant 0 : index
    %25 = vector.load %arg7[%c0_17, %c0_18] : memref<256x1xf32, #tpu.memory_space<vmem>>, vector<256x1xf32>
    %26 = vector.broadcast %25 : vector<256x1xf32> to vector<256x128xf32>
    %27 = arith.addf %24, %26 : vector<256x128xf32>
    %cst_19 = arith.constant 0.000000e+00 : f32
    %28 = vector.broadcast %cst_19 : f32 to vector<256x128xf32>
    %29 = arith.cmpf oge, %27, %28 : vector<256x128xf32>
    %cst_20 = arith.constant 2.000000e-01 : f32
    %30 = vector.broadcast %cst_20 : f32 to vector<256x128xf32>
    %31 = arith.mulf %30, %27 : vector<256x128xf32>
    %32 = arith.select %29, %27, %31 : vector<256x128xi1>, vector<256x128xf32>
    %c0_21 = arith.constant 0 : index
    %c0_22 = arith.constant 0 : index
    %33 = vector.load %arg8[%c0_21, %c0_22] : memref<256x256xbf16, #tpu.memory_space<vmem>>, vector<256x256xbf16>
    %34 = arith.truncf %32 : vector<256x128xf32> to vector<256x128xbf16>
    %cst_23 = arith.constant dense<0.000000e+00> : vector<256x128xf32>
    %35 = tpu.matmul %33, %34, %cst_23 {dimension_numbers = #tpu.dot_dimension_numbers<[1], [0], [0], [1], [0, 0, 1, 1], [], []>} : vector<256x256xbf16>, vector<256x128xbf16>, vector<256x128xf32> -> vector<256x128xf32>
    %c0_24 = arith.constant 0 : index
    %c0_25 = arith.constant 0 : index
    %36 = vector.load %arg9[%c0_24, %c0_25] : memref<256x1xf32, #tpu.memory_space<vmem>>, vector<256x1xf32>
    %37 = vector.broadcast %36 : vector<256x1xf32> to vector<256x128xf32>
    %38 = arith.addf %35, %37 : vector<256x128xf32>
    %cst_26 = arith.constant 0.000000e+00 : f32
    %39 = vector.broadcast %cst_26 : f32 to vector<256x128xf32>
    %40 = arith.cmpf oge, %38, %39 : vector<256x128xf32>
    %cst_27 = arith.constant 2.000000e-01 : f32
    %41 = vector.broadcast %cst_27 : f32 to vector<256x128xf32>
    %42 = arith.mulf %41, %38 : vector<256x128xf32>
    %43 = arith.select %40, %38, %42 : vector<256x128xi1>, vector<256x128xf32>
    %c0_28 = arith.constant 0 : index
    %c0_29 = arith.constant 0 : index
    %44 = vector.load %arg10[%c0_28, %c0_29] : memref<8x256xbf16, #tpu.memory_space<vmem>>, vector<8x256xbf16>
    %45 = arith.truncf %43 : vector<256x128xf32> to vector<256x128xbf16>
    %cst_30 = arith.constant dense<0.000000e+00> : vector<8x128xf32>
    %46 = tpu.matmul %44, %45, %cst_30 {dimension_numbers = #tpu.dot_dimension_numbers<[1], [0], [0], [1], [0, 0, 1, 1], [], []>} : vector<8x256xbf16>, vector<256x128xbf16>, vector<8x128xf32> -> vector<8x128xf32>
    %c0_31 = arith.constant 0 : index
    %c0_32 = arith.constant 0 : index
    %47 = vector.load %arg11[%c0_31, %c0_32] : memref<8x1xf32, #tpu.memory_space<vmem>>, vector<8x1xf32>
    %48 = vector.broadcast %47 : vector<8x1xf32> to vector<8x128xf32>
    %49 = arith.addf %46, %48 : vector<8x128xf32>
    %50 = vector.extract_strided_slice %49 {offsets = [0, 0], sizes = [1, 128], strides = [1, 1]} : vector<8x128xf32> to vector<1x128xf32>
    %51 = vector.extract_strided_slice %49 {offsets = [1, 0], sizes = [1, 128], strides = [1, 1]} : vector<8x128xf32> to vector<1x128xf32>
    %52 = arith.maximumf %50, %51 : vector<1x128xf32>
    %cst_33 = arith.constant 0.000000e+00 : f32
    %53 = vector.broadcast %cst_33 : f32 to vector<1x128xf32>
    %54 = arith.subf %50, %52 : vector<1x128xf32>
    %55 = math.exp %54 : vector<1x128xf32>
    %56 = arith.addf %53, %55 : vector<1x128xf32>
    %57 = arith.subf %51, %52 : vector<1x128xf32>
    %58 = math.exp %57 : vector<1x128xf32>
    %59 = arith.addf %56, %58 : vector<1x128xf32>
    %60 = math.log %59 : vector<1x128xf32>
    %61 = arith.addf %52, %60 : vector<1x128xf32>
    %c0_34 = arith.constant 0 : index
    %c0_35 = arith.constant 0 : index
    %62 = vector.load %arg12[%c0_34, %c0_35] : memref<1x128xf32, #tpu.memory_space<vmem>>, vector<1x128xf32>
    tpu.vector_store %arg12[%c0_34, %c0_35], %61 {strides = array<i32>} : memref<1x128xf32, #tpu.memory_space<vmem>>, vector<1x128xf32>,
    return
  }
  func.func @transform_0(%arg0: i32) -> (i32, i32) {
    %c0_i32 = arith.constant 0 : i32
    %c0_i32_0 = arith.constant 0 : i32
    return %c0_i32, %arg0 : i32, i32
  }
  func.func @transform_1(%arg0: i32) -> (i32, i32) {
    %c0_i32 = arith.constant 0 : i32
    %c0_i32_0 = arith.constant 0 : i32
    %c0_i32_1 = arith.constant 0 : i32
    return %c0_i32, %c0_i32_0 : i32, i32
  }
  func.func @transform_2(%arg0: i32) -> (i32, i32) {
    %c0_i32 = arith.constant 0 : i32
    %c0_i32_0 = arith.constant 0 : i32
    %c0_i32_1 = arith.constant 0 : i32
    return %c0_i32, %c0_i32_0 : i32, i32
  }
  func.func @transform_3(%arg0: i32) -> (i32, i32) {
    %c0_i32 = arith.constant 0 : i32
    %c0_i32_0 = arith.constant 0 : i32
    %c0_i32_1 = arith.constant 0 : i32
    return %c0_i32, %c0_i32_0 : i32, i32
  }
  func.func @transform_4(%arg0: i32) -> (i32, i32) {
    %c0_i32 = arith.constant 0 : i32
    %c0_i32_0 = arith.constant 0 : i32
    %c0_i32_1 = arith.constant 0 : i32
    return %c0_i32, %c0_i32_0 : i32, i32
  }
  func.func @transform_5(%arg0: i32) -> (i32, i32) {
    %c0_i32 = arith.constant 0 : i32
    %c0_i32_0 = arith.constant 0 : i32
    %c0_i32_1 = arith.constant 0 : i32
    return %c0_i32, %c0_i32_0 : i32, i32
  }
  func.func @transform_6(%arg0: i32) -> (i32, i32) {
    %c0_i32 = arith.constant 0 : i32
    %c0_i32_0 = arith.constant 0 : i32
    %c0_i32_1 = arith.constant 0 : i32
    return %c0_i32, %c0_i32_0 : i32, i32
  }
  func.func @transform_7(%arg0: i32) -> (i32, i32) {
    %c0_i32 = arith.constant 0 : i32
    %c0_i32_0 = arith.constant 0 : i32
    %c0_i32_1 = arith.constant 0 : i32
    return %c0_i32, %c0_i32_0 : i32, i32
  }
  func.func @transform_8(%arg0: i32) -> (i32, i32) {
    %c0_i32 = arith.constant 0 : i32
    %c0_i32_0 = arith.constant 0 : i32
    %c0_i32_1 = arith.constant 0 : i32
    return %c0_i32, %c0_i32_0 : i32, i32
  }
  func.func @transform_9(%arg0: i32) -> (i32, i32) {
    %c0_i32 = arith.constant 0 : i32
    %c0_i32_0 = arith.constant 0 : i32
    %c0_i32_1 = arith.constant 0 : i32
    return %c0_i32, %c0_i32_0 : i32, i32
  }
  func.func @transform_10(%arg0: i32) -> (i32, i32) {
    %c0_i32 = arith.constant 0 : i32
    %c0_i32_0 = arith.constant 0 : i32
    %c0_i32_1 = arith.constant 0 : i32
    return %c0_i32, %c0_i32_0 : i32, i32
  }
  func.func @transform_11(%arg0: i32) -> (i32, i32) {
    %c0_i32 = arith.constant 0 : i32
    %c0_i32_0 = arith.constant 0 : i32
    return %c0_i32, %arg0 : i32, i32
  }
}

</mosaic_0001>

<llo_original>
// kernel: tpu_custom_call.1
$region0: #{tpu_custom_call.1}
  #allocation0 [shape = 'u32[]', space=smem, size = 0x4, offset = 0x4, fixed_abs, tag = 'smem constant byte address 0x4 - core index']
  #allocation1 [shape = 'u32[144,128]{1,0:T(1,128)}', space=vmem, size = 0x12000, scoped, tag = 'internal scratch']
  %s0 = inlined_call_operand.vmem [shape: bf16[128,256], index: 0, kind: input, shape index: {}]
  %s1 = inlined_call_operand.vmem [shape: bf16[256,128], index: 1, kind: input, shape index: {}]
  %s2 = inlined_call_operand.vmem [shape: f32[256,1], index: 2, kind: input, shape index: {}]
  %s3 = inlined_call_operand.vmem [shape: bf16[256,256], index: 3, kind: input, shape index: {}]
  %s4 = inlined_call_operand.vmem [shape: f32[256,1], index: 4, kind: input, shape index: {}]
  %s5 = inlined_call_operand.vmem [shape: bf16[256,256], index: 5, kind: input, shape index: {}]
  %s6 = inlined_call_operand.vmem [shape: f32[256,1], index: 6, kind: input, shape index: {}]
  %s7 = inlined_call_operand.vmem [shape: bf16[256,256], index: 7, kind: input, shape index: {}]
  %s8 = inlined_call_operand.vmem [shape: f32[256,1], index: 8, kind: input, shape index: {}]
  %s9 = inlined_call_operand.vmem [shape: bf16[8,256], index: 9, kind: input, shape index: {}]
  %s10 = inlined_call_operand.vmem [shape: f32[8,1], index: 10, kind: input, shape index: {}]
  %s11 = inlined_call_operand.hbm [shape: f32[1,256], index: 11, kind: output, shape index: {}]
  %s12 = sld [smem:[#allocation0]]
  $region118: #{tpu_custom_call.1} parent=0
    _
  %s14 = ssub.s32 1, %s12
  %s15 = scalar_select 0, %s14, %s12
  $region1: #{tpu_custom_call.1} parent=0
    #allocation2 [shape = 'u8[65536]{0}', space=vmem, size = 0x10000, scoped, tag = 'input window, operand 0']
    #allocation3 [shape = 'u8[1024]{0}', space=vmem, size = 0x400, scoped, tag = 'output window, operand 0']
    #allocation4 [shape = 's32[2]{0}', space=sflag, size = 0x8, scoped, tag = 'scoped memory for tpu_custom_call.1']
    %16 = vsyncpa [#allocation4], 0
    %s17 = scalar_lea.sflag [#allocation4], 1
    %18 = vsyncpa %s17, 0
    loop: start=0, step=1, limit=4
    $region2: #{tpu_custom_call.1} parent=1 // loop_pre_header
      _
    $region3: #{tpu_custom_call.1} parent=1 // loop_header
      %s20 = sphi 0, %s24
      %p21 = scmp.ge.s32.totalorder %s20, 4
      %s30 = sphi 0, %s32
      %s33 = sphi 0, %s30
      %s34 = sphi 0, %s33
      %s50 = sphi 0, %s34
      %s54 = sphi 0, %s54
      %s56 = sphi 0, %s54
      %s57 = sphi 0, %s56
      %s71 = sphi 0, %s57
      %s75 = sphi 0, %s75
      %s77 = sphi 0, %s75
      %s78 = sphi 0, %s77
      %s92 = sphi 0, %s78
      %s96 = sphi 0, %s96
      %s98 = sphi 0, %s96
      %s99 = sphi 0, %s98
      %s113 = sphi 0, %s99
      %s117 = sphi 0, %s117
      %s119 = sphi 0, %s117
      %s120 = sphi 0, %s119
      %s134 = sphi 0, %s120
      %s138 = sphi 0, %s138
      %s140 = sphi 0, %s138
      %s141 = sphi 0, %s140
      %s155 = sphi 0, %s141
      %s159 = sphi 0, %s159
      %s161 = sphi 0, %s159
      %s162 = sphi 0, %s161
      %s176 = sphi 0, %s162
      %s180 = sphi 0, %s180
      %s182 = sphi 0, %s180
      %s183 = sphi 0, %s182
      %s197 = sphi 0, %s183
      %s201 = sphi 0, %s201
      %s203 = sphi 0, %s201
      %s204 = sphi 0, %s203
      %s218 = sphi 0, %s204
      %s222 = sphi 0, %s222
      %s224 = sphi 0, %s222
      %s225 = sphi 0, %s224
      %s239 = sphi 0, %s225
      %s243 = sphi 0, %s243
      %s245 = sphi 0, %s243
      %s246 = sphi 0, %s245
      %s260 = sphi 0, %s246
      %s266 = sphi 0, %s268
      %s269 = sphi 0, %s266
      %s270 = sphi 0, %s269
      %s286 = sphi 0, %s270
    $region4: #{tpu_custom_call.1} parent=1 // loop_header_branch
      %23 = sbr.rel (%p21) target = $region8
    $region5: #{tpu_custom_call.1} parent=1 // loop_body
      %s25 = ssub.s32 %s20, 1
      %s26 = ssub.s32 %s20, 2
      %s27 = sadd.s32 %s20, 1
      %s28 = ssub.s32 %s20, %s27
      %p29 = scmp.eq.s32.totalorder %s28, 0
      %s31 = sadd.s32 %s30, 1
      %s32 = scalar_select %p29, %s30, %s31
      %p35 = pneg %p29
      %p36 = scmp.eq.s32.totalorder %s20, 1
      %p37 = por %p35, %p36
      %p38 = scmp.ne.s32.totalorder %s30, %s33
      %p39 = scmp.eq.s32.totalorder %s20, 0
      %p40 = por %p38, %p39
      %p41 = scmp.ne.s32.totalorder %s30, %s33
      %p42 = scmp.eq.s32.totalorder %s25, 1
      %p43 = por %p41, %p42
      %p44 = scmp.ne.s32.totalorder %s33, %s34
      %p45 = scmp.eq.s32.totalorder %s25, 0
      %p46 = por %p44, %p45
      %p47 = scmp.ne.s32.totalorder %s33, %s34
      %p48 = scmp.eq.s32.totalorder %s26, 1
      %p49 = por %p47, %p48
      %p51 = scmp.ne.s32.totalorder %s34, %s50
      %p52 = scmp.eq.s32.totalorder %s26, 0
      %p53 = por %p51, %p52
      %s55 = sadd.s32 %s54, 1
      %p58 = scmp.eq.s32.totalorder %s20, 1
      %p59 = scmp.ne.s32.totalorder %s54, %s56
      %p60 = scmp.eq.s32.totalorder %s20, 0
      %p61 = por %p59, %p60
      %p62 = scmp.ne.s32.totalorder %s54, %s56
      %p63 = scmp.eq.s32.totalorder %s25, 1
      %p64 = por %p62, %p63
      %p65 = scmp.ne.s32.totalorder %s56, %s57
      %p66 = scmp.eq.s32.totalorder %s25, 0
      %p67 = por %p65, %p66
      %p68 = scmp.ne.s32.totalorder %s56, %s57
      %p69 = scmp.eq.s32.totalorder %s26, 1
      %p70 = por %p68, %p69
      %p72 = scmp.ne.s32.totalorder %s57, %s71
      %p73 = scmp.eq.s32.totalorder %s26, 0
      %p74 = por %p72, %p73
      %s76 = sadd.s32 %s75, 1
      %p79 = scmp.eq.s32.totalorder %s20, 1
      %p80 = scmp.ne.s32.totalorder %s75, %s77
      %p81 = scmp.eq.s32.totalorder %s20, 0
      %p82 = por %p80, %p81
      %p83 = scmp.ne.s32.totalorder %s75, %s77
      %p84 = scmp.eq.s32.totalorder %s25, 1
      %p85 = por %p83, %p84
      %p86 = scmp.ne.s32.totalorder %s77, %s78
      %p87 = scmp.eq.s32.totalorder %s25, 0
      %p88 = por %p86, %p87
      %p89 = scmp.ne.s32.totalorder %s77, %s78
      %p90 = scmp.eq.s32.totalorder %s26, 1
      %p91 = por %p89, %p90
      %p93 = scmp.ne.s32.totalorder %s78, %s92
      %p94 = scmp.eq.s32.totalorder %s26, 0
      %p95 = por %p93, %p94
      %s97 = sadd.s32 %s96, 1
      %p100 = scmp.eq.s32.totalorder %s20, 1
      %p101 = scmp.ne.s32.totalorder %s96, %s98
      %p102 = scmp.eq.s32.totalorder %s20, 0
      %p103 = por %p101, %p102
      %p104 = scmp.ne.s32.totalorder %s96, %s98
      %p105 = scmp.eq.s32.totalorder %s25, 1
      %p106 = por %p104, %p105
      %p107 = scmp.ne.s32.totalorder %s98, %s99
      %p108 = scmp.eq.s32.totalorder %s25, 0
      %p109 = por %p107, %p108
      %p110 = scmp.ne.s32.totalorder %s98, %s99
      %p111 = scmp.eq.s32.totalorder %s26, 1
      %p112 = por %p110, %p111
      %p114 = scmp.ne.s32.totalorder %s99, %s113
      %p115 = scmp.eq.s32.totalorder %s26, 0
      %p116 = por %p114, %p115
      %s118 = sadd.s32 %s117, 1
      %p121 = scmp.eq.s32.totalorder %s20, 1
      %p122 = scmp.ne.s32.totalorder %s117, %s119
      %p123 = scmp.eq.s32.totalorder %s20, 0
      %p124 = por %p122, %p123
      %p125 = scmp.ne.s32.totalorder %s117, %s119
      %p126 = scmp.eq.s32.totalorder %s25, 1
      %p127 = por %p125, %p126
      %p128 = scmp.ne.s32.totalorder %s119, %s120
      %p129 = scmp.eq.s32.totalorder %s25, 0
      %p130 = por %p128, %p129
      %p131 = scmp.ne.s32.totalorder %s119, %s120
      %p132 = scmp.eq.s32.totalorder %s26, 1
      %p133 = por %p131, %p132
      %p135 = scmp.ne.s32.totalorder %s120, %s134
      %p136 = scmp.eq.s32.totalorder %s26, 0
      %p137 = por %p135, %p136
      %s139 = sadd.s32 %s138, 1
      %p142 = scmp.eq.s32.totalorder %s20, 1
      %p143 = scmp.ne.s32.totalorder %s138, %s140
      %p144 = scmp.eq.s32.totalorder %s20, 0
      %p145 = por %p143, %p144
      %p146 = scmp.ne.s32.totalorder %s138, %s140
      %p147 = scmp.eq.s32.totalorder %s25, 1
      %p148 = por %p146, %p147
      %p149 = scmp.ne.s32.totalorder %s140, %s141
      %p150 = scmp.eq.s32.totalorder %s25, 0
      %p151 = por %p149, %p150
      %p152 = scmp.ne.s32.totalorder %s140, %s141
      %p153 = scmp.eq.s32.totalorder %s26, 1
      %p154 = por %p152, %p153
      %p156 = scmp.ne.s32.totalorder %s141, %s155
      %p157 = scmp.eq.s32.totalorder %s26, 0
      %p158 = por %p156, %p157
      %s160 = sadd.s32 %s159, 1
      %p163 = scmp.eq.s32.totalorder %s20, 1
      %p164 = scmp.ne.s32.totalorder %s159, %s161
      %p165 = scmp.eq.s32.totalorder %s20, 0
      %p166 = por %p164, %p165
      %p167 = scmp.ne.s32.totalorder %s159, %s161
      %p168 = scmp.eq.s32.totalorder %s25, 1
      %p169 = por %p167, %p168
      %p170 = scmp.ne.s32.totalorder %s161, %s162
      %p171 = scmp.eq.s32.totalorder %s25, 0
      %p172 = por %p170, %p171
      %p173 = scmp.ne.s32.totalorder %s161, %s162
      %p174 = scmp.eq.s32.totalorder %s26, 1
      %p175 = por %p173, %p174
      %p177 = scmp.ne.s32.totalorder %s162, %s176
      %p178 = scmp.eq.s32.totalorder %s26, 0
      %p179 = por %p177, %p178
      %s181 = sadd.s32 %s180, 1
      %p184 = scmp.eq.s32.totalorder %s20, 1
      %p185 = scmp.ne.s32.totalorder %s180, %s182
      %p186 = scmp.eq.s32.totalorder %s20, 0
      %p187 = por %p185, %p186
      %p188 = scmp.ne.s32.totalorder %s180, %s182
      %p189 = scmp.eq.s32.totalorder %s25, 1
      %p190 = por %p188, %p189
      %p191 = scmp.ne.s32.totalorder %s182, %s183
      %p192 = scmp.eq.s32.totalorder %s25, 0
      %p193 = por %p191, %p192
      %p194 = scmp.ne.s32.totalorder %s182, %s183
      %p195 = scmp.eq.s32.totalorder %s26, 1
      %p196 = por %p194, %p195
      %p198 = scmp.ne.s32.totalorder %s183, %s197
      %p199 = scmp.eq.s32.totalorder %s26, 0
      %p200 = por %p198, %p199
      %s202 = sadd.s32 %s201, 1
      %p205 = scmp.eq.s32.totalorder %s20, 1
      %p206 = scmp.ne.s32.totalorder %s201, %s203
      %p207 = scmp.eq.s32.totalorder %s20, 0
      %p208 = por %p206, %p207
      %p209 = scmp.ne.s32.totalorder %s201, %s203
      %p210 = scmp.eq.s32.totalorder %s25, 1
      %p211 = por %p209, %p210
      %p212 = scmp.ne.s32.totalorder %s203, %s204
      %p213 = scmp.eq.s32.totalorder %s25, 0
      %p214 = por %p212, %p213
      %p215 = scmp.ne.s32.totalorder %s203, %s204
      %p216 = scmp.eq.s32.totalorder %s26, 1
      %p217 = por %p215, %p216
      %p219 = scmp.ne.s32.totalorder %s204, %s218
      %p220 = scmp.eq.s32.totalorder %s26, 0
      %p221 = por %p219, %p220
      %s223 = sadd.s32 %s222, 1
      %p226 = scmp.eq.s32.totalorder %s20, 1
      %p227 = scmp.ne.s32.totalorder %s222, %s224
      %p228 = scmp.eq.s32.totalorder %s20, 0
      %p229 = por %p227, %p228
      %p230 = scmp.ne.s32.totalorder %s222, %s224
      %p231 = scmp.eq.s32.totalorder %s25, 1
      %p232 = por %p230, %p231
      %p233 = scmp.ne.s32.totalorder %s224, %s225
      %p234 = scmp.eq.s32.totalorder %s25, 0
      %p235 = por %p233, %p234
      %p236 = scmp.ne.s32.totalorder %s224, %s225
      %p237 = scmp.eq.s32.totalorder %s26, 1
      %p238 = por %p236, %p237
      %p240 = scmp.ne.s32.totalorder %s225, %s239
      %p241 = scmp.eq.s32.totalorder %s26, 0
      %p242 = por %p240, %p241
      %s244 = sadd.s32 %s243, 1
      %p247 = scmp.eq.s32.totalorder %s20, 1
      %p248 = scmp.ne.s32.totalorder %s243, %s245
      %p249 = scmp.eq.s32.totalorder %s20, 0
      %p250 = por %p248, %p249
      %p251 = scmp.ne.s32.totalorder %s243, %s245
      %p252 = scmp.eq.s32.totalorder %s25, 1
      %p253 = por %p251, %p252
      %p254 = scmp.ne.s32.totalorder %s245, %s246
      %p255 = scmp.eq.s32.totalorder %s25, 0
      %p256 = por %p254, %p255
      %p257 = scmp.ne.s32.totalorder %s245, %s246
      %p258 = scmp.eq.s32.totalorder %s26, 1
      %p259 = por %p257, %p258
      %p261 = scmp.ne.s32.totalorder %s246, %s260
      %p262 = scmp.eq.s32.totalorder %s26, 0
      %p263 = por %p261, %p262
      %s264 = ssub.s32 %s20, %s27
      %p265 = scmp.eq.s32.totalorder %s264, 0
      %s267 = sadd.s32 %s266, 1
      %s268 = scalar_select %p265, %s266, %s267
      %p271 = pneg %p265
      %p272 = scmp.eq.s32.totalorder %s20, 1
      %p273 = por %p271, %p272
      %p274 = scmp.ne.s32.totalorder %s266, %s269
      %p275 = scmp.eq.s32.totalorder %s20, 0
      %p276 = por %p274, %p275
      %p277 = scmp.ne.s32.totalorder %s266, %s269
      %p278 = scmp.eq.s32.totalorder %s25, 1
      %p279 = por %p277, %p278
      %p280 = scmp.ne.s32.totalorder %s269, %s270
      %p281 = scmp.eq.s32.totalorder %s25, 0
      %p282 = por %p280, %p281
      %p283 = scmp.ne.s32.totalorder %s269, %s270
      %p284 = scmp.eq.s32.totalorder %s26, 1
      %p285 = por %p283, %p284
      %p287 = scmp.ne.s32.totalorder %s270, %s286
      %p288 = scmp.eq.s32.totalorder %s26, 0
      %p289 = por %p287, %p288
      %p290 = scmp.le.s32.totalorder 1, %s20
      %p291 = scmp.lt.s32.totalorder %s20, 3
      %p292 = pnand %p290, %p291
      %p293 = pneg %p292
      // Predicated region
      $region9: #{tpu_custom_call.1} parent=5 // pred_check
        _
      $region10: #{tpu_custom_call.1} parent=5 // pred_check_branch
        %295 = sbr.rel (%p292) target = $region12
      $region11: #{tpu_custom_call.1} parent=5 // pred_region
        %s296 = ssub.s32 %s20, 1
        // Predicated region
        $region13: #{tpu_custom_call.1} parent=11 // pred_check
          %p297 = pneg %p67
        $region14: #{tpu_custom_call.1} parent=11 // pred_check_branch
          %299 = sbr.rel (%p297) target = $region16
        $region15: #{tpu_custom_call.1} parent=11 // pred_region
          _
        $region16: #{tpu_custom_call.1} parent=11 // pred_fallthru
          _
        // Predicated region
        $region17: #{tpu_custom_call.1} parent=11 // pred_check
          %p300 = pneg %p88
        $region18: #{tpu_custom_call.1} parent=11 // pred_check_branch
          %302 = sbr.rel (%p300) target = $region20
        $region19: #{tpu_custom_call.1} parent=11 // pred_region
          _
        $region20: #{tpu_custom_call.1} parent=11 // pred_fallthru
          _
        // Predicated region
        $region21: #{tpu_custom_call.1} parent=11 // pred_check
          %p303 = pneg %p109
        $region22: #{tpu_custom_call.1} parent=11 // pred_check_branch
          %305 = sbr.rel (%p303) target = $region24
        $region23: #{tpu_custom_call.1} parent=11 // pred_region
          _
        $region24: #{tpu_custom_call.1} parent=11 // pred_fallthru
          _
        // Predicated region
        $region25: #{tpu_custom_call.1} parent=11 // pred_check
          %p306 = pneg %p130
        $region26: #{tpu_custom_call.1} parent=11 // pred_check_branch
          %308 = sbr.rel (%p306) target = $region28
        $region27: #{tpu_custom_call.1} parent=11 // pred_region
          _
        $region28: #{tpu_custom_call.1} parent=11 // pred_fallthru
          _
        // Predicated region
        $region29: #{tpu_custom_call.1} parent=11 // pred_check
          %p309 = pneg %p151
        $region30: #{tpu_custom_call.1} parent=11 // pred_check_branch
          %311 = sbr.rel (%p309) target = $region32
        $region31: #{tpu_custom_call.1} parent=11 // pred_region
          _
        $region32: #{tpu_custom_call.1} parent=11 // pred_fallthru
          _
        // Predicated region
        $region33: #{tpu_custom_call.1} parent=11 // pred_check
          %p312 = pneg %p172
        $region34: #{tpu_custom_call.1} parent=11 // pred_check_branch
          %314 = sbr.rel (%p312) target = $region36
        $region35: #{tpu_custom_call.1} parent=11 // pred_region
          _
        $region36: #{tpu_custom_call.1} parent=11 // pred_fallthru
          _
        // Predicated region
        $region37: #{tpu_custom_call.1} parent=11 // pred_check
          %p315 = pneg %p193
        $region38: #{tpu_custom_call.1} parent=11 // pred_check_branch
          %317 = sbr.rel (%p315) target = $region40
        $region39: #{tpu_custom_call.1} parent=11 // pred_region
          _
        $region40: #{tpu_custom_call.1} parent=11 // pred_fallthru
          _
        // Predicated region
        $region41: #{tpu_custom_call.1} parent=11 // pred_check
          %p318 = pneg %p214
        $region42: #{tpu_custom_call.1} parent=11 // pred_check_branch
          %320 = sbr.rel (%p318) target = $region44
        $region43: #{tpu_custom_call.1} parent=11 // pred_region
          _
        $region44: #{tpu_custom_call.1} parent=11 // pred_fallthru
          _
        // Predicated region
        $region45: #{tpu_custom_call.1} parent=11 // pred_check
          %p321 = pneg %p235
        $region46: #{tpu_custom_call.1} parent=11 // pred_check_branch
          %323 = sbr.rel (%p321) target = $region48
        $region47: #{tpu_custom_call.1} parent=11 // pred_region
          _
        $region48: #{tpu_custom_call.1} parent=11 // pred_fallthru
          _
        // Predicated region
        $region49: #{tpu_custom_call.1} parent=11 // pred_check
          %p324 = pneg %p256
        $region50: #{tpu_custom_call.1} parent=11 // pred_check_branch
          %326 = sbr.rel (%p324) target = $region52
        $region51: #{tpu_custom_call.1} parent=11 // pred_region
          _
        $region52: #{tpu_custom_call.1} parent=11 // pred_fallthru
          _
      $region12: #{tpu_custom_call.1} parent=5 // pred_fallthru
        _
      %p327 = scmp.lt.s32.totalorder %s20, 2
      // Predicated region
      $region53: #{tpu_custom_call.1} parent=5 // pred_check
        %p328 = pneg %p327
      $region54: #{tpu_custom_call.1} parent=5 // pred_check_branch
        %330 = sbr.rel (%p328) target = $region56
      $region55: #{tpu_custom_call.1} parent=5 // pred_region
        // Predicated region
        $region57: #{tpu_custom_call.1} parent=55 // pred_check
          %p331 = pneg %p40
        $region58: #{tpu_custom_call.1} parent=55 // pred_check_branch
          %333 = sbr.rel (%p331) target = $region60
        $region59: #{tpu_custom_call.1} parent=55 // pred_region
          %s334 = sand.u32 %s30, 1
          %s335 = sand.u32 %s30, 1
          %s336 = smul.addr %s335, 64
          %s337 = scalar_lea.vmem [#allocation2], %s336
          %s338 = smul.addr %s20, 4
          %s339 = scalar_lea.vmem %s0, %s338
          // Predicated region
          $region61: #{tpu_custom_call.1} parent=59 // pred_check
            _
          $region62: #{tpu_custom_call.1} parent=59 // pred_check_branch
            %341 = sbr.rel (0) target = $region64
          $region63: #{tpu_custom_call.1} parent=59 // pred_region
            // Predicated region
            $region65: #{tpu_custom_call.1} parent=63 // pred_check
              _
            $region66: #{tpu_custom_call.1} parent=63 // pred_check_branch
              %343 = sbr.rel target = $region68
            $region67: #{tpu_custom_call.1} parent=63 // pred_region
              // Predicated region
              $region80: #{tpu_custom_call.1} parent=67 // pred_check
                _
              $region81: #{tpu_custom_call.1} parent=67 // pred_check_branch
                %388 = sbr.rel (0) target = $region83
              $region82: #{tpu_custom_call.1} parent=67 // pred_region
                loop: start=0, step=1, limit=1
                $region84: #{tpu_custom_call.1} parent=82 // loop_pre_header
                  _
                $region85: #{tpu_custom_call.1} parent=82 // loop_header
                  %s390 = sphi 0, %s394
                  %p391 = scmp.ge.s32.totalorder %s390, 1
                  %s395 = sphi %s339, %s339
                  %s396 = sphi %s337, %s337
                $region86: #{tpu_custom_call.1} parent=82 // loop_header_branch
                  %393 = sbr.rel (%p391) target = $region90
                $region87: #{tpu_custom_call.1} parent=82 // loop_body
                  _
                $region88: #{tpu_custom_call.1} parent=82 // loop_footer
                  %s394 = sadd.s32 1, %s390
                $region89: #{tpu_custom_call.1} parent=82 // loop_footer_branch
                  %389 = sbr.rel target = $region85
                $region90: #{tpu_custom_call.1} parent=82 // loop_exit
                  _
                loop: start=0, step=1, limit=1
                $region91: #{tpu_custom_call.1} parent=82 // loop_pre_header
                  _
                $region92: #{tpu_custom_call.1} parent=82 // loop_header
                  %s399 = sphi 0, %s403
                  %p400 = scmp.ge.s32.totalorder %s399, 1
                  %s404 = sphi %s339, %s339
                  %s405 = sphi %s337, %s337
                $region93: #{tpu_custom_call.1} parent=82 // loop_header_branch
                  %402 = sbr.rel (%p400) target = $region97
                $region94: #{tpu_custom_call.1} parent=82 // loop_body
                  %v406 = vld [vmem:[%s404] sm:$0xf]
                  %407 = vst [vmem:[%s405] sm:$0xf] %v406
                  %v408 = vld [vmem:[%s404 + $0x8] sm:$0xf]
                  %409 = vst [vmem:[%s405 + $0x4] sm:$0xf] %v408
                  %v410 = vld [vmem:[%s404 + $0x10] sm:$0xf]
                  %411 = vst [vmem:[%s405 + $0x8] sm:$0xf] %v410
                  %v412 = vld [vmem:[%s404 + $0x18] sm:$0xf]
                  %413 = vst [vmem:[%s405 + $0xc] sm:$0xf] %v412
                  %v414 = vld [vmem:[%s404 + $0x20] sm:$0xf]
                  %415 = vst [vmem:[%s405 + $0x10] sm:$0xf] %v414
                  %v416 = vld [vmem:[%s404 + $0x28] sm:$0xf]
                  %417 = vst [vmem:[%s405 + $0x14] sm:$0xf] %v416
                  %v418 = vld [vmem:[%s404 + $0x30] sm:$0xf]
                  %419 = vst [vmem:[%s405 + $0x18] sm:$0xf] %v418
                  %v420 = vld [vmem:[%s404 + $0x38] sm:$0xf]
                  %421 = vst [vmem:[%s405 + $0x1c] sm:$0xf] %v420
                  %v422 = vld [vmem:[%s404 + $0x40] sm:$0xf]
                  %423 = vst [vmem:[%s405 + $0x20] sm:$0xf] %v422
                  %v424 = vld [vmem:[%s404 + $0x48] sm:$0xf]
                  %425 = vst [vmem:[%s405 + $0x24] sm:$0xf] %v424
                  %v426 = vld [vmem:[%s404 + $0x50] sm:$0xf]
                  %427 = vst [vmem:[%s405 + $0x28] sm:$0xf] %v426
                  %v428 = vld [vmem:[%s404 + $0x58] sm:$0xf]
                  %429 = vst [vmem:[%s405 + $0x2c] sm:$0xf] %v428
                  %v430 = vld [vmem:[%s404 + $0x60] sm:$0xf]
                  %431 = vst [vmem:[%s405 + $0x30] sm:$0xf] %v430
                  %v432 = vld [vmem:[%s404 + $0x68] sm:$0xf]
                  %433 = vst [vmem:[%s405 + $0x34] sm:$0xf] %v432
                  %v434 = vld [vmem:[%s404 + $0x70] sm:$0xf]
                  %435 = vst [vmem:[%s405 + $0x38] sm:$0xf] %v434
                  %v436 = vld [vmem:[%s404 + $0x78] sm:$0xf]
                  %437 = vst [vmem:[%s405 + $0x3c] sm:$0xf] %v436
                $region95: #{tpu_custom_call.1} parent=82 // loop_footer
                  %s403 = sadd.s32 1, %s399
                $region96: #{tpu_custom_call.1} parent=82 // loop_footer_branch
                  %398 = sbr.rel target = $region92
                $region97: #{tpu_custom_call.1} parent=82 // loop_exit
                  _
              $region83: #{tpu_custom_call.1} parent=67 // pred_fallthru
                _
            $region68: #{tpu_custom_call.1} parent=63 // pred_fallthru
              _
            // Predicated region
            $region69: #{tpu_custom_call.1} parent=63 // pred_check
              _
            $region70: #{tpu_custom_call.1} parent=63 // pred_check_branch
              %345 = sbr.rel (0) target = $region72
            $region71: #{tpu_custom_call.1} parent=63 // pred_region
              loop: start=0, step=1, limit=1
              $region73: #{tpu_custom_call.1} parent=71 // loop_pre_header
                _
              $region74: #{tpu_custom_call.1} parent=71 // loop_header
                %s348 = sphi 0, %s352
                %p349 = scmp.ge.s32.totalorder %s348, 1
                %s353 = sphi %s339, %s339
                %s354 = sphi %s337, %s337
              $region75: #{tpu_custom_call.1} parent=71 // loop_header_branch
                %351 = sbr.rel (%p349) target = $region79
              $region76: #{tpu_custom_call.1} parent=71 // loop_body
                %v355 = vld [vmem:[%s353] sm:$0xf]
                %356 = vst [vmem:[%s354] sm:$0xf] %v355
                %v357 = vld [vmem:[%s353 + $0x8] sm:$0xf]
                %358 = vst [vmem:[%s354 + $0x4] sm:$0xf] %v357
                %v359 = vld [vmem:[%s353 + $0x10] sm:$0xf]
                %360 = vst [vmem:[%s354 + $0x8] sm:$0xf] %v359
                %v361 = vld [vmem:[%s353 + $0x18] sm:$0xf]
                %362 = vst [vmem:[%s354 + $0xc] sm:$0xf] %v361
                %v363 = vld [vmem:[%s353 + $0x20] sm:$0xf]
                %364 = vst [vmem:[%s354 + $0x10] sm:$0xf] %v363
                %v365 = vld [vmem:[%s353 + $0x28] sm:$0xf]
                %366 = vst [vmem:[%s354 + $0x14] sm:$0xf] %v365
                %v367 = vld [vmem:[%s353 + $0x30] sm:$0xf]
                %368 = vst [vmem:[%s354 + $0x18] sm:$0xf] %v367
                %v369 = vld [vmem:[%s353 + $0x38] sm:$0xf]
                %370 = vst [vmem:[%s354 + $0x1c] sm:$0xf] %v369
                %v371 = vld [vmem:[%s353 + $0x40] sm:$0xf]
                %372 = vst [vmem:[%s354 + $0x20] sm:$0xf] %v371
                %v373 = vld [vmem:[%s353 + $0x48] sm:$0xf]
                %374 = vst [vmem:[%s354 + $0x24] sm:$0xf] %v373
                %v375 = vld [vmem:[%s353 + $0x50] sm:$0xf]
                %376 = vst [vmem:[%s354 + $0x28] sm:$0xf] %v375
                %v377 = vld [vmem:[%s353 + $0x58] sm:$0xf]
                %378 = vst [vmem:[%s354 + $0x2c] sm:$0xf] %v377
                %v379 = vld [vmem:[%s353 + $0x60] sm:$0xf]
                %380 = vst [vmem:[%s354 + $0x30] sm:$0xf] %v379
                %v381 = vld [vmem:[%s353 + $0x68] sm:$0xf]
                %382 = vst [vmem:[%s354 + $0x34] sm:$0xf] %v381
                %v383 = vld [vmem:[%s353 + $0x70] sm:$0xf]
                %384 = vst [vmem:[%s354 + $0x38] sm:$0xf] %v383
                %v385 = vld [vmem:[%s353 + $0x78] sm:$0xf]
                %386 = vst [vmem:[%s354 + $0x3c] sm:$0xf] %v385
              $region77: #{tpu_custom_call.1} parent=71 // loop_footer
                %s352 = sadd.s32 1, %s348
              $region78: #{tpu_custom_call.1} parent=71 // loop_footer_branch
                %347 = sbr.rel target = $region74
              $region79: #{tpu_custom_call.1} parent=71 // loop_exit
                _
            $region72: #{tpu_custom_call.1} parent=63 // pred_fallthru
              _
          $region64: #{tpu_custom_call.1} parent=59 // pred_fallthru
            _
          %438 = vnop
        $region60: #{tpu_custom_call.1} parent=55 // pred_fallthru
          _
      $region56: #{tpu_custom_call.1} parent=5 // pred_fallthru
        _
      %p439 = scmp.le.s32.totalorder 1, %s20
      %p440 = scmp.lt.s32.totalorder %s20, 3
      %p441 = pnand %p439, %p440
      %p442 = pneg %p441
      // Predicated region
      $region98: #{tpu_custom_call.1} parent=5 // pred_check
        _
      $region99: #{tpu_custom_call.1} parent=5 // pred_check_branch
        %444 = sbr.rel (%p441) target = $region101
      $region100: #{tpu_custom_call.1} parent=5 // pred_region
        %s445 = ssub.s32 %s20, 1
        %s446 = sand.u32 %s33, 1
        %s447 = sand.u32 %s33, 1
        %s448 = smul.addr %s447, 64
        %s449 = scalar_lea.vmem [#allocation2], %s448
        // Predicated region
        $region102: #{tpu_custom_call.1} parent=100 // pred_check
          %p450 = pneg %p46
        $region103: #{tpu_custom_call.1} parent=100 // pred_check_branch
          %452 = sbr.rel (%p450) target = $region105
        $region104: #{tpu_custom_call.1} parent=100 // pred_region
          _
        $region105: #{tpu_custom_call.1} parent=100 // pred_fallthru
          _
        %s453 = sand.u32 %s33, 1
        %s454 = sand.u32 %s33, 1
        %s455 = smul.addr %s454, 64
        %s456 = scalar_lea.vmem [#allocation2], %s455
        %p457 = pneg %p46
        %p458 = pneg %p43
        %p459 = pneg %p67
        %p460 = pneg %p64
        %p461 = pneg %p88
        %p462 = pneg %p85
        %p463 = pneg %p109
        %p464 = pneg %p106
        %p465 = pneg %p130
        %p466 = pneg %p127
        %p467 = pneg %p151
        %p468 = pneg %p148
        %p469 = pneg %p172
        %p470 = pneg %p169
        %p471 = pneg %p193
        %p472 = pneg %p190
        %p473 = pneg %p214
        %p474 = pneg %p211
        %p475 = pneg %p235
        %p476 = pneg %p232
        %p477 = pneg %p256
        %p478 = pneg %p253
        %p479 = pneg %p282
        %p480 = pneg %p279
        %s481 = sand.u32 %s269, 1
        %s482 = scalar_lea.sflag [#allocation4], %s481
        %s483 = sand.u32 %s269, 1
        %s484 = scalar_lea.vmem [#allocation3], %s483
        %v486 = vld [vmem:[%s1] sm:$0xf]
        %v487 = vld [vmem:[%s1 + $0x4] sm:$0xf]
        %v488 = vld [vmem:[%s1 + $0x8] sm:$0xf]
        %v489 = vld [vmem:[%s1 + $0xc] sm:$0xf]
        %v490 = vld [vmem:[%s1 + $0x10] sm:$0xf]
        %v491 = vld [vmem:[%s1 + $0x14] sm:$0xf]
        %v492 = vld [vmem:[%s1 + $0x18] sm:$0xf]
        %v493 = vld [vmem:[%s1 + $0x1c] sm:$0xf]
        %v494 = vld [vmem:[%s1 + $0x20] sm:$0xf]
        %v495 = vld [vmem:[%s1 + $0x24] sm:$0xf]
        %v496 = vld [vmem:[%s1 + $0x28] sm:$0xf]
        %v497 = vld [vmem:[%s1 + $0x2c] sm:$0xf]
        %v498 = vld [vmem:[%s1 + $0x30] sm:$0xf]
        %v499 = vld [vmem:[%s1 + $0x34] sm:$0xf]
        %v500 = vld [vmem:[%s1 + $0x38] sm:$0xf]
        %v501 = vld [vmem:[%s1 + $0x3c] sm:$0xf]
        %v502 = vld [vmem:[%s1 + $0x40] sm:$0xf]
        %v503 = vld [vmem:[%s1 + $0x44] sm:$0xf]
        %v504 = vld [vmem:[%s1 + $0x48] sm:$0xf]
        %v505 = vld [vmem:[%s1 + $0x4c] sm:$0xf]
        %v506 = vld [vmem:[%s1 + $0x50] sm:$0xf]
        %v507 = vld [vmem:[%s1 + $0x54] sm:$0xf]
        %v508 = vld [vmem:[%s1 + $0x58] sm:$0xf]
        %v509 = vld [vmem:[%s1 + $0x5c] sm:$0xf]
        %v510 = vld [vmem:[%s1 + $0x60] sm:$0xf]
        %v511 = vld [vmem:[%s1 + $0x64] sm:$0xf]
        %v512 = vld [vmem:[%s1 + $0x68] sm:$0xf]
        %v513 = vld [vmem:[%s1 + $0x6c] sm:$0xf]
        %v514 = vld [vmem:[%s1 + $0x70] sm:$0xf]
        %v515 = vld [vmem:[%s1 + $0x74] sm:$0xf]
        %v516 = vld [vmem:[%s1 + $0x78] sm:$0xf]
        %v517 = vld [vmem:[%s1 + $0x7c] sm:$0xf]
        %v518 = vld [vmem:[%s449] sm:$0xf]
        %v519 = vld [vmem:[%s449 + $0x4] sm:$0xf]
        %v520 = vld [vmem:[%s449 + $0x8] sm:$0xf]
        %v521 = vld [vmem:[%s449 + $0xc] sm:$0xf]
        %v522 = vld [vmem:[%s449 + $0x10] sm:$0xf]
        %v523 = vld [vmem:[%s449 + $0x14] sm:$0xf]
        %v524 = vld [vmem:[%s449 + $0x18] sm:$0xf]
        %v525 = vld [vmem:[%s449 + $0x1c] sm:$0xf]
        %v526 = vld [vmem:[%s449 + $0x20] sm:$0xf]
        %v527 = vld [vmem:[%s449 + $0x24] sm:$0xf]
        %v528 = vld [vmem:[%s449 + $0x28] sm:$0xf]
        %v529 = vld [vmem:[%s449 + $0x2c] sm:$0xf]
        %v530 = vld [vmem:[%s449 + $0x30] sm:$0xf]
        %v531 = vld [vmem:[%s449 + $0x34] sm:$0xf]
        %v532 = vld [vmem:[%s449 + $0x38] sm:$0xf]
        %v533 = vld [vmem:[%s449 + $0x3c] sm:$0xf]
        %v534 = vld [vmem:[%s2] sm:$0xff]
        %v535 = vld [vmem:[%s2 + $0x8] sm:$0xff]
        %v536 = vld [vmem:[%s2 + $0x10] sm:$0xff]
        %v537 = vld [vmem:[%s2 + $0x18] sm:$0xff]
        %v538 = vld [vmem:[%s2 + $0x20] sm:$0xff]
        %v539 = vld [vmem:[%s2 + $0x28] sm:$0xff]
        %v540 = vld [vmem:[%s2 + $0x30] sm:$0xff]
        %v541 = vld [vmem:[%s2 + $0x38] sm:$0xff]
        %v542 = vld [vmem:[%s2 + $0x40] sm:$0xff]
        %v543 = vld [vmem:[%s2 + $0x48] sm:$0xff]
        %v544 = vld [vmem:[%s2 + $0x50] sm:$0xff]
        %v545 = vld [vmem:[%s2 + $0x58] sm:$0xff]
        %v546 = vld [vmem:[%s2 + $0x60] sm:$0xff]
        %v547 = vld [vmem:[%s2 + $0x68] sm:$0xff]
        %v548 = vld [vmem:[%s2 + $0x70] sm:$0xff]
        %v549 = vld [vmem:[%s2 + $0x78] sm:$0xff]
        %v550 = vld [vmem:[%s2 + $0x80] sm:$0xff]
        %v551 = vld [vmem:[%s2 + $0x88] sm:$0xff]
        %v552 = vld [vmem:[%s2 + $0x90] sm:$0xff]
        %v553 = vld [vmem:[%s2 + $0x98] sm:$0xff]
        %v554 = vld [vmem:[%s2 + $0xa0] sm:$0xff]
        %v555 = vld [vmem:[%s2 + $0xa8] sm:$0xff]
        %v556 = vld [vmem:[%s2 + $0xb0] sm:$0xff]
        %v557 = vld [vmem:[%s2 + $0xb8] sm:$0xff]
        %v558 = vld [vmem:[%s2 + $0xc0] sm:$0xff]
        %v559 = vld [vmem:[%s2 + $0xc8] sm:$0xff]
        %v560 = vld [vmem:[%s2 + $0xd0] sm:$0xff]
        %v561 = vld [vmem:[%s2 + $0xd8] sm:$0xff]
        %v562 = vld [vmem:[%s2 + $0xe0] sm:$0xff]
        %v563 = vld [vmem:[%s2 + $0xe8] sm:$0xff]
        %v564 = vld [vmem:[%s2 + $0xf0] sm:$0xff]
        %v565 = vld [vmem:[%s2 + $0xf8] sm:$0xff]
        %567 = vset.pattern.permute.xlu0 0
        %568 = vperm.xlu0 %567, %v534
        %v569 = vpop.permute.xlu0 %568
        %572 = vset.pattern.permute.xlu0 0
        %573 = vperm.xlu0 %572, %v535
        %v574 = vpop.permute.xlu0 %573
        %577 = vset.pattern.permute.xlu0 0
        %578 = vperm.xlu0 %577, %v536
        %v579 = vpop.permute.xlu0 %578
        %582 = vset.pattern.permute.xlu0 0
        %583 = vperm.xlu0 %582, %v537
        %v584 = vpop.permute.xlu0 %583
        %587 = vset.pattern.permute.xlu0 0
        %588 = vperm.xlu0 %587, %v538
        %v589 = vpop.permute.xlu0 %588
        %592 = vset.pattern.permute.xlu0 0
        %593 = vperm.xlu0 %592, %v539
        %v594 = vpop.permute.xlu0 %593
        %597 = vset.pattern.permute.xlu0 0
        %598 = vperm.xlu0 %597, %v540
        %v599 = vpop.permute.xlu0 %598
        %602 = vset.pattern.permute.xlu0 0
        %603 = vperm.xlu0 %602, %v541
        %v604 = vpop.permute.xlu0 %603
        %607 = vset.pattern.permute.xlu0 0
        %608 = vperm.xlu0 %607, %v542
        %v609 = vpop.permute.xlu0 %608
        %612 = vset.pattern.permute.xlu0 0
        %613 = vperm.xlu0 %612, %v543
        %v614 = vpop.permute.xlu0 %613
        %617 = vset.pattern.permute.xlu0 0
        %618 = vperm.xlu0 %617, %v544
        %v619 = vpop.permute.xlu0 %618
        %622 = vset.pattern.permute.xlu0 0
        %623 = vperm.xlu0 %622, %v545
        %v624 = vpop.permute.xlu0 %623
        %627 = vset.pattern.permute.xlu0 0
        %628 = vperm.xlu0 %627, %v546
        %v629 = vpop.permute.xlu0 %628
        %632 = vset.pattern.permute.xlu0 0
        %633 = vperm.xlu0 %632, %v547
        %v634 = vpop.permute.xlu0 %633
        %637 = vset.pattern.permute.xlu0 0
        %638 = vperm.xlu0 %637, %v548
        %v639 = vpop.permute.xlu0 %638
        %642 = vset.pattern.permute.xlu0 0
        %643 = vperm.xlu0 %642, %v549
        %v644 = vpop.permute.xlu0 %643
        %647 = vset.pattern.permute.xlu0 0
        %648 = vperm.xlu0 %647, %v550
        %v649 = vpop.permute.xlu0 %648
        %652 = vset.pattern.permute.xlu0 0
        %653 = vperm.xlu0 %652, %v551
        %v654 = vpop.permute.xlu0 %653
        %657 = vset.pattern.permute.xlu0 0
        %658 = vperm.xlu0 %657, %v552
        %v659 = vpop.permute.xlu0 %658
        %662 = vset.pattern.permute.xlu0 0
        %663 = vperm.xlu0 %662, %v553
        %v664 = vpop.permute.xlu0 %663
        %667 = vset.pattern.permute.xlu0 0
        %668 = vperm.xlu0 %667, %v554
        %v669 = vpop.permute.xlu0 %668
        %672 = vset.pattern.permute.xlu0 0
        %673 = vperm.xlu0 %672, %v555
        %v674 = vpop.permute.xlu0 %673
        %677 = vset.pattern.permute.xlu0 0
        %678 = vperm.xlu0 %677, %v556
        %v679 = vpop.permute.xlu0 %678
        %682 = vset.pattern.permute.xlu0 0
        %683 = vperm.xlu0 %682, %v557
        %v684 = vpop.permute.xlu0 %683
        %687 = vset.pattern.permute.xlu0 0
        %688 = vperm.xlu0 %687, %v558
        %v689 = vpop.permute.xlu0 %688
        %692 = vset.pattern.permute.xlu0 0
        %693 = vperm.xlu0 %692, %v559
        %v694 = vpop.permute.xlu0 %693
        %697 = vset.pattern.permute.xlu0 0
        %698 = vperm.xlu0 %697, %v560
        %v699 = vpop.permute.xlu0 %698
        %702 = vset.pattern.permute.xlu0 0
        %703 = vperm.xlu0 %702, %v561
        %v704 = vpop.permute.xlu0 %703
        %707 = vset.pattern.permute.xlu0 0
        %708 = vperm.xlu0 %707, %v562
        %v709 = vpop.permute.xlu0 %708
        %712 = vset.pattern.permute.xlu0 0
        %713 = vperm.xlu0 %712, %v563
        %v714 = vpop.permute.xlu0 %713
        %717 = vset.pattern.permute.xlu0 0
        %718 = vperm.xlu0 %717, %v564
        %v719 = vpop.permute.xlu0 %718
        %722 = vset.pattern.permute.xlu0 0
        %723 = vperm.xlu0 %722, %v565
        %v724 = vpop.permute.xlu0 %723
        %v758 = vunpack.c.l.b16 %v486
        %v759 = vunpack.c.l.b16 %v487
        %v760 = vunpack.c.l.b16 %v488
        %v761 = vunpack.c.l.b16 %v489
        %v762 = vunpack.c.l.b16 %v490
        %v763 = vunpack.c.l.b16 %v491
        %v764 = vunpack.c.l.b16 %v492
        %v765 = vunpack.c.l.b16 %v493
        %v766 = vunpack.c.l.b16 %v494
        %v767 = vunpack.c.l.b16 %v495
        %v768 = vunpack.c.l.b16 %v496
        %v769 = vunpack.c.l.b16 %v497
        %v770 = vunpack.c.l.b16 %v498
        %v771 = vunpack.c.l.b16 %v499
        %v772 = vunpack.c.l.b16 %v500
        %v773 = vunpack.c.l.b16 %v501
        %v774 = vunpack.c.l.b16 %v502
        %v775 = vunpack.c.l.b16 %v503
        %v776 = vunpack.c.l.b16 %v504
        %v777 = vunpack.c.l.b16 %v505
        %v778 = vunpack.c.l.b16 %v506
        %v779 = vunpack.c.l.b16 %v507
        %v780 = vunpack.c.l.b16 %v508
        %v781 = vunpack.c.l.b16 %v509
        %v782 = vunpack.c.l.b16 %v510
        %v783 = vunpack.c.l.b16 %v511
        %v784 = vunpack.c.l.b16 %v512
        %v785 = vunpack.c.l.b16 %v513
        %v786 = vunpack.c.l.b16 %v514
        %v787 = vunpack.c.l.b16 %v515
        %v788 = vunpack.c.l.b16 %v516
        %v789 = vunpack.c.l.b16 %v517
        %v790 = vpack.c.b16 %v759, %v758
        %v791 = vpack.c.b16 %v761, %v760
        %v792 = vpack.c.b16 %v763, %v762
        %v793 = vpack.c.b16 %v765, %v764
        %v794 = vpack.c.b16 %v767, %v766
        %v795 = vpack.c.b16 %v769, %v768
        %v796 = vpack.c.b16 %v771, %v770
        %v797 = vpack.c.b16 %v773, %v772
        %v798 = vpack.c.b16 %v775, %v774
        %v799 = vpack.c.b16 %v777, %v776
        %v800 = vpack.c.b16 %v779, %v778
        %v801 = vpack.c.b16 %v781, %v780
        %v802 = vpack.c.b16 %v783, %v782
        %v803 = vpack.c.b16 %v785, %v784
        %v804 = vpack.c.b16 %v787, %v786
        %v805 = vpack.c.b16 %v789, %v788
        %v838 = vunpack.c.l.b16 %v518
        %v839 = vunpack.c.l.b16 %v519
        %v840 = vunpack.c.l.b16 %v520
        %v841 = vunpack.c.l.b16 %v521
        %v842 = vunpack.c.l.b16 %v522
        %v843 = vunpack.c.l.b16 %v523
        %v844 = vunpack.c.l.b16 %v524
        %v845 = vunpack.c.l.b16 %v525
        %v846 = vunpack.c.l.b16 %v526
        %v847 = vunpack.c.l.b16 %v527
        %v848 = vunpack.c.l.b16 %v528
        %v849 = vunpack.c.l.b16 %v529
        %v850 = vunpack.c.l.b16 %v530
        %v851 = vunpack.c.l.b16 %v531
        %v852 = vunpack.c.l.b16 %v532
        %v853 = vunpack.c.l.b16 %v533
        %v854 = vpack.c.b16 %v839, %v838
        %v855 = vpack.c.b16 %v841, %v840
        %v856 = vpack.c.b16 %v843, %v842
        %v857 = vpack.c.b16 %v845, %v844
        %v858 = vpack.c.b16 %v847, %v846
        %v859 = vpack.c.b16 %v849, %v848
        %v860 = vpack.c.b16 %v851, %v850
        %v861 = vpack.c.b16 %v853, %v852
        %870 = vmatprep.subr.bf16.mxu0 0
        %871 = vmatpush1.bf16.msra.mxu0 %v854
        %872 = vmatprep.subr.bf16.mxu0 0
        %873 = vmatpush1.bf16.msra.mxu0 %v855
        %874 = vmatprep.subr.bf16.mxu0 0
        %875 = vmatpush1.bf16.msra.mxu0 %v856
        %876 = vmatprep.subr.bf16.mxu0 0
        %877 = vmatpush1.bf16.msra.mxu0 %v857
        %878 = vmatprep.subr.bf16.mxu0 0
        %879 = vmatpush1.bf16.msra.mxu0 %v858
        %880 = vmatprep.subr.bf16.mxu0 0
        %881 = vmatpush1.bf16.msra.mxu0 %v859
        %882 = vmatprep.subr.bf16.mxu0 0
        %883 = vmatpush1.bf16.msra.mxu0 %v860
        %884 = vmatprep.subr.bf16.mxu0 0
        %885 = vmatpush1.bf16.msra.mxu0 %v861
        %886 = vmatprep.subr.bf16.mxu0 0
        %887 = vmatpush1.bf16.msra.mxu0 0
        %888 = vmatprep.subr.bf16.mxu0 0
        %889 = vmatpush1.bf16.msra.mxu0 0
        %890 = vmatprep.subr.bf16.mxu0 0
        %891 = vmatpush1.bf16.msra.mxu0 0
        %892 = vmatprep.subr.bf16.mxu0 0
        %893 = vmatpush1.bf16.msra.mxu0 0
        %894 = vmatprep.subr.bf16.mxu0 0
        %895 = vmatpush1.bf16.msra.mxu0 0
        %896 = vmatprep.subr.bf16.mxu0 0
        %897 = vmatpush1.bf16.msra.mxu0 0
        %898 = vmatprep.subr.bf16.mxu0 0
        %899 = vmatpush1.bf16.msra.mxu0 0
        %900 = vmatprep.subr.bf16.mxu0 0
        %901 = vmatpush1.bf16.msra.mxu0 0
        %902 = vmatprep.mubr.bf16.mxu0 0
        %903 = vmatmul.mubr.bf16.gmra.mrb[0].mxu0 %v790
        %v904 = vpop.f32.mrb[0].mxu0
        %v905 = vadd.f32 %v569, %v904
        %v906 = vpop.f32.mrb[0].mxu0
        %v907 = vpop.f32.mrb[0].mxu0
        %v908 = vadd.f32 %v574, %v907
        %v909 = vpop.f32.mrb[0].mxu0
        %910 = vmatprep.mubr.bf16.mxu0 0
        %911 = vmatmul.mubr.bf16.gmra.mrb[0].mxu0 %v791
        %v912 = vpop.f32.mrb[0].mxu0
        %v913 = vadd.f32 %v579, %v912
        %v914 = vpop.f32.mrb[0].mxu0
        %v915 = vpop.f32.mrb[0].mxu0
        %v916 = vadd.f32 %v584, %v915
        %v917 = vpop.f32.mrb[0].mxu0
        %918 = vmatprep.mubr.bf16.mxu0 0
        %919 = vmatmul.mubr.bf16.gmra.mrb[0].mxu0 %v792
        %v920 = vpop.f32.mrb[0].mxu0
        %v921 = vadd.f32 %v589, %v920
        %v922 = vpop.f32.mrb[0].mxu0
        %v923 = vpop.f32.mrb[0].mxu0
        %v924 = vadd.f32 %v594, %v923
        %v925 = vpop.f32.mrb[0].mxu0
        %926 = vmatprep.mubr.bf16.mxu0 0
        %927 = vmatmul.mubr.bf16.gmra.mrb[0].mxu0 %v793
        %v928 = vpop.f32.mrb[0].mxu0
        %v929 = vadd.f32 %v599, %v928
        %v930 = vpop.f32.mrb[0].mxu0
        %v931 = vpop.f32.mrb[0].mxu0
        %v932 = vadd.f32 %v604, %v931
        %v933 = vpop.f32.mrb[0].mxu0
        %934 = vmatprep.mubr.bf16.mxu0 0
        %935 = vmatmul.mubr.bf16.gmra.mrb[0].mxu0 %v794
        %v936 = vpop.f32.mrb[0].mxu0
        %v937 = vadd.f32 %v609, %v936
        %v938 = vpop.f32.mrb[0].mxu0
        %v939 = vpop.f32.mrb[0].mxu0
        %v940 = vadd.f32 %v614, %v939
        %v941 = vpop.f32.mrb[0].mxu0
        %942 = vmatprep.mubr.bf16.mxu0 0
        %943 = vmatmul.mubr.bf16.gmra.mrb[0].mxu0 %v795
        %v944 = vpop.f32.mrb[0].mxu0
        %v945 = vadd.f32 %v619, %v944
        %v946 = vpop.f32.mrb[0].mxu0
        %v947 = vpop.f32.mrb[0].mxu0
        %v948 = vadd.f32 %v624, %v947
        %v949 = vpop.f32.mrb[0].mxu0
        %950 = vmatprep.mubr.bf16.mxu0 0
        %951 = vmatmul.mubr.bf16.gmra.mrb[0].mxu0 %v796
        %v952 = vpop.f32.mrb[0].mxu0
        %v953 = vadd.f32 %v629, %v952
        %v954 = vpop.f32.mrb[0].mxu0
        %v955 = vpop.f32.mrb[0].mxu0
        %v956 = vadd.f32 %v634, %v955
        %v957 = vpop.f32.mrb[0].mxu0
        %958 = vmatprep.mubr.bf16.mxu0 0
        %959 = vmatmul.mubr.bf16.gmra.mrb[0].mxu0 %v797
        %v960 = vpop.f32.mrb[0].mxu0
        %v961 = vadd.f32 %v639, %v960
        %v962 = vpop.f32.mrb[0].mxu0
        %v963 = vpop.f32.mrb[0].mxu0
        %v964 = vadd.f32 %v644, %v963
        %v965 = vpop.f32.mrb[0].mxu0
        %966 = vmatprep.mubr.bf16.mxu0 0
        %967 = vmatmul.mubr.bf16.gmra.mrb[0].mxu0 %v798
        %v968 = vpop.f32.mrb[0].mxu0
        %v969 = vadd.f32 %v649, %v968
        %v970 = vpop.f32.mrb[0].mxu0
        %v971 = vpop.f32.mrb[0].mxu0
        %v972 = vadd.f32 %v654, %v971
        %v973 = vpop.f32.mrb[0].mxu0
        %974 = vmatprep.mubr.bf16.mxu0 0
        %975 = vmatmul.mubr.bf16.gmra.mrb[0].mxu0 %v799
        %v976 = vpop.f32.mrb[0].mxu0
        %v977 = vadd.f32 %v659, %v976
        %v978 = vpop.f32.mrb[0].mxu0
        %v979 = vpop.f32.mrb[0].mxu0
        %v980 = vadd.f32 %v664, %v979
        %v981 = vpop.f32.mrb[0].mxu0
        %982 = vmatprep.mubr.bf16.mxu0 0
        %983 = vmatmul.mubr.bf16.gmra.mrb[0].mxu0 %v800
        %v984 = vpop.f32.mrb[0].mxu0
        %v985 = vadd.f32 %v669, %v984
        %v986 = vpop.f32.mrb[0].mxu0
        %v987 = vpop.f32.mrb[0].mxu0
        %v988 = vadd.f32 %v674, %v987
        %v989 = vpop.f32.mrb[0].mxu0
        %990 = vmatprep.mubr.bf16.mxu0 0
        %991 = vmatmul.mubr.bf16.gmra.mrb[0].mxu0 %v801
        %v992 = vpop.f32.mrb[0].mxu0
        %v993 = vadd.f32 %v679, %v992
        %v994 = vpop.f32.mrb[0].mxu0
        %v995 = vpop.f32.mrb[0].mxu0
        %v996 = vadd.f32 %v684, %v995
        %v997 = vpop.f32.mrb[0].mxu0
        %998 = vmatprep.mubr.bf16.mxu0 0
        %999 = vmatmul.mubr.bf16.gmra.mrb[0].mxu0 %v802
        %v1000 = vpop.f32.mrb[0].mxu0
        %v1001 = vadd.f32 %v689, %v1000
        %v1002 = vpop.f32.mrb[0].mxu0
        %v1003 = vpop.f32.mrb[0].mxu0
        %v1004 = vadd.f32 %v694, %v1003
        %v1005 = vpop.f32.mrb[0].mxu0
        %1006 = vmatprep.mubr.bf16.mxu0 0
        %1007 = vmatmul.mubr.bf16.gmra.mrb[0].mxu0 %v803
        %v1008 = vpop.f32.mrb[0].mxu0
        %v1009 = vadd.f32 %v699, %v1008
        %v1010 = vpop.f32.mrb[0].mxu0
        %v1011 = vpop.f32.mrb[0].mxu0
        %v1012 = vadd.f32 %v704, %v1011
        %v1013 = vpop.f32.mrb[0].mxu0
        %1014 = vmatprep.mubr.bf16.mxu0 0
        %1015 = vmatmul.mubr.bf16.gmra.mrb[0].mxu0 %v804
        %v1016 = vpop.f32.mrb[0].mxu0
        %v1017 = vadd.f32 %v709, %v1016
        %v1018 = vpop.f32.mrb[0].mxu0
        %v1019 = vpop.f32.mrb[0].mxu0
        %v1020 = vadd.f32 %v714, %v1019
        %v1021 = vpop.f32.mrb[0].mxu0
        %1022 = vmatprep.mubr.bf16.mxu0 0
        %1023 = vmatmul.mubr.bf16.gmra.mrb[0].mxu0 %v805
        %v1024 = vpop.f32.mrb[0].mxu0
        %v1025 = vadd.f32 %v719, %v1024
        %v1026 = vpop.f32.mrb[0].mxu0
        %v1027 = vpop.f32.mrb[0].mxu0
        %v1028 = vadd.f32 %v724, %v1027
        %v1029 = vpop.f32.mrb[0].mxu0
        %1030 = vdwg.mxu0
        %vm1031 = vcmp.ge.f32.partialorder %v905, 0.0
        %vm1032 = vcmp.ge.f32.partialorder %v908, 0.0
        %vm1033 = vcmp.ge.f32.partialorder %v913, 0.0
        %vm1034 = vcmp.ge.f32.partialorder %v916, 0.0
        %vm1035 = vcmp.ge.f32.partialorder %v921, 0.0
        %vm1036 = vcmp.ge.f32.partialorder %v924, 0.0
        %vm1037 = vcmp.ge.f32.partialorder %v929, 0.0
        %vm1038 = vcmp.ge.f32.partialorder %v932, 0.0
        %vm1039 = vcmp.ge.f32.partialorder %v937, 0.0
        %vm1040 = vcmp.ge.f32.partialorder %v940, 0.0
        %vm1041 = vcmp.ge.f32.partialorder %v945, 0.0
        %vm1042 = vcmp.ge.f32.partialorder %v948, 0.0
        %vm1043 = vcmp.ge.f32.partialorder %v953, 0.0
        %vm1044 = vcmp.ge.f32.partialorder %v956, 0.0
        %vm1045 = vcmp.ge.f32.partialorder %v961, 0.0
        %vm1046 = vcmp.ge.f32.partialorder %v964, 0.0
        %vm1047 = vcmp.ge.f32.partialorder %v969, 0.0
        %vm1048 = vcmp.ge.f32.partialorder %v972, 0.0
        %vm1049 = vcmp.ge.f32.partialorder %v977, 0.0
        %vm1050 = vcmp.ge.f32.partialorder %v980, 0.0
        %vm1051 = vcmp.ge.f32.partialorder %v985, 0.0
        %vm1052 = vcmp.ge.f32.partialorder %v988, 0.0
        %vm1053 = vcmp.ge.f32.partialorder %v993, 0.0
        %vm1054 = vcmp.ge.f32.partialorder %v996, 0.0
        %vm1055 = vcmp.ge.f32.partialorder %v1001, 0.0
        %vm1056 = vcmp.ge.f32.partialorder %v1004, 0.0
        %vm1057 = vcmp.ge.f32.partialorder %v1009, 0.0
        %vm1058 = vcmp.ge.f32.partialorder %v1012, 0.0
        %vm1059 = vcmp.ge.f32.partialorder %v1017, 0.0
        %vm1060 = vcmp.ge.f32.partialorder %v1020, 0.0
        %vm1061 = vcmp.ge.f32.partialorder %v1025, 0.0
        %vm1062 = vcmp.ge.f32.partialorder %v1028, 0.0
        %v1063 = vmul.f32 %v905, 0.2
        %v1064 = vmul.f32 %v908, 0.2
        %v1065 = vmul.f32 %v913, 0.2
        %v1066 = vmul.f32 %v916, 0.2
        %v1067 = vmul.f32 %v921, 0.2
        %v1068 = vmul.f32 %v924, 0.2
        %v1069 = vmul.f32 %v929, 0.2
        %v1070 = vmul.f32 %v932, 0.2
        %v1071 = vmul.f32 %v937, 0.2
        %v1072 = vmul.f32 %v940, 0.2
        %v1073 = vmul.f32 %v945, 0.2
        %v1074 = vmul.f32 %v948, 0.2
        %v1075 = vmul.f32 %v953, 0.2
        %v1076 = vmul.f32 %v956, 0.2
        %v1077 = vmul.f32 %v961, 0.2
        %v1078 = vmul.f32 %v964, 0.2
        %v1079 = vmul.f32 %v969, 0.2
        %v1080 = vmul.f32 %v972, 0.2
        %v1081 = vmul.f32 %v977, 0.2
        %v1082 = vmul.f32 %v980, 0.2
        %v1083 = vmul.f32 %v985, 0.2
        %v1084 = vmul.f32 %v988, 0.2
        %v1085 = vmul.f32 %v993, 0.2
        %v1086 = vmul.f32 %v996, 0.2
        %v1087 = vmul.f32 %v1001, 0.2
        %v1088 = vmul.f32 %v1004, 0.2
        %v1089 = vmul.f32 %v1009, 0.2
        %v1090 = vmul.f32 %v1012, 0.2
        %v1091 = vmul.f32 %v1017, 0.2
        %v1092 = vmul.f32 %v1020, 0.2
        %v1093 = vmul.f32 %v1025, 0.2
        %v1094 = vmul.f32 %v1028, 0.2
        %v1095 = vsel %vm1031, %v905, %v1063
        %v1096 = vsel %vm1032, %v908, %v1064
        %v1097 = vsel %vm1033, %v913, %v1065
        %v1098 = vsel %vm1034, %v916, %v1066
        %v1099 = vsel %vm1035, %v921, %v1067
        %v1100 = vsel %vm1036, %v924, %v1068
        %v1101 = vsel %vm1037, %v929, %v1069
        %v1102 = vsel %vm1038, %v932, %v1070
        %v1103 = vsel %vm1039, %v937, %v1071
        %v1104 = vsel %vm1040, %v940, %v1072
        %v1105 = vsel %vm1041, %v945, %v1073
        %v1106 = vsel %vm1042, %v948, %v1074
        %v1107 = vsel %vm1043, %v953, %v1075
        %v1108 = vsel %vm1044, %v956, %v1076
        %v1109 = vsel %vm1045, %v961, %v1077
        %v1110 = vsel %vm1046, %v964, %v1078
        %v1111 = vsel %vm1047, %v969, %v1079
        %v1112 = vsel %vm1048, %v972, %v1080
        %v1113 = vsel %vm1049, %v977, %v1081
        %v1114 = vsel %vm1050, %v980, %v1082
        %v1115 = vsel %vm1051, %v985, %v1083
        %v1116 = vsel %vm1052, %v988, %v1084
        %v1117 = vsel %vm1053, %v993, %v1085
        %v1118 = vsel %vm1054, %v996, %v1086
        %v1119 = vsel %vm1055, %v1001, %v1087
        %v1120 = vsel %vm1056, %v1004, %v1088
        %v1121 = vsel %vm1057, %v1009, %v1089
        %v1122 = vsel %vm1058, %v1012, %v1090
        %v1123 = vsel %vm1059, %v1017, %v1091
        %v1124 = vsel %vm1060, %v1020, %v1092
        %v1125 = vsel %vm1061, %v1025, %v1093
        %v1126 = vsel %vm1062, %v1028, %v1094
        %v1127 = vld [vmem:[%s3] sm:$0xff]
        %v1128 = vld [vmem:[%s3 + $0x8] sm:$0xff]
        %v1129 = vld [vmem:[%s3 + $0x10] sm:$0xff]
        %v1130 = vld [vmem:[%s3 + $0x18] sm:$0xff]
        %v1131 = vld [vmem:[%s3 + $0x20] sm:$0xff]
        %v1132 = vld [vmem:[%s3 + $0x28] sm:$0xff]
        %v1133 = vld [vmem:[%s3 + $0x30] sm:$0xff]
        %v1134 = vld [vmem:[%s3 + $0x38] sm:$0xff]
        %v1135 = vld [vmem:[%s3 + $0x40] sm:$0xff]
        %v1136 = vld [vmem:[%s3 + $0x48] sm:$0xff]
        %v1137 = vld [vmem:[%s3 + $0x50] sm:$0xff]
        %v1138 = vld [vmem:[%s3 + $0x58] sm:$0xff]
        %v1139 = vld [vmem:[%s3 + $0x60] sm:$0xff]
        %v1140 = vld [vmem:[%s3 + $0x68] sm:$0xff]
        %v1141 = vld [vmem:[%s3 + $0x70] sm:$0xff]
        %v1142 = vld [vmem:[%s3 + $0x78] sm:$0xff]
        %v1143 = vld [vmem:[%s3 + $0x80] sm:$0xff]
        %v1144 = vld [vmem:[%s3 + $0x88] sm:$0xff]
        %v1145 = vld [vmem:[%s3 + $0x90] sm:$0xff]
        %v1146 = vld [vmem:[%s3 + $0x98] sm:$0xff]
        %v1147 = vld [vmem:[%s3 + $0xa0] sm:$0xff]
        %v1148 = vld [vmem:[%s3 + $0xa8] sm:$0xff]
        %v1149 = vld [vmem:[%s3 + $0xb0] sm:$0xff]
        %v1150 = vld [vmem:[%s3 + $0xb8] sm:$0xff]
        %v1151 = vld [vmem:[%s3 + $0xc0] sm:$0xff]
        %v1152 = vld [vmem:[%s3 + $0xc8] sm:$0xff]
        %v1153 = vld [vmem:[%s3 + $0xd0] sm:$0xff]
        %v1154 = vld [vmem:[%s3 + $0xd8] sm:$0xff]
        %v1155 = vld [vmem:[%s3 + $0xe0] sm:$0xff]
        %v1156 = vld [vmem:[%s3 + $0xe8] sm:$0xff]
        %v1157 = vld [vmem:[%s3 + $0xf0] sm:$0xff]
        %v1158 = vld [vmem:[%s3 + $0xf8] sm:$0xff]
        %v1159 = vpack.c.bf16 %v1096, %v1095
        %v1160 = vpack.c.bf16 %v1098, %v1097
        %v1161 = vpack.c.bf16 %v1100, %v1099
        %v1162 = vpack.c.bf16 %v1102, %v1101
        %v1163 = vpack.c.bf16 %v1104, %v1103
        %v1164 = vpack.c.bf16 %v1106, %v1105
        %v1165 = vpack.c.bf16 %v1108, %v1107
        %v1166 = vpack.c.bf16 %v1110, %v1109
        %v1167 = vpack.c.bf16 %v1112, %v1111
        %v1168 = vpack.c.bf16 %v1114, %v1113
        %v1169 = vpack.c.bf16 %v1116, %v1115
        %v1170 = vpack.c.bf16 %v1118, %v1117
        %v1171 = vpack.c.bf16 %v1120, %v1119
        %v1172 = vpack.c.bf16 %v1122, %v1121
        %v1173 = vpack.c.bf16 %v1124, %v1123
        %v1174 = vpack.c.bf16 %v1126, %v1125
        %v1175 = vld [vmem:[%s4] sm:$0xff]
        %v1176 = vld [vmem:[%s4 + $0x8] sm:$0xff]
        %v1177 = vld [vmem:[%s4 + $0x10] sm:$0xff]
        %v1178 = vld [vmem:[%s4 + $0x18] sm:$0xff]
        %v1179 = vld [vmem:[%s4 + $0x20] sm:$0xff]
        %v1180 = vld [vmem:[%s4 + $0x28] sm:$0xff]
        %v1181 = vld [vmem:[%s4 + $0x30] sm:$0xff]
        %v1182 = vld [vmem:[%s4 + $0x38] sm:$0xff]
        %v1183 = vld [vmem:[%s4 + $0x40] sm:$0xff]
        %v1184 = vld [vmem:[%s4 + $0x48] sm:$0xff]
        %v1185 = vld [vmem:[%s4 + $0x50] sm:$0xff]
        %v1186 = vld [vmem:[%s4 + $0x58] sm:$0xff]
        %v1187 = vld [vmem:[%s4 + $0x60] sm:$0xff]
        %v1188 = vld [vmem:[%s4 + $0x68] sm:$0xff]
        %v1189 = vld [vmem:[%s4 + $0x70] sm:$0xff]
        %v1190 = vld [vmem:[%s4 + $0x78] sm:$0xff]
        %v1191 = vld [vmem:[%s4 + $0x80] sm:$0xff]
        %v1192 = vld [vmem:[%s4 + $0x88] sm:$0xff]
        %v1193 = vld [vmem:[%s4 + $0x90] sm:$0xff]
        %v1194 = vld [vmem:[%s4 + $0x98] sm:$0xff]
        %v1195 = vld [vmem:[%s4 + $0xa0] sm:$0xff]
        %v1196 = vld [vmem:[%s4 + $0xa8] sm:$0xff]
        %v1197 = vld [vmem:[%s4 + $0xb0] sm:$0xff]
        %v1198 = vld [vmem:[%s4 + $0xb8] sm:$0xff]
        %v1199 = vld [vmem:[%s4 + $0xc0] sm:$0xff]
        %v1200 = vld [vmem:[%s4 + $0xc8] sm:$0xff]
        %v1201 = vld [vmem:[%s4 + $0xd0] sm:$0xff]
        %v1202 = vld [vmem:[%s4 + $0xd8] sm:$0xff]
        %v1203 = vld [vmem:[%s4 + $0xe0] sm:$0xff]
        %v1204 = vld [vmem:[%s4 + $0xe8] sm:$0xff]
        %v1205 = vld [vmem:[%s4 + $0xf0] sm:$0xff]
        %v1206 = vld [vmem:[%s4 + $0xf8] sm:$0xff]
        %1208 = vset.pattern.permute.xlu0 0
        %1209 = vperm.xlu0 %1208, %v1175
        %v1210 = vpop.permute.xlu0 %1209
        %1213 = vset.pattern.permute.xlu0 0
        %1214 = vperm.xlu0 %1213, %v1176
        %v1215 = vpop.permute.xlu0 %1214
        %1218 = vset.pattern.permute.xlu0 0
        %1219 = vperm.xlu0 %1218, %v1177
        %v1220 = vpop.permute.xlu0 %1219
        %1223 = vset.pattern.permute.xlu0 0
        %1224 = vperm.xlu0 %1223, %v1178
        %v1225 = vpop.permute.xlu0 %1224
        %1228 = vset.pattern.permute.xlu0 0
        %1229 = vperm.xlu0 %1228, %v1179
        %v1230 = vpop.permute.xlu0 %1229
        %1233 = vset.pattern.permute.xlu0 0
        %1234 = vperm.xlu0 %1233, %v1180
        %v1235 = vpop.permute.xlu0 %1234
        %1238 = vset.pattern.permute.xlu0 0
        %1239 = vperm.xlu0 %1238, %v1181
        %v1240 = vpop.permute.xlu0 %1239
        %1243 = vset.pattern.permute.xlu0 0
        %1244 = vperm.xlu0 %1243, %v1182
        %v1245 = vpop.permute.xlu0 %1244
        %1248 = vset.pattern.permute.xlu0 0
        %1249 = vperm.xlu0 %1248, %v1183
        %v1250 = vpop.permute.xlu0 %1249
        %1253 = vset.pattern.permute.xlu0 0
        %1254 = vperm.xlu0 %1253, %v1184
        %v1255 = vpop.permute.xlu0 %1254
        %1258 = vset.pattern.permute.xlu0 0
        %1259 = vperm.xlu0 %1258, %v1185
        %v1260 = vpop.permute.xlu0 %1259
        %1263 = vset.pattern.permute.xlu0 0
        %1264 = vperm.xlu0 %1263, %v1186
        %v1265 = vpop.permute.xlu0 %1264
        %1268 = vset.pattern.permute.xlu0 0
        %1269 = vperm.xlu0 %1268, %v1187
        %v1270 = vpop.permute.xlu0 %1269
        %1273 = vset.pattern.permute.xlu0 0
        %1274 = vperm.xlu0 %1273, %v1188
        %v1275 = vpop.permute.xlu0 %1274
        %1278 = vset.pattern.permute.xlu0 0
        %1279 = vperm.xlu0 %1278, %v1189
        %v1280 = vpop.permute.xlu0 %1279
        %1283 = vset.pattern.permute.xlu0 0
        %1284 = vperm.xlu0 %1283, %v1190
        %v1285 = vpop.permute.xlu0 %1284
        %1288 = vset.pattern.permute.xlu0 0
        %1289 = vperm.xlu0 %1288, %v1191
        %v1290 = vpop.permute.xlu0 %1289
        %1293 = vset.pattern.permute.xlu0 0
        %1294 = vperm.xlu0 %1293, %v1192
        %v1295 = vpop.permute.xlu0 %1294
        %1298 = vset.pattern.permute.xlu0 0
        %1299 = vperm.xlu0 %1298, %v1193
        %v1300 = vpop.permute.xlu0 %1299
        %1303 = vset.pattern.permute.xlu0 0
        %1304 = vperm.xlu0 %1303, %v1194
        %v1305 = vpop.permute.xlu0 %1304
        %1308 = vset.pattern.permute.xlu0 0
        %1309 = vperm.xlu0 %1308, %v1195
        %v1310 = vpop.permute.xlu0 %1309
        %1313 = vset.pattern.permute.xlu0 0
        %1314 = vperm.xlu0 %1313, %v1196
        %v1315 = vpop.permute.xlu0 %1314
        %1318 = vset.pattern.permute.xlu0 0
        %1319 = vperm.xlu0 %1318, %v1197
        %v1320 = vpop.permute.xlu0 %1319
        %1323 = vset.pattern.permute.xlu0 0
        %1324 = vperm.xlu0 %1323, %v1198
        %v1325 = vpop.permute.xlu0 %1324
        %1328 = vset.pattern.permute.xlu0 0
        %1329 = vperm.xlu0 %1328, %v1199
        %v1330 = vpop.permute.xlu0 %1329
        %1333 = vset.pattern.permute.xlu0 0
        %1334 = vperm.xlu0 %1333, %v1200
        %v1335 = vpop.permute.xlu0 %1334
        %1338 = vset.pattern.permute.xlu0 0
        %1339 = vperm.xlu0 %1338, %v1201
        %v1340 = vpop.permute.xlu0 %1339
        %1343 = vset.pattern.permute.xlu0 0
        %1344 = vperm.xlu0 %1343, %v1202
        %v1345 = vpop.permute.xlu0 %1344
        %1348 = vset.pattern.permute.xlu0 0
        %1349 = vperm.xlu0 %1348, %v1203
        %v1350 = vpop.permute.xlu0 %1349
        %1353 = vset.pattern.permute.xlu0 0
        %1354 = vperm.xlu0 %1353, %v1204
        %v1355 = vpop.permute.xlu0 %1354
        %1358 = vset.pattern.permute.xlu0 0
        %1359 = vperm.xlu0 %1358, %v1205
        %v1360 = vpop.permute.xlu0 %1359
        %1363 = vset.pattern.permute.xlu0 0
        %1364 = vperm.xlu0 %1363, %v1206
        %v1365 = vpop.permute.xlu0 %1364
        %v1399 = vunpack.c.l.b16 %v1127
        %v1400 = vunpack.c.h.b16 %v1127
        %v1401 = vunpack.c.l.b16 %v1128
        %v1402 = vunpack.c.h.b16 %v1128
        %v1403 = vunpack.c.l.b16 %v1129
        %v1404 = vunpack.c.h.b16 %v1129
        %v1405 = vunpack.c.l.b16 %v1130
        %v1406 = vunpack.c.h.b16 %v1130
        %v1407 = vunpack.c.l.b16 %v1131
        %v1408 = vunpack.c.h.b16 %v1131
        %v1409 = vunpack.c.l.b16 %v1132
        %v1410 = vunpack.c.h.b16 %v1132
        %v1411 = vunpack.c.l.b16 %v1133
        %v1412 = vunpack.c.h.b16 %v1133
        %v1413 = vunpack.c.l.b16 %v1134
        %v1414 = vunpack.c.h.b16 %v1134
        %v1415 = vunpack.c.l.b16 %v1135
        %v1416 = vunpack.c.h.b16 %v1135
        %v1417 = vunpack.c.l.b16 %v1136
        %v1418 = vunpack.c.h.b16 %v1136
        %v1419 = vunpack.c.l.b16 %v1137
        %v1420 = vunpack.c.h.b16 %v1137
        %v1421 = vunpack.c.l.b16 %v1138
        %v1422 = vunpack.c.h.b16 %v1138
        %v1423 = vunpack.c.l.b16 %v1139
        %v1424 = vunpack.c.h.b16 %v1139
        %v1425 = vunpack.c.l.b16 %v1140
        %v1426 = vunpack.c.h.b16 %v1140
        %v1427 = vunpack.c.l.b16 %v1141
        %v1428 = vunpack.c.h.b16 %v1141
        %v1429 = vunpack.c.l.b16 %v1142
        %v1430 = vunpack.c.h.b16 %v1142
        %v1431 = vunpack.c.l.b16 %v1143
        %v1432 = vunpack.c.h.b16 %v1143
        %v1433 = vunpack.c.l.b16 %v1144
        %v1434 = vunpack.c.h.b16 %v1144
        %v1435 = vunpack.c.l.b16 %v1145
        %v1436 = vunpack.c.h.b16 %v1145
        %v1437 = vunpack.c.l.b16 %v1146
        %v1438 = vunpack.c.h.b16 %v1146
        %v1439 = vunpack.c.l.b16 %v1147
        %v1440 = vunpack.c.h.b16 %v1147
        %v1441 = vunpack.c.l.b16 %v1148
        %v1442 = vunpack.c.h.b16 %v1148
        %v1443 = vunpack.c.l.b16 %v1149
        %v1444 = vunpack.c.h.b16 %v1149
        %v1445 = vunpack.c.l.b16 %v1150
        %v1446 = vunpack.c.h.b16 %v1150
        %v1447 = vunpack.c.l.b16 %v1151
        %v1448 = vunpack.c.h.b16 %v1151
        %v1449 = vunpack.c.l.b16 %v1152
        %v1450 = vunpack.c.h.b16 %v1152
        %v1451 = vunpack.c.l.b16 %v1153
        %v1452 = vunpack.c.h.b16 %v1153
        %v1453 = vunpack.c.l.b16 %v1154
        %v1454 = vunpack.c.h.b16 %v1154
        %v1455 = vunpack.c.l.b16 %v1155
        %v1456 = vunpack.c.h.b16 %v1155
        %v1457 = vunpack.c.l.b16 %v1156
        %v1458 = vunpack.c.h.b16 %v1156
        %v1459 = vunpack.c.l.b16 %v1157
        %v1460 = vunpack.c.h.b16 %v1157
        %v1461 = vunpack.c.l.b16 %v1158
        %v1462 = vunpack.c.h.b16 %v1158
        %v1463 = vpack.c.b16 %v1401, %v1399
        %v1464 = vpack.c.b16 %v1402, %v1400
        %v1465 = vpack.c.b16 %v1405, %v1403
        %v1466 = vpack.c.b16 %v1406, %v1404
        %v1467 = vpack.c.b16 %v1409, %v1407
        %v1468 = vpack.c.b16 %v1410, %v1408
        %v1469 = vpack.c.b16 %v1413, %v1411
        %v1470 = vpack.c.b16 %v1414, %v1412
        %v1471 = vpack.c.b16 %v1417, %v1415
        %v1472 = vpack.c.b16 %v1418, %v1416
        %v1473 = vpack.c.b16 %v1421, %v1419
        %v1474 = vpack.c.b16 %v1422, %v1420
        %v1475 = vpack.c.b16 %v1425, %v1423
        %v1476 = vpack.c.b16 %v1426, %v1424
        %v1477 = vpack.c.b16 %v1429, %v1427
        %v1478 = vpack.c.b16 %v1430, %v1428
        %v1479 = vpack.c.b16 %v1433, %v1431
        %v1480 = vpack.c.b16 %v1434, %v1432
        %v1481 = vpack.c.b16 %v1437, %v1435
        %v1482 = vpack.c.b16 %v1438, %v1436
        %v1483 = vpack.c.b16 %v1441, %v1439
        %v1484 = vpack.c.b16 %v1442, %v1440
        %v1485 = vpack.c.b16 %v1445, %v1443
        %v1486 = vpack.c.b16 %v1446, %v1444
        %v1487 = vpack.c.b16 %v1449, %v1447
        %v1488 = vpack.c.b16 %v1450, %v1448
        %v1489 = vpack.c.b16 %v1453, %v1451
        %v1490 = vpack.c.b16 %v1454, %v1452
        %v1491 = vpack.c.b16 %v1457, %v1455
        %v1492 = vpack.c.b16 %v1458, %v1456
        %v1493 = vpack.c.b16 %v1461, %v1459
        %v1494 = vpack.c.b16 %v1462, %v1460
        %1527 = vmatprep.subr.bf16.mxu0 0
        %1528 = vmatpush1.bf16.msra.mxu0 %v1159
        %1529 = vmatprep.subr.bf16.mxu0 0
        %1530 = vmatpush1.bf16.msra.mxu0 %v1160
        %1531 = vmatprep.subr.bf16.mxu0 0
        %1532 = vmatpush1.bf16.msra.mxu0 %v1161
        %1533 = vmatprep.subr.bf16.mxu0 0
        %1534 = vmatpush1.bf16.msra.mxu0 %v1162
        %1535 = vmatprep.subr.bf16.mxu0 0
        %1536 = vmatpush1.bf16.msra.mxu0 %v1163
        %1537 = vmatprep.subr.bf16.mxu0 0
        %1538 = vmatpush1.bf16.msra.mxu0 %v1164
        %1539 = vmatprep.subr.bf16.mxu0 0
        %1540 = vmatpush1.bf16.msra.mxu0 %v1165
        %1541 = vmatprep.subr.bf16.mxu0 0
        %1542 = vmatpush1.bf16.msra.mxu0 %v1166
        %1543 = vmatprep.subr.bf16.mxu0 0
        %1544 = vmatpush1.bf16.msra.mxu0 %v1167
        %1545 = vmatprep.subr.bf16.mxu0 0
        %1546 = vmatpush1.bf16.msra.mxu0 %v1168
        %1547 = vmatprep.subr.bf16.mxu0 0
        %1548 = vmatpush1.bf16.msra.mxu0 %v1169
        %1549 = vmatprep.subr.bf16.mxu0 0
        %1550 = vmatpush1.bf16.msra.mxu0 %v1170
        %1551 = vmatprep.subr.bf16.mxu0 0
        %1552 = vmatpush1.bf16.msra.mxu0 %v1171
        %1553 = vmatprep.subr.bf16.mxu0 0
        %1554 = vmatpush1.bf16.msra.mxu0 %v1172
        %1555 = vmatprep.subr.bf16.mxu0 0
        %1556 = vmatpush1.bf16.msra.mxu0 %v1173
        %1557 = vmatprep.subr.bf16.mxu0 0
        %1558 = vmatpush1.bf16.msra.mxu0 %v1174
        %1559 = vmatprep.mubr.bf16.mxu0 %v1464
        %1560 = vmatmul.mubr.bf16.gmra.mrb[0].mxu0 %v1463
        %v1561 = vpop.f32.mrb[0].mxu0
        %v1562 = vadd.f32 %v1210, %v1561
        %v1563 = vpop.f32.mrb[0].mxu0
        %v1564 = vpop.f32.mrb[0].mxu0
        %v1565 = vadd.f32 %v1215, %v1564
        %v1566 = vpop.f32.mrb[0].mxu0
        %1567 = vmatprep.mubr.bf16.mxu0 %v1466
        %1568 = vmatmul.mubr.bf16.gmra.mrb[0].mxu0 %v1465
        %v1569 = vpop.f32.mrb[0].mxu0
        %v1570 = vadd.f32 %v1220, %v1569
        %v1571 = vpop.f32.mrb[0].mxu0
        %v1572 = vpop.f32.mrb[0].mxu0
        %v1573 = vadd.f32 %v1225, %v1572
        %v1574 = vpop.f32.mrb[0].mxu0
        %1575 = vmatprep.mubr.bf16.mxu0 %v1468
        %1576 = vmatmul.mubr.bf16.gmra.mrb[0].mxu0 %v1467
        %v1577 = vpop.f32.mrb[0].mxu0
        %v1578 = vadd.f32 %v1230, %v1577
        %v1579 = vpop.f32.mrb[0].mxu0
        %v1580 = vpop.f32.mrb[0].mxu0
        %v1581 = vadd.f32 %v1235, %v1580
        %v1582 = vpop.f32.mrb[0].mxu0
        %1583 = vmatprep.mubr.bf16.mxu0 %v1470
        %1584 = vmatmul.mubr.bf16.gmra.mrb[0].mxu0 %v1469
        %v1585 = vpop.f32.mrb[0].mxu0
        %v1586 = vadd.f32 %v1240, %v1585
        %v1587 = vpop.f32.mrb[0].mxu0
        %v1588 = vpop.f32.mrb[0].mxu0
        %v1589 = vadd.f32 %v1245, %v1588
        %v1590 = vpop.f32.mrb[0].mxu0
        %1591 = vmatprep.mubr.bf16.mxu0 %v1472
        %1592 = vmatmul.mubr.bf16.gmra.mrb[0].mxu0 %v1471
        %v1593 = vpop.f32.mrb[0].mxu0
        %v1594 = vadd.f32 %v1250, %v1593
        %v1595 = vpop.f32.mrb[0].mxu0
        %v1596 = vpop.f32.mrb[0].mxu0
        %v1597 = vadd.f32 %v1255, %v1596
        %v1598 = vpop.f32.mrb[0].mxu0
        %1599 = vmatprep.mubr.bf16.mxu0 %v1474
        %1600 = vmatmul.mubr.bf16.gmra.mrb[0].mxu0 %v1473
        %v1601 = vpop.f32.mrb[0].mxu0
        %v1602 = vadd.f32 %v1260, %v1601
        %v1603 = vpop.f32.mrb[0].mxu0
        %v1604 = vpop.f32.mrb[0].mxu0
        %v1605 = vadd.f32 %v1265, %v1604
        %v1606 = vpop.f32.mrb[0].mxu0
        %1607 = vmatprep.mubr.bf16.mxu0 %v1476
        %1608 = vmatmul.mubr.bf16.gmra.mrb[0].mxu0 %v1475
        %v1609 = vpop.f32.mrb[0].mxu0
        %v1610 = vadd.f32 %v1270, %v1609
        %v1611 = vpop.f32.mrb[0].mxu0
        %v1612 = vpop.f32.mrb[0].mxu0
        %v1613 = vadd.f32 %v1275, %v1612
        %v1614 = vpop.f32.mrb[0].mxu0
        %1615 = vmatprep.mubr.bf16.mxu0 %v1478
        %1616 = vmatmul.mubr.bf16.gmra.mrb[0].mxu0 %v1477
        %v1617 = vpop.f32.mrb[0].mxu0
        %v1618 = vadd.f32 %v1280, %v1617
        %v1619 = vpop.f32.mrb[0].mxu0
        %v1620 = vpop.f32.mrb[0].mxu0
        %v1621 = vadd.f32 %v1285, %v1620
        %v1622 = vpop.f32.mrb[0].mxu0
        %1623 = vmatprep.mubr.bf16.mxu0 %v1480
        %1624 = vmatmul.mubr.bf16.gmra.mrb[0].mxu0 %v1479
        %v1625 = vpop.f32.mrb[0].mxu0
        %v1626 = vadd.f32 %v1290, %v1625
        %v1627 = vpop.f32.mrb[0].mxu0
        %v1628 = vpop.f32.mrb[0].mxu0
        %v1629 = vadd.f32 %v1295, %v1628
        %v1630 = vpop.f32.mrb[0].mxu0
        %1631 = vmatprep.mubr.bf16.mxu0 %v1482
        %1632 = vmatmul.mubr.bf16.gmra.mrb[0].mxu0 %v1481
        %v1633 = vpop.f32.mrb[0].mxu0
        %v1634 = vadd.f32 %v1300, %v1633
        %v1635 = vpop.f32.mrb[0].mxu0
        %v1636 = vpop.f32.mrb[0].mxu0
        %v1637 = vadd.f32 %v1305, %v1636
        %v1638 = vpop.f32.mrb[0].mxu0
        %1639 = vmatprep.mubr.bf16.mxu0 %v1484
        %1640 = vmatmul.mubr.bf16.gmra.mrb[0].mxu0 %v1483
        %v1641 = vpop.f32.mrb[0].mxu0
        %v1642 = vadd.f32 %v1310, %v1641
        %v1643 = vpop.f32.mrb[0].mxu0
        %v1644 = vpop.f32.mrb[0].mxu0
        %v1645 = vadd.f32 %v1315, %v1644
        %v1646 = vpop.f32.mrb[0].mxu0
        %1647 = vmatprep.mubr.bf16.mxu0 %v1486
        %1648 = vmatmul.mubr.bf16.gmra.mrb[0].mxu0 %v1485
        %v1649 = vpop.f32.mrb[0].mxu0
        %v1650 = vadd.f32 %v1320, %v1649
        %v1651 = vpop.f32.mrb[0].mxu0
        %v1652 = vpop.f32.mrb[0].mxu0
        %v1653 = vadd.f32 %v1325, %v1652
        %v1654 = vpop.f32.mrb[0].mxu0
        %1655 = vmatprep.mubr.bf16.mxu0 %v1488
        %1656 = vmatmul.mubr.bf16.gmra.mrb[0].mxu0 %v1487
        %v1657 = vpop.f32.mrb[0].mxu0
        %v1658 = vadd.f32 %v1330, %v1657
        %v1659 = vpop.f32.mrb[0].mxu0
        %v1660 = vpop.f32.mrb[0].mxu0
        %v1661 = vadd.f32 %v1335, %v1660
        %v1662 = vpop.f32.mrb[0].mxu0
        %1663 = vmatprep.mubr.bf16.mxu0 %v1490
        %1664 = vmatmul.mubr.bf16.gmra.mrb[0].mxu0 %v1489
        %v1665 = vpop.f32.mrb[0].mxu0
        %v1666 = vadd.f32 %v1340, %v1665
        %v1667 = vpop.f32.mrb[0].mxu0
        %v1668 = vpop.f32.mrb[0].mxu0
        %v1669 = vadd.f32 %v1345, %v1668
        %v1670 = vpop.f32.mrb[0].mxu0
        %1671 = vmatprep.mubr.bf16.mxu0 %v1492
        %1672 = vmatmul.mubr.bf16.gmra.mrb[0].mxu0 %v1491
        %v1673 = vpop.f32.mrb[0].mxu0
        %v1674 = vadd.f32 %v1350, %v1673
        %v1675 = vpop.f32.mrb[0].mxu0
        %v1676 = vpop.f32.mrb[0].mxu0
        %v1677 = vadd.f32 %v1355, %v1676
        %v1678 = vpop.f32.mrb[0].mxu0
        %1679 = vmatprep.mubr.bf16.mxu0 %v1494
        %1680 = vmatmul.mubr.bf16.gmra.mrb[0].mxu0 %v1493
        %v1681 = vpop.f32.mrb[0].mxu0
        %v1682 = vadd.f32 %v1360, %v1681
        %v1683 = vpop.f32.mrb[0].mxu0
        %v1684 = vpop.f32.mrb[0].mxu0
        %v1685 = vadd.f32 %v1365, %v1684
        %v1686 = vpop.f32.mrb[0].mxu0
        %1687 = vdwg.mxu0
        %vm1688 = vcmp.ge.f32.partialorder %v1562, 0.0
        %vm1689 = vcmp.ge.f32.partialorder %v1565, 0.0
        %vm1690 = vcmp.ge.f32.partialorder %v1570, 0.0
        %vm1691 = vcmp.ge.f32.partialorder %v1573, 0.0
        %vm1692 = vcmp.ge.f32.partialorder %v1578, 0.0
        %vm1693 = vcmp.ge.f32.partialorder %v1581, 0.0
        %vm1694 = vcmp.ge.f32.partialorder %v1586, 0.0
        %vm1695 = vcmp.ge.f32.partialorder %v1589, 0.0
        %vm1696 = vcmp.ge.f32.partialorder %v1594, 0.0
        %vm1697 = vcmp.ge.f32.partialorder %v1597, 0.0
        %vm1698 = vcmp.ge.f32.partialorder %v1602, 0.0
        %vm1699 = vcmp.ge.f32.partialorder %v1605, 0.0
        %vm1700 = vcmp.ge.f32.partialorder %v1610, 0.0
        %vm1701 = vcmp.ge.f32.partialorder %v1613, 0.0
        %vm1702 = vcmp.ge.f32.partialorder %v1618, 0.0
        %vm1703 = vcmp.ge.f32.partialorder %v1621, 0.0
        %vm1704 = vcmp.ge.f32.partialorder %v1626, 0.0
        %vm1705 = vcmp.ge.f32.partialorder %v1629, 0.0
        %vm1706 = vcmp.ge.f32.partialorder %v1634, 0.0
        %vm1707 = vcmp.ge.f32.partialorder %v1637, 0.0
        %vm1708 = vcmp.ge.f32.partialorder %v1642, 0.0
        %vm1709 = vcmp.ge.f32.partialorder %v1645, 0.0
        %vm1710 = vcmp.ge.f32.partialorder %v1650, 0.0
        %vm1711 = vcmp.ge.f32.partialorder %v1653, 0.0
        %vm1712 = vcmp.ge.f32.partialorder %v1658, 0.0
        %vm1713 = vcmp.ge.f32.partialorder %v1661, 0.0
        %vm1714 = vcmp.ge.f32.partialorder %v1666, 0.0
        %vm1715 = vcmp.ge.f32.partialorder %v1669, 0.0
        %vm1716 = vcmp.ge.f32.partialorder %v1674, 0.0
        %vm1717 = vcmp.ge.f32.partialorder %v1677, 0.0
        %vm1718 = vcmp.ge.f32.partialorder %v1682, 0.0
        %vm1719 = vcmp.ge.f32.partialorder %v1685, 0.0
        %v1720 = vmul.f32 %v1562, 0.2
        %v1721 = vmul.f32 %v1565, 0.2
        %v1722 = vmul.f32 %v1570, 0.2
        %v1723 = vmul.f32 %v1573, 0.2
        %v1724 = vmul.f32 %v1578, 0.2
        %v1725 = vmul.f32 %v1581, 0.2
        %v1726 = vmul.f32 %v1586, 0.2
        %v1727 = vmul.f32 %v1589, 0.2
        %v1728 = vmul.f32 %v1594, 0.2
        %v1729 = vmul.f32 %v1597, 0.2
        %v1730 = vmul.f32 %v1602, 0.2
        %v1731 = vmul.f32 %v1605, 0.2
        %v1732 = vmul.f32 %v1610, 0.2
        %v1733 = vmul.f32 %v1613, 0.2
        %v1734 = vmul.f32 %v1618, 0.2
        %v1735 = vmul.f32 %v1621, 0.2
        %v1736 = vmul.f32 %v1626, 0.2
        %v1737 = vmul.f32 %v1629, 0.2
        %v1738 = vmul.f32 %v1634, 0.2
        %v1739 = vmul.f32 %v1637, 0.2
        %v1740 = vmul.f32 %v1642, 0.2
        %v1741 = vmul.f32 %v1645, 0.2
        %v1742 = vmul.f32 %v1650, 0.2
        %v1743 = vmul.f32 %v1653, 0.2
        %v1744 = vmul.f32 %v1658, 0.2
        %v1745 = vmul.f32 %v1661, 0.2
        %v1746 = vmul.f32 %v1666, 0.2
        %v1747 = vmul.f32 %v1669, 0.2
        %v1748 = vmul.f32 %v1674, 0.2
        %v1749 = vmul.f32 %v1677, 0.2
        %v1750 = vmul.f32 %v1682, 0.2
        %v1751 = vmul.f32 %v1685, 0.2
        %v1752 = vsel %vm1688, %v1562, %v1720
        %v1753 = vsel %vm1689, %v1565, %v1721
        %v1754 = vsel %vm1690, %v1570, %v1722
        %v1755 = vsel %vm1691, %v1573, %v1723
        %v1756 = vsel %vm1692, %v1578, %v1724
        %v1757 = vsel %vm1693, %v1581, %v1725
        %v1758 = vsel %vm1694, %v1586, %v1726
        %v1759 = vsel %vm1695, %v1589, %v1727
        %v1760 = vsel %vm1696, %v1594, %v1728
        %v1761 = vsel %vm1697, %v1597, %v1729
        %v1762 = vsel %vm1698, %v1602, %v1730
        %v1763 = vsel %vm1699, %v1605, %v1731
        %v1764 = vsel %vm1700, %v1610, %v1732
        %v1765 = vsel %vm1701, %v1613, %v1733
        %v1766 = vsel %vm1702, %v1618, %v1734
        %v1767 = vsel %vm1703, %v1621, %v1735
        %v1768 = vsel %vm1704, %v1626, %v1736
        %v1769 = vsel %vm1705, %v1629, %v1737
        %v1770 = vsel %vm1706, %v1634, %v1738
        %v1771 = vsel %vm1707, %v1637, %v1739
        %v1772 = vsel %vm1708, %v1642, %v1740
        %v1773 = vsel %vm1709, %v1645, %v1741
        %v1774 = vsel %vm1710, %v1650, %v1742
        %v1775 = vsel %vm1711, %v1653, %v1743
        %v1776 = vsel %vm1712, %v1658, %v1744
        %v1777 = vsel %vm1713, %v1661, %v1745
        %v1778 = vsel %vm1714, %v1666, %v1746
        %v1779 = vsel %vm1715, %v1669, %v1747
        %v1780 = vsel %vm1716, %v1674, %v1748
        %v1781 = vsel %vm1717, %v1677, %v1749
        %v1782 = vsel %vm1718, %v1682, %v1750
        %v1783 = vsel %vm1719, %v1685, %v1751
        %v1784 = vld [vmem:[%s5] sm:$0xff]
        %v1785 = vld [vmem:[%s5 + $0x8] sm:$0xff]
        %v1786 = vld [vmem:[%s5 + $0x10] sm:$0xff]
        %v1787 = vld [vmem:[%s5 + $0x18] sm:$0xff]
        %v1788 = vld [vmem:[%s5 + $0x20] sm:$0xff]
        %v1789 = vld [vmem:[%s5 + $0x28] sm:$0xff]
        %v1790 = vld [vmem:[%s5 + $0x30] sm:$0xff]
        %v1791 = vld [vmem:[%s5 + $0x38] sm:$0xff]
        %v1792 = vld [vmem:[%s5 + $0x40] sm:$0xff]
        %v1793 = vld [vmem:[%s5 + $0x48] sm:$0xff]
        %v1794 = vld [vmem:[%s5 + $0x50] sm:$0xff]
        %v1795 = vld [vmem:[%s5 + $0x58] sm:$0xff]
        %v1796 = vld [vmem:[%s5 + $0x60] sm:$0xff]
        %v1797 = vld [vmem:[%s5 + $0x68] sm:$0xff]
        %v1798 = vld [vmem:[%s5 + $0x70] sm:$0xff]
        %v1799 = vld [vmem:[%s5 + $0x78] sm:$0xff]
        %v1800 = vld [vmem:[%s5 + $0x80] sm:$0xff]
        %v1801 = vld [vmem:[%s5 + $0x88] sm:$0xff]
        %v1802 = vld [vmem:[%s5 + $0x90] sm:$0xff]
        %v1803 = vld [vmem:[%s5 + $0x98] sm:$0xff]
        %v1804 = vld [vmem:[%s5 + $0xa0] sm:$0xff]
        %v1805 = vld [vmem:[%s5 + $0xa8] sm:$0xff]
        %v1806 = vld [vmem:[%s5 + $0xb0] sm:$0xff]
        %v1807 = vld [vmem:[%s5 + $0xb8] sm:$0xff]
        %v1808 = vld [vmem:[%s5 + $0xc0] sm:$0xff]
        %v1809 = vld [vmem:[%s5 + $0xc8] sm:$0xff]
        %v1810 = vld [vmem:[%s5 + $0xd0] sm:$0xff]
        %v1811 = vld [vmem:[%s5 + $0xd8] sm:$0xff]
        %v1812 = vld [vmem:[%s5 + $0xe0] sm:$0xff]
        %v1813 = vld [vmem:[%s5 + $0xe8] sm:$0xff]
        %v1814 = vld [vmem:[%s5 + $0xf0] sm:$0xff]
        %v1815 = vld [vmem:[%s5 + $0xf8] sm:$0xff]
        %v1816 = vpack.c.bf16 %v1753, %v1752
        %v1817 = vpack.c.bf16 %v1755, %v1754
        %v1818 = vpack.c.bf16 %v1757, %v1756
        %v1819 = vpack.c.bf16 %v1759, %v1758
        %v1820 = vpack.c.bf16 %v1761, %v1760
        %v1821 = vpack.c.bf16 %v1763, %v1762
        %v1822 = vpack.c.bf16 %v1765, %v1764
        %v1823 = vpack.c.bf16 %v1767, %v1766
        %v1824 = vpack.c.bf16 %v1769, %v1768
        %v1825 = vpack.c.bf16 %v1771, %v1770
        %v1826 = vpack.c.bf16 %v1773, %v1772
        %v1827 = vpack.c.bf16 %v1775, %v1774
        %v1828 = vpack.c.bf16 %v1777, %v1776
        %v1829 = vpack.c.bf16 %v1779, %v1778
        %v1830 = vpack.c.bf16 %v1781, %v1780
        %v1831 = vpack.c.bf16 %v1783, %v1782
        %v1832 = vld [vmem:[%s6] sm:$0xff]
        %v1833 = vld [vmem:[%s6 + $0x8] sm:$0xff]
        %v1834 = vld [vmem:[%s6 + $0x10] sm:$0xff]
        %v1835 = vld [vmem:[%s6 + $0x18] sm:$0xff]
        %v1836 = vld [vmem:[%s6 + $0x20] sm:$0xff]
        %v1837 = vld [vmem:[%s6 + $0x28] sm:$0xff]
        %v1838 = vld [vmem:[%s6 + $0x30] sm:$0xff]
        %v1839 = vld [vmem:[%s6 + $0x38] sm:$0xff]
        %v1840 = vld [vmem:[%s6 + $0x40] sm:$0xff]
        %v1841 = vld [vmem:[%s6 + $0x48] sm:$0xff]
        %v1842 = vld [vmem:[%s6 + $0x50] sm:$0xff]
        %v1843 = vld [vmem:[%s6 + $0x58] sm:$0xff]
        %v1844 = vld [vmem:[%s6 + $0x60] sm:$0xff]
        %v1845 = vld [vmem:[%s6 + $0x68] sm:$0xff]
        %v1846 = vld [vmem:[%s6 + $0x70] sm:$0xff]
        %v1847 = vld [vmem:[%s6 + $0x78] sm:$0xff]
        %v1848 = vld [vmem:[%s6 + $0x80] sm:$0xff]
        %v1849 = vld [vmem:[%s6 + $0x88] sm:$0xff]
        %v1850 = vld [vmem:[%s6 + $0x90] sm:$0xff]
        %v1851 = vld [vmem:[%s6 + $0x98] sm:$0xff]
        %v1852 = vld [vmem:[%s6 + $0xa0] sm:$0xff]
        %v1853 = vld [vmem:[%s6 + $0xa8] sm:$0xff]
        %v1854 = vld [vmem:[%s6 + $0xb0] sm:$0xff]
        %v1855 = vld [vmem:[%s6 + $0xb8] sm:$0xff]
        %v1856 = vld [vmem:[%s6 + $0xc0] sm:$0xff]
        %v1857 = vld [vmem:[%s6 + $0xc8] sm:$0xff]
        %v1858 = vld [vmem:[%s6 + $0xd0] sm:$0xff]
        %v1859 = vld [vmem:[%s6 + $0xd8] sm:$0xff]
        %v1860 = vld [vmem:[%s6 + $0xe0] sm:$0xff]
        %v1861 = vld [vmem:[%s6 + $0xe8] sm:$0xff]
        %v1862 = vld [vmem:[%s6 + $0xf0] sm:$0xff]
        %v1863 = vld [vmem:[%s6 + $0xf8] sm:$0xff]
        %1865 = vset.pattern.permute.xlu0 0
        %1866 = vperm.xlu0 %1865, %v1832
        %v1867 = vpop.permute.xlu0 %1866
        %1870 = vset.pattern.permute.xlu0 0
        %1871 = vperm.xlu0 %1870, %v1833
        %v1872 = vpop.permute.xlu0 %1871
        %1875 = vset.pattern.permute.xlu0 0
        %1876 = vperm.xlu0 %1875, %v1834
        %v1877 = vpop.permute.xlu0 %1876
        %1880 = vset.pattern.permute.xlu0 0
        %1881 = vperm.xlu0 %1880, %v1835
        %v1882 = vpop.permute.xlu0 %1881
        %1885 = vset.pattern.permute.xlu0 0
        %1886 = vperm.xlu0 %1885, %v1836
        %v1887 = vpop.permute.xlu0 %1886
        %1890 = vset.pattern.permute.xlu0 0
        %1891 = vperm.xlu0 %1890, %v1837
        %v1892 = vpop.permute.xlu0 %1891
        %1895 = vset.pattern.permute.xlu0 0
        %1896 = vperm.xlu0 %1895, %v1838
        %v1897 = vpop.permute.xlu0 %1896
        %1900 = vset.pattern.permute.xlu0 0
        %1901 = vperm.xlu0 %1900, %v1839
        %v1902 = vpop.permute.xlu0 %1901
        %1905 = vset.pattern.permute.xlu0 0
        %1906 = vperm.xlu0 %1905, %v1840
        %v1907 = vpop.permute.xlu0 %1906
        %1910 = vset.pattern.permute.xlu0 0
        %1911 = vperm.xlu0 %1910, %v1841
        %v1912 = vpop.permute.xlu0 %1911
        %1915 = vset.pattern.permute.xlu0 0
        %1916 = vperm.xlu0 %1915, %v1842
        %v1917 = vpop.permute.xlu0 %1916
        %1920 = vset.pattern.permute.xlu0 0
        %1921 = vperm.xlu0 %1920, %v1843
        %v1922 = vpop.permute.xlu0 %1921
        %1925 = vset.pattern.permute.xlu0 0
        %1926 = vperm.xlu0 %1925, %v1844
        %v1927 = vpop.permute.xlu0 %1926
        %1930 = vset.pattern.permute.xlu0 0
        %1931 = vperm.xlu0 %1930, %v1845
        %v1932 = vpop.permute.xlu0 %1931
        %1935 = vset.pattern.permute.xlu0 0
        %1936 = vperm.xlu0 %1935, %v1846
        %v1937 = vpop.permute.xlu0 %1936
        %1940 = vset.pattern.permute.xlu0 0
        %1941 = vperm.xlu0 %1940, %v1847
        %v1942 = vpop.permute.xlu0 %1941
        %1945 = vset.pattern.permute.xlu0 0
        %1946 = vperm.xlu0 %1945, %v1848
        %v1947 = vpop.permute.xlu0 %1946
        %1950 = vset.pattern.permute.xlu0 0
        %1951 = vperm.xlu0 %1950, %v1849
        %v1952 = vpop.permute.xlu0 %1951
        %1955 = vset.pattern.permute.xlu0 0
        %1956 = vperm.xlu0 %1955, %v1850
        %v1957 = vpop.permute.xlu0 %1956
        %1960 = vset.pattern.permute.xlu0 0
        %1961 = vperm.xlu0 %1960, %v1851
        %v1962 = vpop.permute.xlu0 %1961
        %1965 = vset.pattern.permute.xlu0 0
        %1966 = vperm.xlu0 %1965, %v1852
        %v1967 = vpop.permute.xlu0 %1966
        %1970 = vset.pattern.permute.xlu0 0
        %1971 = vperm.xlu0 %1970, %v1853
        %v1972 = vpop.permute.xlu0 %1971
        %1975 = vset.pattern.permute.xlu0 0
        %1976 = vperm.xlu0 %1975, %v1854
        %v1977 = vpop.permute.xlu0 %1976
        %1980 = vset.pattern.permute.xlu0 0
        %1981 = vperm.xlu0 %1980, %v1855
        %v1982 = vpop.permute.xlu0 %1981
        %1985 = vset.pattern.permute.xlu0 0
        %1986 = vperm.xlu0 %1985, %v1856
        %v1987 = vpop.permute.xlu0 %1986
        %1990 = vset.pattern.permute.xlu0 0
        %1991 = vperm.xlu0 %1990, %v1857
        %v1992 = vpop.permute.xlu0 %1991
        %1995 = vset.pattern.permute.xlu0 0
        %1996 = vperm.xlu0 %1995, %v1858
        %v1997 = vpop.permute.xlu0 %1996
        %2000 = vset.pattern.permute.xlu0 0
        %2001 = vperm.xlu0 %2000, %v1859
        %v2002 = vpop.permute.xlu0 %2001
        %2005 = vset.pattern.permute.xlu0 0
        %2006 = vperm.xlu0 %2005, %v1860
        %v2007 = vpop.permute.xlu0 %2006
        %2010 = vset.pattern.permute.xlu0 0
        %2011 = vperm.xlu0 %2010, %v1861
        %v2012 = vpop.permute.xlu0 %2011
        %2015 = vset.pattern.permute.xlu0 0
        %2016 = vperm.xlu0 %2015, %v1862
        %v2017 = vpop.permute.xlu0 %2016
        %2020 = vset.pattern.permute.xlu0 0
        %2021 = vperm.xlu0 %2020, %v1863
        %v2022 = vpop.permute.xlu0 %2021
        %v2056 = vunpack.c.l.b16 %v1784
        %v2057 = vunpack.c.h.b16 %v1784
        %v2058 = vunpack.c.l.b16 %v1785
        %v2059 = vunpack.c.h.b16 %v1785
        %v2060 = vunpack.c.l.b16 %v1786
        %v2061 = vunpack.c.h.b16 %v1786
        %v2062 = vunpack.c.l.b16 %v1787
        %v2063 = vunpack.c.h.b16 %v1787
        %v2064 = vunpack.c.l.b16 %v1788
        %v2065 = vunpack.c.h.b16 %v1788
        %v2066 = vunpack.c.l.b16 %v1789
        %v2067 = vunpack.c.h.b16 %v1789
        %v2068 = vunpack.c.l.b16 %v1790
        %v2069 = vunpack.c.h.b16 %v1790
        %v2070 = vunpack.c.l.b16 %v1791
        %v2071 = vunpack.c.h.b16 %v1791
        %v2072 = vunpack.c.l.b16 %v1792
        %v2073 = vunpack.c.h.b16 %v1792
        %v2074 = vunpack.c.l.b16 %v1793
        %v2075 = vunpack.c.h.b16 %v1793
        %v2076 = vunpack.c.l.b16 %v1794
        %v2077 = vunpack.c.h.b16 %v1794
        %v2078 = vunpack.c.l.b16 %v1795
        %v2079 = vunpack.c.h.b16 %v1795
        %v2080 = vunpack.c.l.b16 %v1796
        %v2081 = vunpack.c.h.b16 %v1796
        %v2082 = vunpack.c.l.b16 %v1797
        %v2083 = vunpack.c.h.b16 %v1797
        %v2084 = vunpack.c.l.b16 %v1798
        %v2085 = vunpack.c.h.b16 %v1798
        %v2086 = vunpack.c.l.b16 %v1799
        %v2087 = vunpack.c.h.b16 %v1799
        %v2088 = vunpack.c.l.b16 %v1800
        %v2089 = vunpack.c.h.b16 %v1800
        %v2090 = vunpack.c.l.b16 %v1801
        %v2091 = vunpack.c.h.b16 %v1801
        %v2092 = vunpack.c.l.b16 %v1802
        %v2093 = vunpack.c.h.b16 %v1802
        %v2094 = vunpack.c.l.b16 %v1803
        %v2095 = vunpack.c.h.b16 %v1803
        %v2096 = vunpack.c.l.b16 %v1804
        %v2097 = vunpack.c.h.b16 %v1804
        %v2098 = vunpack.c.l.b16 %v1805
        %v2099 = vunpack.c.h.b16 %v1805
        %v2100 = vunpack.c.l.b16 %v1806
        %v2101 = vunpack.c.h.b16 %v1806
        %v2102 = vunpack.c.l.b16 %v1807
        %v2103 = vunpack.c.h.b16 %v1807
        %v2104 = vunpack.c.l.b16 %v1808
        %v2105 = vunpack.c.h.b16 %v1808
        %v2106 = vunpack.c.l.b16 %v1809
        %v2107 = vunpack.c.h.b16 %v1809
        %v2108 = vunpack.c.l.b16 %v1810
        %v2109 = vunpack.c.h.b16 %v1810
        %v2110 = vunpack.c.l.b16 %v1811
        %v2111 = vunpack.c.h.b16 %v1811
        %v2112 = vunpack.c.l.b16 %v1812
        %v2113 = vunpack.c.h.b16 %v1812
        %v2114 = vunpack.c.l.b16 %v1813
        %v2115 = vunpack.c.h.b16 %v1813
        %v2116 = vunpack.c.l.b16 %v1814
        %v2117 = vunpack.c.h.b16 %v1814
        %v2118 = vunpack.c.l.b16 %v1815
        %v2119 = vunpack.c.h.b16 %v1815
        %v2120 = vpack.c.b16 %v2058, %v2056
        %v2121 = vpack.c.b16 %v2059, %v2057
        %v2122 = vpack.c.b16 %v2062, %v2060
        %v2123 = vpack.c.b16 %v2063, %v2061
        %v2124 = vpack.c.b16 %v2066, %v2064
        %v2125 = vpack.c.b16 %v2067, %v2065
        %v2126 = vpack.c.b16 %v2070, %v2068
        %v2127 = vpack.c.b16 %v2071, %v2069
        %v2128 = vpack.c.b16 %v2074, %v2072
        %v2129 = vpack.c.b16 %v2075, %v2073
        %v2130 = vpack.c.b16 %v2078, %v2076
        %v2131 = vpack.c.b16 %v2079, %v2077
        %v2132 = vpack.c.b16 %v2082, %v2080
        %v2133 = vpack.c.b16 %v2083, %v2081
        %v2134 = vpack.c.b16 %v2086, %v2084
        %v2135 = vpack.c.b16 %v2087, %v2085
        %v2136 = vpack.c.b16 %v2090, %v2088
        %v2137 = vpack.c.b16 %v2091, %v2089
        %v2138 = vpack.c.b16 %v2094, %v2092
        %v2139 = vpack.c.b16 %v2095, %v2093
        %v2140 = vpack.c.b16 %v2098, %v2096
        %v2141 = vpack.c.b16 %v2099, %v2097
        %v2142 = vpack.c.b16 %v2102, %v2100
        %v2143 = vpack.c.b16 %v2103, %v2101
        %v2144 = vpack.c.b16 %v2106, %v2104
        %v2145 = vpack.c.b16 %v2107, %v2105
        %v2146 = vpack.c.b16 %v2110, %v2108
        %v2147 = vpack.c.b16 %v2111, %v2109
        %v2148 = vpack.c.b16 %v2114, %v2112
        %v2149 = vpack.c.b16 %v2115, %v2113
        %v2150 = vpack.c.b16 %v2118, %v2116
        %v2151 = vpack.c.b16 %v2119, %v2117
        %2184 = vmatprep.subr.bf16.mxu0 0
        %2185 = vmatpush1.bf16.msra.mxu0 %v1816
        %2186 = vmatprep.subr.bf16.mxu0 0
        %2187 = vmatpush1.bf16.msra.mxu0 %v1817
        %2188 = vmatprep.subr.bf16.mxu0 0
        %2189 = vmatpush1.bf16.msra.mxu0 %v1818
        %2190 = vmatprep.subr.bf16.mxu0 0
        %2191 = vmatpush1.bf16.msra.mxu0 %v1819
        %2192 = vmatprep.subr.bf16.mxu0 0
        %2193 = vmatpush1.bf16.msra.mxu0 %v1820
        %2194 = vmatprep.subr.bf16.mxu0 0
        %2195 = vmatpush1.bf16.msra.mxu0 %v1821
        %2196 = vmatprep.subr.bf16.mxu0 0
        %2197 = vmatpush1.bf16.msra.mxu0 %v1822
        %2198 = vmatprep.subr.bf16.mxu0 0
        %2199 = vmatpush1.bf16.msra.mxu0 %v1823
        %2200 = vmatprep.subr.bf16.mxu0 0
        %2201 = vmatpush1.bf16.msra.mxu0 %v1824
        %2202 = vmatprep.subr.bf16.mxu0 0
        %2203 = vmatpush1.bf16.msra.mxu0 %v1825
        %2204 = vmatprep.subr.bf16.mxu0 0
        %2205 = vmatpush1.bf16.msra.mxu0 %v1826
        %2206 = vmatprep.subr.bf16.mxu0 0
        %2207 = vmatpush1.bf16.msra.mxu0 %v1827
        %2208 = vmatprep.subr.bf16.mxu0 0
        %2209 = vmatpush1.bf16.msra.mxu0 %v1828
        %2210 = vmatprep.subr.bf16.mxu0 0
        %2211 = vmatpush1.bf16.msra.mxu0 %v1829
        %2212 = vmatprep.subr.bf16.mxu0 0
        %2213 = vmatpush1.bf16.msra.mxu0 %v1830
        %2214 = vmatprep.subr.bf16.mxu0 0
        %2215 = vmatpush1.bf16.msra.mxu0 %v1831
        %2216 = vmatprep.mubr.bf16.mxu0 %v2121
        %2217 = vmatmul.mubr.bf16.gmra.mrb[0].mxu0 %v2120
        %v2218 = vpop.f32.mrb[0].mxu0
        %v2219 = vadd.f32 %v1867, %v2218
        %v2220 = vpop.f32.mrb[0].mxu0
        %v2221 = vpop.f32.mrb[0].mxu0
        %v2222 = vadd.f32 %v1872, %v2221
        %v2223 = vpop.f32.mrb[0].mxu0
        %2224 = vmatprep.mubr.bf16.mxu0 %v2123
        %2225 = vmatmul.mubr.bf16.gmra.mrb[0].mxu0 %v2122
        %v2226 = vpop.f32.mrb[0].mxu0
        %v2227 = vadd.f32 %v1877, %v2226
        %v2228 = vpop.f32.mrb[0].mxu0
        %v2229 = vpop.f32.mrb[0].mxu0
        %v2230 = vadd.f32 %v1882, %v2229
        %v2231 = vpop.f32.mrb[0].mxu0
        %2232 = vmatprep.mubr.bf16.mxu0 %v2125
        %2233 = vmatmul.mubr.bf16.gmra.mrb[0].mxu0 %v2124
        %v2234 = vpop.f32.mrb[0].mxu0
        %v2235 = vadd.f32 %v1887, %v2234
        %v2236 = vpop.f32.mrb[0].mxu0
        %v2237 = vpop.f32.mrb[0].mxu0
        %v2238 = vadd.f32 %v1892, %v2237
        %v2239 = vpop.f32.mrb[0].mxu0
        %2240 = vmatprep.mubr.bf16.mxu0 %v2127
        %2241 = vmatmul.mubr.bf16.gmra.mrb[0].mxu0 %v2126
        %v2242 = vpop.f32.mrb[0].mxu0
        %v2243 = vadd.f32 %v1897, %v2242
        %v2244 = vpop.f32.mrb[0].mxu0
        %v2245 = vpop.f32.mrb[0].mxu0
        %v2246 = vadd.f32 %v1902, %v2245
        %v2247 = vpop.f32.mrb[0].mxu0
        %2248 = vmatprep.mubr.bf16.mxu0 %v2129
        %2249 = vmatmul.mubr.bf16.gmra.mrb[0].mxu0 %v2128
        %v2250 = vpop.f32.mrb[0].mxu0
        %v2251 = vadd.f32 %v1907, %v2250
        %v2252 = vpop.f32.mrb[0].mxu0
        %v2253 = vpop.f32.mrb[0].mxu0
        %v2254 = vadd.f32 %v1912, %v2253
        %v2255 = vpop.f32.mrb[0].mxu0
        %2256 = vmatprep.mubr.bf16.mxu0 %v2131
        %2257 = vmatmul.mubr.bf16.gmra.mrb[0].mxu0 %v2130
        %v2258 = vpop.f32.mrb[0].mxu0
        %v2259 = vadd.f32 %v1917, %v2258
        %v2260 = vpop.f32.mrb[0].mxu0
        %v2261 = vpop.f32.mrb[0].mxu0
        %v2262 = vadd.f32 %v1922, %v2261
        %v2263 = vpop.f32.mrb[0].mxu0
        %2264 = vmatprep.mubr.bf16.mxu0 %v2133
        %2265 = vmatmul.mubr.bf16.gmra.mrb[0].mxu0 %v2132
        %v2266 = vpop.f32.mrb[0].mxu0
        %v2267 = vadd.f32 %v1927, %v2266
        %v2268 = vpop.f32.mrb[0].mxu0
        %v2269 = vpop.f32.mrb[0].mxu0
        %v2270 = vadd.f32 %v1932, %v2269
        %v2271 = vpop.f32.mrb[0].mxu0
        %2272 = vmatprep.mubr.bf16.mxu0 %v2135
        %2273 = vmatmul.mubr.bf16.gmra.mrb[0].mxu0 %v2134
        %v2274 = vpop.f32.mrb[0].mxu0
        %v2275 = vadd.f32 %v1937, %v2274
        %v2276 = vpop.f32.mrb[0].mxu0
        %v2277 = vpop.f32.mrb[0].mxu0
        %v2278 = vadd.f32 %v1942, %v2277
        %v2279 = vpop.f32.mrb[0].mxu0
        %2280 = vmatprep.mubr.bf16.mxu0 %v2137
        %2281 = vmatmul.mubr.bf16.gmra.mrb[0].mxu0 %v2136
        %v2282 = vpop.f32.mrb[0].mxu0
        %v2283 = vadd.f32 %v1947, %v2282
        %v2284 = vpop.f32.mrb[0].mxu0
        %v2285 = vpop.f32.mrb[0].mxu0
        %v2286 = vadd.f32 %v1952, %v2285
        %v2287 = vpop.f32.mrb[0].mxu0
        %2288 = vmatprep.mubr.bf16.mxu0 %v2139
        %2289 = vmatmul.mubr.bf16.gmra.mrb[0].mxu0 %v2138
        %v2290 = vpop.f32.mrb[0].mxu0
        %v2291 = vadd.f32 %v1957, %v2290
        %v2292 = vpop.f32.mrb[0].mxu0
        %v2293 = vpop.f32.mrb[0].mxu0
        %v2294 = vadd.f32 %v1962, %v2293
        %v2295 = vpop.f32.mrb[0].mxu0
        %2296 = vmatprep.mubr.bf16.mxu0 %v2141
        %2297 = vmatmul.mubr.bf16.gmra.mrb[0].mxu0 %v2140
        %v2298 = vpop.f32.mrb[0].mxu0
        %v2299 = vadd.f32 %v1967, %v2298
        %v2300 = vpop.f32.mrb[0].mxu0
        %v2301 = vpop.f32.mrb[0].mxu0
        %v2302 = vadd.f32 %v1972, %v2301
        %v2303 = vpop.f32.mrb[0].mxu0
        %2304 = vmatprep.mubr.bf16.mxu0 %v2143
        %2305 = vmatmul.mubr.bf16.gmra.mrb[0].mxu0 %v2142
        %v2306 = vpop.f32.mrb[0].mxu0
        %v2307 = vadd.f32 %v1977, %v2306
        %v2308 = vpop.f32.mrb[0].mxu0
        %v2309 = vpop.f32.mrb[0].mxu0
        %v2310 = vadd.f32 %v1982, %v2309
        %v2311 = vpop.f32.mrb[0].mxu0
        %2312 = vmatprep.mubr.bf16.mxu0 %v2145
        %2313 = vmatmul.mubr.bf16.gmra.mrb[0].mxu0 %v2144
        %v2314 = vpop.f32.mrb[0].mxu0
        %v2315 = vadd.f32 %v1987, %v2314
        %v2316 = vpop.f32.mrb[0].mxu0
        %v2317 = vpop.f32.mrb[0].mxu0
        %v2318 = vadd.f32 %v1992, %v2317
        %v2319 = vpop.f32.mrb[0].mxu0
        %2320 = vmatprep.mubr.bf16.mxu0 %v2147
        %2321 = vmatmul.mubr.bf16.gmra.mrb[0].mxu0 %v2146
        %v2322 = vpop.f32.mrb[0].mxu0
        %v2323 = vadd.f32 %v1997, %v2322
        %v2324 = vpop.f32.mrb[0].mxu0
        %v2325 = vpop.f32.mrb[0].mxu0
        %v2326 = vadd.f32 %v2002, %v2325
        %v2327 = vpop.f32.mrb[0].mxu0
        %2328 = vmatprep.mubr.bf16.mxu0 %v2149
        %2329 = vmatmul.mubr.bf16.gmra.mrb[0].mxu0 %v2148
        %v2330 = vpop.f32.mrb[0].mxu0
        %v2331 = vadd.f32 %v2007, %v2330
        %v2332 = vpop.f32.mrb[0].mxu0
        %v2333 = vpop.f32.mrb[0].mxu0
        %v2334 = vadd.f32 %v2012, %v2333
        %v2335 = vpop.f32.mrb[0].mxu0
        %2336 = vmatprep.mubr.bf16.mxu0 %v2151
        %2337 = vmatmul.mubr.bf16.gmra.mrb[0].mxu0 %v2150
        %v2338 = vpop.f32.mrb[0].mxu0
        %v2339 = vadd.f32 %v2017, %v2338
        %v2340 = vpop.f32.mrb[0].mxu0
        %v2341 = vpop.f32.mrb[0].mxu0
        %v2342 = vadd.f32 %v2022, %v2341
        %v2343 = vpop.f32.mrb[0].mxu0
        %2344 = vdwg.mxu0
        %vm2345 = vcmp.ge.f32.partialorder %v2219, 0.0
        %vm2346 = vcmp.ge.f32.partialorder %v2222, 0.0
        %vm2347 = vcmp.ge.f32.partialorder %v2227, 0.0
        %vm2348 = vcmp.ge.f32.partialorder %v2230, 0.0
        %vm2349 = vcmp.ge.f32.partialorder %v2235, 0.0
        %vm2350 = vcmp.ge.f32.partialorder %v2238, 0.0
        %vm2351 = vcmp.ge.f32.partialorder %v2243, 0.0
        %vm2352 = vcmp.ge.f32.partialorder %v2246, 0.0
        %vm2353 = vcmp.ge.f32.partialorder %v2251, 0.0
        %vm2354 = vcmp.ge.f32.partialorder %v2254, 0.0
        %vm2355 = vcmp.ge.f32.partialorder %v2259, 0.0
        %vm2356 = vcmp.ge.f32.partialorder %v2262, 0.0
        %vm2357 = vcmp.ge.f32.partialorder %v2267, 0.0
        %vm2358 = vcmp.ge.f32.partialorder %v2270, 0.0
        %vm2359 = vcmp.ge.f32.partialorder %v2275, 0.0
        %vm2360 = vcmp.ge.f32.partialorder %v2278, 0.0
        %vm2361 = vcmp.ge.f32.partialorder %v2283, 0.0
        %vm2362 = vcmp.ge.f32.partialorder %v2286, 0.0
        %vm2363 = vcmp.ge.f32.partialorder %v2291, 0.0
        %vm2364 = vcmp.ge.f32.partialorder %v2294, 0.0
        %vm2365 = vcmp.ge.f32.partialorder %v2299, 0.0
        %vm2366 = vcmp.ge.f32.partialorder %v2302, 0.0
        %vm2367 = vcmp.ge.f32.partialorder %v2307, 0.0
        %vm2368 = vcmp.ge.f32.partialorder %v2310, 0.0
        %vm2369 = vcmp.ge.f32.partialorder %v2315, 0.0
        %vm2370 = vcmp.ge.f32.partialorder %v2318, 0.0
        %vm2371 = vcmp.ge.f32.partialorder %v2323, 0.0
        %vm2372 = vcmp.ge.f32.partialorder %v2326, 0.0
        %vm2373 = vcmp.ge.f32.partialorder %v2331, 0.0
        %vm2374 = vcmp.ge.f32.partialorder %v2334, 0.0
        %vm2375 = vcmp.ge.f32.partialorder %v2339, 0.0
        %vm2376 = vcmp.ge.f32.partialorder %v2342, 0.0
        %v2377 = vmul.f32 %v2219, 0.2
        %v2378 = vmul.f32 %v2222, 0.2
        %v2379 = vmul.f32 %v2227, 0.2
        %v2380 = vmul.f32 %v2230, 0.2
        %v2381 = vmul.f32 %v2235, 0.2
        %v2382 = vmul.f32 %v2238, 0.2
        %v2383 = vmul.f32 %v2243, 0.2
        %v2384 = vmul.f32 %v2246, 0.2
        %v2385 = vmul.f32 %v2251, 0.2
        %v2386 = vmul.f32 %v2254, 0.2
        %v2387 = vmul.f32 %v2259, 0.2
        %v2388 = vmul.f32 %v2262, 0.2
        %v2389 = vmul.f32 %v2267, 0.2
        %v2390 = vmul.f32 %v2270, 0.2
        %v2391 = vmul.f32 %v2275, 0.2
        %v2392 = vmul.f32 %v2278, 0.2
        %v2393 = vmul.f32 %v2283, 0.2
        %v2394 = vmul.f32 %v2286, 0.2
        %v2395 = vmul.f32 %v2291, 0.2
        %v2396 = vmul.f32 %v2294, 0.2
        %v2397 = vmul.f32 %v2299, 0.2
        %v2398 = vmul.f32 %v2302, 0.2
        %v2399 = vmul.f32 %v2307, 0.2
        %v2400 = vmul.f32 %v2310, 0.2
        %v2401 = vmul.f32 %v2315, 0.2
        %v2402 = vmul.f32 %v2318, 0.2
        %v2403 = vmul.f32 %v2323, 0.2
        %v2404 = vmul.f32 %v2326, 0.2
        %v2405 = vmul.f32 %v2331, 0.2
        %v2406 = vmul.f32 %v2334, 0.2
        %v2407 = vmul.f32 %v2339, 0.2
        %v2408 = vmul.f32 %v2342, 0.2
        %v2409 = vsel %vm2345, %v2219, %v2377
        %v2410 = vsel %vm2346, %v2222, %v2378
        %v2411 = vsel %vm2347, %v2227, %v2379
        %v2412 = vsel %vm2348, %v2230, %v2380
        %v2413 = vsel %vm2349, %v2235, %v2381
        %v2414 = vsel %vm2350, %v2238, %v2382
        %v2415 = vsel %vm2351, %v2243, %v2383
        %v2416 = vsel %vm2352, %v2246, %v2384
        %v2417 = vsel %vm2353, %v2251, %v2385
        %v2418 = vsel %vm2354, %v2254, %v2386
        %v2419 = vsel %vm2355, %v2259, %v2387
        %v2420 = vsel %vm2356, %v2262, %v2388
        %v2421 = vsel %vm2357, %v2267, %v2389
        %v2422 = vsel %vm2358, %v2270, %v2390
        %v2423 = vsel %vm2359, %v2275, %v2391
        %v2424 = vsel %vm2360, %v2278, %v2392
        %v2425 = vsel %vm2361, %v2283, %v2393
        %v2426 = vsel %vm2362, %v2286, %v2394
        %v2427 = vsel %vm2363, %v2291, %v2395
        %v2428 = vsel %vm2364, %v2294, %v2396
        %v2429 = vsel %vm2365, %v2299, %v2397
        %v2430 = vsel %vm2366, %v2302, %v2398
        %v2431 = vsel %vm2367, %v2307, %v2399
        %v2432 = vsel %vm2368, %v2310, %v2400
        %v2433 = vsel %vm2369, %v2315, %v2401
        %v2434 = vsel %vm2370, %v2318, %v2402
        %v2435 = vsel %vm2371, %v2323, %v2403
        %v2436 = vsel %vm2372, %v2326, %v2404
        %v2437 = vsel %vm2373, %v2331, %v2405
        %v2438 = vsel %vm2374, %v2334, %v2406
        %v2439 = vsel %vm2375, %v2339, %v2407
        %v2440 = vsel %vm2376, %v2342, %v2408
        %v2441 = vld [vmem:[%s7] sm:$0xff]
        %v2442 = vld [vmem:[%s7 + $0x8] sm:$0xff]
        %v2443 = vld [vmem:[%s7 + $0x10] sm:$0xff]
        %v2444 = vld [vmem:[%s7 + $0x18] sm:$0xff]
        %v2445 = vld [vmem:[%s7 + $0x20] sm:$0xff]
        %v2446 = vld [vmem:[%s7 + $0x28] sm:$0xff]
        %v2447 = vld [vmem:[%s7 + $0x30] sm:$0xff]
        %v2448 = vld [vmem:[%s7 + $0x38] sm:$0xff]
        %v2449 = vld [vmem:[%s7 + $0x40] sm:$0xff]
        %v2450 = vld [vmem:[%s7 + $0x48] sm:$0xff]
        %v2451 = vld [vmem:[%s7 + $0x50] sm:$0xff]
        %v2452 = vld [vmem:[%s7 + $0x58] sm:$0xff]
        %v2453 = vld [vmem:[%s7 + $0x60] sm:$0xff]
        %v2454 = vld [vmem:[%s7 + $0x68] sm:$0xff]
        %v2455 = vld [vmem:[%s7 + $0x70] sm:$0xff]
        %v2456 = vld [vmem:[%s7 + $0x78] sm:$0xff]
        %v2457 = vld [vmem:[%s7 + $0x80] sm:$0xff]
        %v2458 = vld [vmem:[%s7 + $0x88] sm:$0xff]
        %v2459 = vld [vmem:[%s7 + $0x90] sm:$0xff]
        %v2460 = vld [vmem:[%s7 + $0x98] sm:$0xff]
        %v2461 = vld [vmem:[%s7 + $0xa0] sm:$0xff]
        %v2462 = vld [vmem:[%s7 + $0xa8] sm:$0xff]
        %v2463 = vld [vmem:[%s7 + $0xb0] sm:$0xff]
        %v2464 = vld [vmem:[%s7 + $0xb8] sm:$0xff]
        %v2465 = vld [vmem:[%s7 + $0xc0] sm:$0xff]
        %v2466 = vld [vmem:[%s7 + $0xc8] sm:$0xff]
        %v2467 = vld [vmem:[%s7 + $0xd0] sm:$0xff]
        %v2468 = vld [vmem:[%s7 + $0xd8] sm:$0xff]
        %v2469 = vld [vmem:[%s7 + $0xe0] sm:$0xff]
        %v2470 = vld [vmem:[%s7 + $0xe8] sm:$0xff]
        %v2471 = vld [vmem:[%s7 + $0xf0] sm:$0xff]
        %v2472 = vld [vmem:[%s7 + $0xf8] sm:$0xff]
        %v2473 = vpack.c.bf16 %v2410, %v2409
        %v2474 = vpack.c.bf16 %v2412, %v2411
        %v2475 = vpack.c.bf16 %v2414, %v2413
        %v2476 = vpack.c.bf16 %v2416, %v2415
        %v2477 = vpack.c.bf16 %v2418, %v2417
        %v2478 = vpack.c.bf16 %v2420, %v2419
        %v2479 = vpack.c.bf16 %v2422, %v2421
        %v2480 = vpack.c.bf16 %v2424, %v2423
        %v2481 = vpack.c.bf16 %v2426, %v2425
        %v2482 = vpack.c.bf16 %v2428, %v2427
        %v2483 = vpack.c.bf16 %v2430, %v2429
        %v2484 = vpack.c.bf16 %v2432, %v2431
        %v2485 = vpack.c.bf16 %v2434, %v2433
        %v2486 = vpack.c.bf16 %v2436, %v2435
        %v2487 = vpack.c.bf16 %v2438, %v2437
        %v2488 = vpack.c.bf16 %v2440, %v2439
        %v2489 = vld [vmem:[%s8] sm:$0xff]
        %v2490 = vld [vmem:[%s8 + $0x8] sm:$0xff]
        %v2491 = vld [vmem:[%s8 + $0x10] sm:$0xff]
        %v2492 = vld [vmem:[%s8 + $0x18] sm:$0xff]
        %v2493 = vld [vmem:[%s8 + $0x20] sm:$0xff]
        %v2494 = vld [vmem:[%s8 + $0x28] sm:$0xff]
        %v2495 = vld [vmem:[%s8 + $0x30] sm:$0xff]
        %v2496 = vld [vmem:[%s8 + $0x38] sm:$0xff]
        %v2497 = vld [vmem:[%s8 + $0x40] sm:$0xff]
        %v2498 = vld [vmem:[%s8 + $0x48] sm:$0xff]
        %v2499 = vld [vmem:[%s8 + $0x50] sm:$0xff]
        %v2500 = vld [vmem:[%s8 + $0x58] sm:$0xff]
        %v2501 = vld [vmem:[%s8 + $0x60] sm:$0xff]
        %v2502 = vld [vmem:[%s8 + $0x68] sm:$0xff]
        %v2503 = vld [vmem:[%s8 + $0x70] sm:$0xff]
        %v2504 = vld [vmem:[%s8 + $0x78] sm:$0xff]
        %v2505 = vld [vmem:[%s8 + $0x80] sm:$0xff]
        %v2506 = vld [vmem:[%s8 + $0x88] sm:$0xff]
        %v2507 = vld [vmem:[%s8 + $0x90] sm:$0xff]
        %v2508 = vld [vmem:[%s8 + $0x98] sm:$0xff]
        %v2509 = vld [vmem:[%s8 + $0xa0] sm:$0xff]
        %v2510 = vld [vmem:[%s8 + $0xa8] sm:$0xff]
        %v2511 = vld [vmem:[%s8 + $0xb0] sm:$0xff]
        %v2512 = vld [vmem:[%s8 + $0xb8] sm:$0xff]
        %v2513 = vld [vmem:[%s8 + $0xc0] sm:$0xff]
        %v2514 = vld [vmem:[%s8 + $0xc8] sm:$0xff]
        %v2515 = vld [vmem:[%s8 + $0xd0] sm:$0xff]
        %v2516 = vld [vmem:[%s8 + $0xd8] sm:$0xff]
        %v2517 = vld [vmem:[%s8 + $0xe0] sm:$0xff]
        %v2518 = vld [vmem:[%s8 + $0xe8] sm:$0xff]
        %v2519 = vld [vmem:[%s8 + $0xf0] sm:$0xff]
        %v2520 = vld [vmem:[%s8 + $0xf8] sm:$0xff]
        %2522 = vset.pattern.permute.xlu0 0
        %2523 = vperm.xlu0 %2522, %v2489
        %v2524 = vpop.permute.xlu0 %2523
        %2527 = vset.pattern.permute.xlu0 0
        %2528 = vperm.xlu0 %2527, %v2490
        %v2529 = vpop.permute.xlu0 %2528
        %2532 = vset.pattern.permute.xlu0 0
        %2533 = vperm.xlu0 %2532, %v2491
        %v2534 = vpop.permute.xlu0 %2533
        %2537 = vset.pattern.permute.xlu0 0
        %2538 = vperm.xlu0 %2537, %v2492
        %v2539 = vpop.permute.xlu0 %2538
        %2542 = vset.pattern.permute.xlu0 0
        %2543 = vperm.xlu0 %2542, %v2493
        %v2544 = vpop.permute.xlu0 %2543
        %2547 = vset.pattern.permute.xlu0 0
        %2548 = vperm.xlu0 %2547, %v2494
        %v2549 = vpop.permute.xlu0 %2548
        %2552 = vset.pattern.permute.xlu0 0
        %2553 = vperm.xlu0 %2552, %v2495
        %v2554 = vpop.permute.xlu0 %2553
        %2557 = vset.pattern.permute.xlu0 0
        %2558 = vperm.xlu0 %2557, %v2496
        %v2559 = vpop.permute.xlu0 %2558
        %2562 = vset.pattern.permute.xlu0 0
        %2563 = vperm.xlu0 %2562, %v2497
        %v2564 = vpop.permute.xlu0 %2563
        %2567 = vset.pattern.permute.xlu0 0
        %2568 = vperm.xlu0 %2567, %v2498
        %v2569 = vpop.permute.xlu0 %2568
        %2572 = vset.pattern.permute.xlu0 0
        %2573 = vperm.xlu0 %2572, %v2499
        %v2574 = vpop.permute.xlu0 %2573
        %2577 = vset.pattern.permute.xlu0 0
        %2578 = vperm.xlu0 %2577, %v2500
        %v2579 = vpop.permute.xlu0 %2578
        %2582 = vset.pattern.permute.xlu0 0
        %2583 = vperm.xlu0 %2582, %v2501
        %v2584 = vpop.permute.xlu0 %2583
        %2587 = vset.pattern.permute.xlu0 0
        %2588 = vperm.xlu0 %2587, %v2502
        %v2589 = vpop.permute.xlu0 %2588
        %2592 = vset.pattern.permute.xlu0 0
        %2593 = vperm.xlu0 %2592, %v2503
        %v2594 = vpop.permute.xlu0 %2593
        %2597 = vset.pattern.permute.xlu0 0
        %2598 = vperm.xlu0 %2597, %v2504
        %v2599 = vpop.permute.xlu0 %2598
        %2602 = vset.pattern.permute.xlu0 0
        %2603 = vperm.xlu0 %2602, %v2505
        %v2604 = vpop.permute.xlu0 %2603
        %2607 = vset.pattern.permute.xlu0 0
        %2608 = vperm.xlu0 %2607, %v2506
        %v2609 = vpop.permute.xlu0 %2608
        %2612 = vset.pattern.permute.xlu0 0
        %2613 = vperm.xlu0 %2612, %v2507
        %v2614 = vpop.permute.xlu0 %2613
        %2617 = vset.pattern.permute.xlu0 0
        %2618 = vperm.xlu0 %2617, %v2508
        %v2619 = vpop.permute.xlu0 %2618
        %2622 = vset.pattern.permute.xlu0 0
        %2623 = vperm.xlu0 %2622, %v2509
        %v2624 = vpop.permute.xlu0 %2623
        %2627 = vset.pattern.permute.xlu0 0
        %2628 = vperm.xlu0 %2627, %v2510
        %v2629 = vpop.permute.xlu0 %2628
        %2632 = vset.pattern.permute.xlu0 0
        %2633 = vperm.xlu0 %2632, %v2511
        %v2634 = vpop.permute.xlu0 %2633
        %2637 = vset.pattern.permute.xlu0 0
        %2638 = vperm.xlu0 %2637, %v2512
        %v2639 = vpop.permute.xlu0 %2638
        %2642 = vset.pattern.permute.xlu0 0
        %2643 = vperm.xlu0 %2642, %v2513
        %v2644 = vpop.permute.xlu0 %2643
        %2647 = vset.pattern.permute.xlu0 0
        %2648 = vperm.xlu0 %2647, %v2514
        %v2649 = vpop.permute.xlu0 %2648
        %2652 = vset.pattern.permute.xlu0 0
        %2653 = vperm.xlu0 %2652, %v2515
        %v2654 = vpop.permute.xlu0 %2653
        %2657 = vset.pattern.permute.xlu0 0
        %2658 = vperm.xlu0 %2657, %v2516
        %v2659 = vpop.permute.xlu0 %2658
        %2662 = vset.pattern.permute.xlu0 0
        %2663 = vperm.xlu0 %2662, %v2517
        %v2664 = vpop.permute.xlu0 %2663
        %2667 = vset.pattern.permute.xlu0 0
        %2668 = vperm.xlu0 %2667, %v2518
        %v2669 = vpop.permute.xlu0 %2668
        %2672 = vset.pattern.permute.xlu0 0
        %2673 = vperm.xlu0 %2672, %v2519
        %v2674 = vpop.permute.xlu0 %2673
        %2677 = vset.pattern.permute.xlu0 0
        %2678 = vperm.xlu0 %2677, %v2520
        %v2679 = vpop.permute.xlu0 %2678
        %v2713 = vunpack.c.l.b16 %v2441
        %v2714 = vunpack.c.h.b16 %v2441
        %v2715 = vunpack.c.l.b16 %v2442
        %v2716 = vunpack.c.h.b16 %v2442
        %v2717 = vunpack.c.l.b16 %v2443
        %v2718 = vunpack.c.h.b16 %v2443
        %v2719 = vunpack.c.l.b16 %v2444
        %v2720 = vunpack.c.h.b16 %v2444
        %v2721 = vunpack.c.l.b16 %v2445
        %v2722 = vunpack.c.h.b16 %v2445
        %v2723 = vunpack.c.l.b16 %v2446
        %v2724 = vunpack.c.h.b16 %v2446
        %v2725 = vunpack.c.l.b16 %v2447
        %v2726 = vunpack.c.h.b16 %v2447
        %v2727 = vunpack.c.l.b16 %v2448
        %v2728 = vunpack.c.h.b16 %v2448
        %v2729 = vunpack.c.l.b16 %v2449
        %v2730 = vunpack.c.h.b16 %v2449
        %v2731 = vunpack.c.l.b16 %v2450
        %v2732 = vunpack.c.h.b16 %v2450
        %v2733 = vunpack.c.l.b16 %v2451
        %v2734 = vunpack.c.h.b16 %v2451
        %v2735 = vunpack.c.l.b16 %v2452
        %v2736 = vunpack.c.h.b16 %v2452
        %v2737 = vunpack.c.l.b16 %v2453
        %v2738 = vunpack.c.h.b16 %v2453
        %v2739 = vunpack.c.l.b16 %v2454
        %v2740 = vunpack.c.h.b16 %v2454
        %v2741 = vunpack.c.l.b16 %v2455
        %v2742 = vunpack.c.h.b16 %v2455
        %v2743 = vunpack.c.l.b16 %v2456
        %v2744 = vunpack.c.h.b16 %v2456
        %v2745 = vunpack.c.l.b16 %v2457
        %v2746 = vunpack.c.h.b16 %v2457
        %v2747 = vunpack.c.l.b16 %v2458
        %v2748 = vunpack.c.h.b16 %v2458
        %v2749 = vunpack.c.l.b16 %v2459
        %v2750 = vunpack.c.h.b16 %v2459
        %v2751 = vunpack.c.l.b16 %v2460
        %v2752 = vunpack.c.h.b16 %v2460
        %v2753 = vunpack.c.l.b16 %v2461
        %v2754 = vunpack.c.h.b16 %v2461
        %v2755 = vunpack.c.l.b16 %v2462
        %v2756 = vunpack.c.h.b16 %v2462
        %v2757 = vunpack.c.l.b16 %v2463
        %v2758 = vunpack.c.h.b16 %v2463
        %v2759 = vunpack.c.l.b16 %v2464
        %v2760 = vunpack.c.h.b16 %v2464
        %v2761 = vunpack.c.l.b16 %v2465
        %v2762 = vunpack.c.h.b16 %v2465
        %v2763 = vunpack.c.l.b16 %v2466
        %v2764 = vunpack.c.h.b16 %v2466
        %v2765 = vunpack.c.l.b16 %v2467
        %v2766 = vunpack.c.h.b16 %v2467
        %v2767 = vunpack.c.l.b16 %v2468
        %v2768 = vunpack.c.h.b16 %v2468
        %v2769 = vunpack.c.l.b16 %v2469
        %v2770 = vunpack.c.h.b16 %v2469
        %v2771 = vunpack.c.l.b16 %v2470
        %v2772 = vunpack.c.h.b16 %v2470
        %v2773 = vunpack.c.l.b16 %v2471
        %v2774 = vunpack.c.h.b16 %v2471
        %v2775 = vunpack.c.l.b16 %v2472
        %v2776 = vunpack.c.h.b16 %v2472
        %v2777 = vpack.c.b16 %v2715, %v2713
        %v2778 = vpack.c.b16 %v2716, %v2714
        %v2779 = vpack.c.b16 %v2719, %v2717
        %v2780 = vpack.c.b16 %v2720, %v2718
        %v2781 = vpack.c.b16 %v2723, %v2721
        %v2782 = vpack.c.b16 %v2724, %v2722
        %v2783 = vpack.c.b16 %v2727, %v2725
        %v2784 = vpack.c.b16 %v2728, %v2726
        %v2785 = vpack.c.b16 %v2731, %v2729
        %v2786 = vpack.c.b16 %v2732, %v2730
        %v2787 = vpack.c.b16 %v2735, %v2733
        %v2788 = vpack.c.b16 %v2736, %v2734
        %v2789 = vpack.c.b16 %v2739, %v2737
        %v2790 = vpack.c.b16 %v2740, %v2738
        %v2791 = vpack.c.b16 %v2743, %v2741
        %v2792 = vpack.c.b16 %v2744, %v2742
        %v2793 = vpack.c.b16 %v2747, %v2745
        %v2794 = vpack.c.b16 %v2748, %v2746
        %v2795 = vpack.c.b16 %v2751, %v2749
        %v2796 = vpack.c.b16 %v2752, %v2750
        %v2797 = vpack.c.b16 %v2755, %v2753
        %v2798 = vpack.c.b16 %v2756, %v2754
        %v2799 = vpack.c.b16 %v2759, %v2757
        %v2800 = vpack.c.b16 %v2760, %v2758
        %v2801 = vpack.c.b16 %v2763, %v2761
        %v2802 = vpack.c.b16 %v2764, %v2762
        %v2803 = vpack.c.b16 %v2767, %v2765
        %v2804 = vpack.c.b16 %v2768, %v2766
        %v2805 = vpack.c.b16 %v2771, %v2769
        %v2806 = vpack.c.b16 %v2772, %v2770
        %v2807 = vpack.c.b16 %v2775, %v2773
        %v2808 = vpack.c.b16 %v2776, %v2774
        %2841 = vmatprep.subr.bf16.mxu0 0
        %2842 = vmatpush1.bf16.msra.mxu0 %v2473
        %2843 = vmatprep.subr.bf16.mxu0 0
        %2844 = vmatpush1.bf16.msra.mxu0 %v2474
        %2845 = vmatprep.subr.bf16.mxu0 0
        %2846 = vmatpush1.bf16.msra.mxu0 %v2475
        %2847 = vmatprep.subr.bf16.mxu0 0
        %2848 = vmatpush1.bf16.msra.mxu0 %v2476
        %2849 = vmatprep.subr.bf16.mxu0 0
        %2850 = vmatpush1.bf16.msra.mxu0 %v2477
        %2851 = vmatprep.subr.bf16.mxu0 0
        %2852 = vmatpush1.bf16.msra.mxu0 %v2478
        %2853 = vmatprep.subr.bf16.mxu0 0
        %2854 = vmatpush1.bf16.msra.mxu0 %v2479
        %2855 = vmatprep.subr.bf16.mxu0 0
        %2856 = vmatpush1.bf16.msra.mxu0 %v2480
        %2857 = vmatprep.subr.bf16.mxu0 0
        %2858 = vmatpush1.bf16.msra.mxu0 %v2481
        %2859 = vmatprep.subr.bf16.mxu0 0
        %2860 = vmatpush1.bf16.msra.mxu0 %v2482
        %2861 = vmatprep.subr.bf16.mxu0 0
        %2862 = vmatpush1.bf16.msra.mxu0 %v2483
        %2863 = vmatprep.subr.bf16.mxu0 0
        %2864 = vmatpush1.bf16.msra.mxu0 %v2484
        %2865 = vmatprep.subr.bf16.mxu0 0
        %2866 = vmatpush1.bf16.msra.mxu0 %v2485
        %2867 = vmatprep.subr.bf16.mxu0 0
        %2868 = vmatpush1.bf16.msra.mxu0 %v2486
        %2869 = vmatprep.subr.bf16.mxu0 0
        %2870 = vmatpush1.bf16.msra.mxu0 %v2487
        %2871 = vmatprep.subr.bf16.mxu0 0
        %2872 = vmatpush1.bf16.msra.mxu0 %v2488
        %2873 = vmatprep.mubr.bf16.mxu0 %v2778
        %2874 = vmatmul.mubr.bf16.gmra.mrb[0].mxu0 %v2777
        %v2875 = vpop.f32.mrb[0].mxu0
        %v2876 = vadd.f32 %v2524, %v2875
        %v2877 = vpop.f32.mrb[0].mxu0
        %v2878 = vpop.f32.mrb[0].mxu0
        %v2879 = vadd.f32 %v2529, %v2878
        %v2880 = vpop.f32.mrb[0].mxu0
        %2881 = vmatprep.mubr.bf16.mxu0 %v2780
        %2882 = vmatmul.mubr.bf16.gmra.mrb[0].mxu0 %v2779
        %v2883 = vpop.f32.mrb[0].mxu0
        %v2884 = vadd.f32 %v2534, %v2883
        %v2885 = vpop.f32.mrb[0].mxu0
        %v2886 = vpop.f32.mrb[0].mxu0
        %v2887 = vadd.f32 %v2539, %v2886
        %v2888 = vpop.f32.mrb[0].mxu0
        %2889 = vmatprep.mubr.bf16.mxu0 %v2782
        %2890 = vmatmul.mubr.bf16.gmra.mrb[0].mxu0 %v2781
        %v2891 = vpop.f32.mrb[0].mxu0
        %v2892 = vadd.f32 %v2544, %v2891
        %v2893 = vpop.f32.mrb[0].mxu0
        %v2894 = vpop.f32.mrb[0].mxu0
        %v2895 = vadd.f32 %v2549, %v2894
        %v2896 = vpop.f32.mrb[0].mxu0
        %2897 = vmatprep.mubr.bf16.mxu0 %v2784
        %2898 = vmatmul.mubr.bf16.gmra.mrb[0].mxu0 %v2783
        %v2899 = vpop.f32.mrb[0].mxu0
        %v2900 = vadd.f32 %v2554, %v2899
        %v2901 = vpop.f32.mrb[0].mxu0
        %v2902 = vpop.f32.mrb[0].mxu0
        %v2903 = vadd.f32 %v2559, %v2902
        %v2904 = vpop.f32.mrb[0].mxu0
        %2905 = vmatprep.mubr.bf16.mxu0 %v2786
        %2906 = vmatmul.mubr.bf16.gmra.mrb[0].mxu0 %v2785
        %v2907 = vpop.f32.mrb[0].mxu0
        %v2908 = vadd.f32 %v2564, %v2907
        %v2909 = vpop.f32.mrb[0].mxu0
        %v2910 = vpop.f32.mrb[0].mxu0
        %v2911 = vadd.f32 %v2569, %v2910
        %v2912 = vpop.f32.mrb[0].mxu0
        %2913 = vmatprep.mubr.bf16.mxu0 %v2788
        %2914 = vmatmul.mubr.bf16.gmra.mrb[0].mxu0 %v2787
        %v2915 = vpop.f32.mrb[0].mxu0
        %v2916 = vadd.f32 %v2574, %v2915
        %v2917 = vpop.f32.mrb[0].mxu0
        %v2918 = vpop.f32.mrb[0].mxu0
        %v2919 = vadd.f32 %v2579, %v2918
        %v2920 = vpop.f32.mrb[0].mxu0
        %2921 = vmatprep.mubr.bf16.mxu0 %v2790
        %2922 = vmatmul.mubr.bf16.gmra.mrb[0].mxu0 %v2789
        %v2923 = vpop.f32.mrb[0].mxu0
        %v2924 = vadd.f32 %v2584, %v2923
        %v2925 = vpop.f32.mrb[0].mxu0
        %v2926 = vpop.f32.mrb[0].mxu0
        %v2927 = vadd.f32 %v2589, %v2926
        %v2928 = vpop.f32.mrb[0].mxu0
        %2929 = vmatprep.mubr.bf16.mxu0 %v2792
        %2930 = vmatmul.mubr.bf16.gmra.mrb[0].mxu0 %v2791
        %v2931 = vpop.f32.mrb[0].mxu0
        %v2932 = vadd.f32 %v2594, %v2931
        %v2933 = vpop.f32.mrb[0].mxu0
        %v2934 = vpop.f32.mrb[0].mxu0
        %v2935 = vadd.f32 %v2599, %v2934
        %v2936 = vpop.f32.mrb[0].mxu0
        %2937 = vmatprep.mubr.bf16.mxu0 %v2794
        %2938 = vmatmul.mubr.bf16.gmra.mrb[0].mxu0 %v2793
        %v2939 = vpop.f32.mrb[0].mxu0
        %v2940 = vadd.f32 %v2604, %v2939
        %v2941 = vpop.f32.mrb[0].mxu0
        %v2942 = vpop.f32.mrb[0].mxu0
        %v2943 = vadd.f32 %v2609, %v2942
        %v2944 = vpop.f32.mrb[0].mxu0
        %2945 = vmatprep.mubr.bf16.mxu0 %v2796
        %2946 = vmatmul.mubr.bf16.gmra.mrb[0].mxu0 %v2795
        %v2947 = vpop.f32.mrb[0].mxu0
        %v2948 = vadd.f32 %v2614, %v2947
        %v2949 = vpop.f32.mrb[0].mxu0
        %v2950 = vpop.f32.mrb[0].mxu0
        %v2951 = vadd.f32 %v2619, %v2950
        %v2952 = vpop.f32.mrb[0].mxu0
        %2953 = vmatprep.mubr.bf16.mxu0 %v2798
        %2954 = vmatmul.mubr.bf16.gmra.mrb[0].mxu0 %v2797
        %v2955 = vpop.f32.mrb[0].mxu0
        %v2956 = vadd.f32 %v2624, %v2955
        %v2957 = vpop.f32.mrb[0].mxu0
        %v2958 = vpop.f32.mrb[0].mxu0
        %v2959 = vadd.f32 %v2629, %v2958
        %v2960 = vpop.f32.mrb[0].mxu0
        %2961 = vmatprep.mubr.bf16.mxu0 %v2800
        %2962 = vmatmul.mubr.bf16.gmra.mrb[0].mxu0 %v2799
        %v2963 = vpop.f32.mrb[0].mxu0
        %v2964 = vadd.f32 %v2634, %v2963
        %v2965 = vpop.f32.mrb[0].mxu0
        %v2966 = vpop.f32.mrb[0].mxu0
        %v2967 = vadd.f32 %v2639, %v2966
        %v2968 = vpop.f32.mrb[0].mxu0
        %2969 = vmatprep.mubr.bf16.mxu0 %v2802
        %2970 = vmatmul.mubr.bf16.gmra.mrb[0].mxu0 %v2801
        %v2971 = vpop.f32.mrb[0].mxu0
        %v2972 = vadd.f32 %v2644, %v2971
        %v2973 = vpop.f32.mrb[0].mxu0
        %v2974 = vpop.f32.mrb[0].mxu0
        %v2975 = vadd.f32 %v2649, %v2974
        %v2976 = vpop.f32.mrb[0].mxu0
        %2977 = vmatprep.mubr.bf16.mxu0 %v2804
        %2978 = vmatmul.mubr.bf16.gmra.mrb[0].mxu0 %v2803
        %v2979 = vpop.f32.mrb[0].mxu0
        %v2980 = vadd.f32 %v2654, %v2979
        %v2981 = vpop.f32.mrb[0].mxu0
        %v2982 = vpop.f32.mrb[0].mxu0
        %v2983 = vadd.f32 %v2659, %v2982
        %v2984 = vpop.f32.mrb[0].mxu0
        %2985 = vmatprep.mubr.bf16.mxu0 %v2806
        %2986 = vmatmul.mubr.bf16.gmra.mrb[0].mxu0 %v2805
        %v2987 = vpop.f32.mrb[0].mxu0
        %v2988 = vadd.f32 %v2664, %v2987
        %v2989 = vpop.f32.mrb[0].mxu0
        %v2990 = vpop.f32.mrb[0].mxu0
        %v2991 = vadd.f32 %v2669, %v2990
        %v2992 = vpop.f32.mrb[0].mxu0
        %2993 = vmatprep.mubr.bf16.mxu0 %v2808
        %2994 = vmatmul.mubr.bf16.gmra.mrb[0].mxu0 %v2807
        %v2995 = vpop.f32.mrb[0].mxu0
        %v2996 = vadd.f32 %v2674, %v2995
        %v2997 = vpop.f32.mrb[0].mxu0
        %v2998 = vpop.f32.mrb[0].mxu0
        %v2999 = vadd.f32 %v2679, %v2998
        %v3000 = vpop.f32.mrb[0].mxu0
        %3001 = vdwg.mxu0
        %vm3002 = vcmp.ge.f32.partialorder %v2876, 0.0
        %vm3003 = vcmp.ge.f32.partialorder %v2879, 0.0
        %vm3004 = vcmp.ge.f32.partialorder %v2884, 0.0
        %vm3005 = vcmp.ge.f32.partialorder %v2887, 0.0
        %vm3006 = vcmp.ge.f32.partialorder %v2892, 0.0
        %vm3007 = vcmp.ge.f32.partialorder %v2895, 0.0
        %vm3008 = vcmp.ge.f32.partialorder %v2900, 0.0
        %vm3009 = vcmp.ge.f32.partialorder %v2903, 0.0
        %vm3010 = vcmp.ge.f32.partialorder %v2908, 0.0
        %vm3011 = vcmp.ge.f32.partialorder %v2911, 0.0
        %vm3012 = vcmp.ge.f32.partialorder %v2916, 0.0
        %vm3013 = vcmp.ge.f32.partialorder %v2919, 0.0
        %vm3014 = vcmp.ge.f32.partialorder %v2924, 0.0
        %vm3015 = vcmp.ge.f32.partialorder %v2927, 0.0
        %vm3016 = vcmp.ge.f32.partialorder %v2932, 0.0
        %vm3017 = vcmp.ge.f32.partialorder %v2935, 0.0
        %vm3018 = vcmp.ge.f32.partialorder %v2940, 0.0
        %vm3019 = vcmp.ge.f32.partialorder %v2943, 0.0
        %vm3020 = vcmp.ge.f32.partialorder %v2948, 0.0
        %vm3021 = vcmp.ge.f32.partialorder %v2951, 0.0
        %vm3022 = vcmp.ge.f32.partialorder %v2956, 0.0
        %vm3023 = vcmp.ge.f32.partialorder %v2959, 0.0
        %vm3024 = vcmp.ge.f32.partialorder %v2964, 0.0
        %vm3025 = vcmp.ge.f32.partialorder %v2967, 0.0
        %vm3026 = vcmp.ge.f32.partialorder %v2972, 0.0
        %vm3027 = vcmp.ge.f32.partialorder %v2975, 0.0
        %vm3028 = vcmp.ge.f32.partialorder %v2980, 0.0
        %vm3029 = vcmp.ge.f32.partialorder %v2983, 0.0
        %vm3030 = vcmp.ge.f32.partialorder %v2988, 0.0
        %vm3031 = vcmp.ge.f32.partialorder %v2991, 0.0
        %vm3032 = vcmp.ge.f32.partialorder %v2996, 0.0
        %vm3033 = vcmp.ge.f32.partialorder %v2999, 0.0
        %v3034 = vmul.f32 %v2876, 0.2
        %v3035 = vmul.f32 %v2879, 0.2
        %v3036 = vmul.f32 %v2884, 0.2
        %v3037 = vmul.f32 %v2887, 0.2
        %v3038 = vmul.f32 %v2892, 0.2
        %v3039 = vmul.f32 %v2895, 0.2
        %v3040 = vmul.f32 %v2900, 0.2
        %v3041 = vmul.f32 %v2903, 0.2
        %v3042 = vmul.f32 %v2908, 0.2
        %v3043 = vmul.f32 %v2911, 0.2
        %v3044 = vmul.f32 %v2916, 0.2
        %v3045 = vmul.f32 %v2919, 0.2
        %v3046 = vmul.f32 %v2924, 0.2
        %v3047 = vmul.f32 %v2927, 0.2
        %v3048 = vmul.f32 %v2932, 0.2
        %v3049 = vmul.f32 %v2935, 0.2
        %v3050 = vmul.f32 %v2940, 0.2
        %v3051 = vmul.f32 %v2943, 0.2
        %v3052 = vmul.f32 %v2948, 0.2
        %v3053 = vmul.f32 %v2951, 0.2
        %v3054 = vmul.f32 %v2956, 0.2
        %v3055 = vmul.f32 %v2959, 0.2
        %v3056 = vmul.f32 %v2964, 0.2
        %v3057 = vmul.f32 %v2967, 0.2
        %v3058 = vmul.f32 %v2972, 0.2
        %v3059 = vmul.f32 %v2975, 0.2
        %v3060 = vmul.f32 %v2980, 0.2
        %v3061 = vmul.f32 %v2983, 0.2
        %v3062 = vmul.f32 %v2988, 0.2
        %v3063 = vmul.f32 %v2991, 0.2
        %v3064 = vmul.f32 %v2996, 0.2
        %v3065 = vmul.f32 %v2999, 0.2
        %v3066 = vsel %vm3002, %v2876, %v3034
        %v3067 = vsel %vm3003, %v2879, %v3035
        %v3068 = vsel %vm3004, %v2884, %v3036
        %v3069 = vsel %vm3005, %v2887, %v3037
        %v3070 = vsel %vm3006, %v2892, %v3038
        %v3071 = vsel %vm3007, %v2895, %v3039
        %v3072 = vsel %vm3008, %v2900, %v3040
        %v3073 = vsel %vm3009, %v2903, %v3041
        %v3074 = vsel %vm3010, %v2908, %v3042
        %v3075 = vsel %vm3011, %v2911, %v3043
        %v3076 = vsel %vm3012, %v2916, %v3044
        %v3077 = vsel %vm3013, %v2919, %v3045
        %v3078 = vsel %vm3014, %v2924, %v3046
        %v3079 = vsel %vm3015, %v2927, %v3047
        %v3080 = vsel %vm3016, %v2932, %v3048
        %v3081 = vsel %vm3017, %v2935, %v3049
        %v3082 = vsel %vm3018, %v2940, %v3050
        %v3083 = vsel %vm3019, %v2943, %v3051
        %v3084 = vsel %vm3020, %v2948, %v3052
        %v3085 = vsel %vm3021, %v2951, %v3053
        %v3086 = vsel %vm3022, %v2956, %v3054
        %v3087 = vsel %vm3023, %v2959, %v3055
        %v3088 = vsel %vm3024, %v2964, %v3056
        %v3089 = vsel %vm3025, %v2967, %v3057
        %v3090 = vsel %vm3026, %v2972, %v3058
        %v3091 = vsel %vm3027, %v2975, %v3059
        %v3092 = vsel %vm3028, %v2980, %v3060
        %v3093 = vsel %vm3029, %v2983, %v3061
        %v3094 = vsel %vm3030, %v2988, %v3062
        %v3095 = vsel %vm3031, %v2991, %v3063
        %v3096 = vsel %vm3032, %v2996, %v3064
        %v3097 = vsel %vm3033, %v2999, %v3065
        %v3098 = vld [vmem:[%s9] sm:$0xff]
        %v3099 = vpack.c.bf16 %v3067, %v3066
        %v3100 = vpack.c.bf16 %v3069, %v3068
        %v3101 = vpack.c.bf16 %v3071, %v3070
        %v3102 = vpack.c.bf16 %v3073, %v3072
        %v3103 = vpack.c.bf16 %v3075, %v3074
        %v3104 = vpack.c.bf16 %v3077, %v3076
        %v3105 = vpack.c.bf16 %v3079, %v3078
        %v3106 = vpack.c.bf16 %v3081, %v3080
        %v3107 = vpack.c.bf16 %v3083, %v3082
        %v3108 = vpack.c.bf16 %v3085, %v3084
        %v3109 = vpack.c.bf16 %v3087, %v3086
        %v3110 = vpack.c.bf16 %v3089, %v3088
        %v3111 = vpack.c.bf16 %v3091, %v3090
        %v3112 = vpack.c.bf16 %v3093, %v3092
        %v3113 = vpack.c.bf16 %v3095, %v3094
        %v3114 = vpack.c.bf16 %v3097, %v3096
        %v3115 = vld [vmem:[%s10] sm:$0xff]
        %3117 = vset.pattern.permute.xlu0 0
        %3118 = vperm.xlu0 %3117, %v3115
        %v3119 = vpop.permute.xlu0 %3118
        %v3122 = vunpack.c.l.b16 %v3098
        %v3123 = vunpack.c.h.b16 %v3098
        %v3124 = vpack.c.b16 %v3122, %v3122
        %v3125 = vpack.c.b16 %v3123, %v3123
        %3128 = vmatprep.subr.bf16.mxu0 0
        %3129 = vmatpush1.bf16.msra.mxu0 %v3099
        %3130 = vmatprep.subr.bf16.mxu0 0
        %3131 = vmatpush1.bf16.msra.mxu0 %v3100
        %3132 = vmatprep.subr.bf16.mxu0 0
        %3133 = vmatpush1.bf16.msra.mxu0 %v3101
        %3134 = vmatprep.subr.bf16.mxu0 0
        %3135 = vmatpush1.bf16.msra.mxu0 %v3102
        %3136 = vmatprep.subr.bf16.mxu0 0
        %3137 = vmatpush1.bf16.msra.mxu0 %v3103
        %3138 = vmatprep.subr.bf16.mxu0 0
        %3139 = vmatpush1.bf16.msra.mxu0 %v3104
        %3140 = vmatprep.subr.bf16.mxu0 0
        %3141 = vmatpush1.bf16.msra.mxu0 %v3105
        %3142 = vmatprep.subr.bf16.mxu0 0
        %3143 = vmatpush1.bf16.msra.mxu0 %v3106
        %3144 = vmatprep.subr.bf16.mxu0 0
        %3145 = vmatpush1.bf16.msra.mxu0 %v3107
        %3146 = vmatprep.subr.bf16.mxu0 0
        %3147 = vmatpush1.bf16.msra.mxu0 %v3108
        %3148 = vmatprep.subr.bf16.mxu0 0
        %3149 = vmatpush1.bf16.msra.mxu0 %v3109
        %3150 = vmatprep.subr.bf16.mxu0 0
        %3151 = vmatpush1.bf16.msra.mxu0 %v3110
        %3152 = vmatprep.subr.bf16.mxu0 0
        %3153 = vmatpush1.bf16.msra.mxu0 %v3111
        %3154 = vmatprep.subr.bf16.mxu0 0
        %3155 = vmatpush1.bf16.msra.mxu0 %v3112
        %3156 = vmatprep.subr.bf16.mxu0 0
        %3157 = vmatpush1.bf16.msra.mxu0 %v3113
        %3158 = vmatprep.subr.bf16.mxu0 0
        %3159 = vmatpush1.bf16.msra.mxu0 %v3114
        %3160 = vmatprep.mubr.bf16.mxu0 %v3125
        %3161 = vmatmul.mubr.bf16.gmra.mrb[0].mxu0 %v3124
        %v3162 = vpop.f32.mrb[0].mxu0
        %v3163 = vadd.f32 %v3119, %v3162
        %v3164 = vpop.f32.mrb[0].mxu0
        %v3165 = vpop.f32.mrb[0].mxu0
        %v3166 = vpop.f32.mrb[0].mxu0
        %3167 = vdwg.mxu0
        %v3169 = vrot.slane %v3163, 1
        %v3171 = vmax.f32 %v3163, %v3169
        %v3172 = vsub.f32 %v3163, %v3171
        %v3173 = vmul.f32 %v3172, 1.442695
        %v3174 = vpow.pop %v3173
        %v3175 = vadd.f32 %v3174, 0.0
        %v3177 = vrot.slane %v3171, 7
        %v3179 = vsub.f32 %v3163, %v3177
        %v3180 = vmul.f32 %v3179, 1.442695
        %v3181 = vpow.pop %v3180
        %v3183 = vrot.slane %v3181, 1
        %v3185 = vadd.f32 %v3175, %v3183
        %v3186 = vlog2.pop %v3185
        %v3187 = vmul.f32 %v3186, 0.6931472
        %v3188 = vadd.f32 %v3171, %v3187
        %3189 = vst [vmem:[%s484] sm:$0x1] %v3188
        %s3190 = sand.u32 %s269, 1
        %s3191 = scalar_lea.sflag [#allocation4], %s3190
        %s3192 = sand.u32 %s269, 1
        %s3193 = scalar_lea.vmem [#allocation3], %s3192
        // Predicated region
        $region106: #{tpu_custom_call.1} parent=100 // pred_check
          %p3194 = pneg %p279
        $region107: #{tpu_custom_call.1} parent=100 // pred_check_branch
          %3196 = sbr.rel (%p3194) target = $region109
        $region108: #{tpu_custom_call.1} parent=100 // pred_region
          %s3198 = ssub.s32 16, 16
          %3199 = vsyncadd %s3191, %s3198
          %s3200 = smul.addr %s25, 16
          %s3201 = scalar_lea.hbm %s11, %s3200
          %s3203 = sshll.u32 %s3193, 4
          %s3204 = int_to_ptr.vmem [resolvable:$true] %s3203
          %3206 = dma.vmem_to_hbm [thread:$0]  %s3204, 16, %s3201, %s3191
        $region109: #{tpu_custom_call.1} parent=100 // pred_fallthru
          _
      $region101: #{tpu_custom_call.1} parent=5 // pred_fallthru
        _
      %p3207 = scmp.le.s32.totalorder 2, %s20
      // Predicated region
      $region110: #{tpu_custom_call.1} parent=5 // pred_check
        %p3208 = pneg %p3207
      $region111: #{tpu_custom_call.1} parent=5 // pred_check_branch
        %3210 = sbr.rel (%p3208) target = $region113
      $region112: #{tpu_custom_call.1} parent=5 // pred_region
        %s3211 = ssub.s32 %s20, 2
        // Predicated region
        $region114: #{tpu_custom_call.1} parent=112 // pred_check
          %p3212 = pneg %p285
        $region115: #{tpu_custom_call.1} parent=112 // pred_check_branch
          %3214 = sbr.rel (%p3212) target = $region117
        $region116: #{tpu_custom_call.1} parent=112 // pred_region
          %s3215 = sand.u32 %s270, 1
          %s3216 = scalar_lea.sflag [#allocation4], %s3215
          %s3217 = sand.u32 %s270, 1
          %s3218 = scalar_lea.vmem [#allocation3], %s3217
          %3219 = dma.done %s3216, 16
        $region117: #{tpu_custom_call.1} parent=112 // pred_fallthru
          _
      $region113: #{tpu_custom_call.1} parent=5 // pred_fallthru
        _
    $region6: #{tpu_custom_call.1} parent=1 // loop_footer
      %s24 = sadd.s32 1, %s20
    $region7: #{tpu_custom_call.1} parent=1 // loop_footer_branch
      %19 = sbr.rel target = $region3
    $region8: #{tpu_custom_call.1} parent=1 // loop_exit
      _
    %3220 = vsyncpa [#allocation4], 1
    %s3221 = scalar_lea.sflag [#allocation4], 1
    %3222 = vsyncpa %s3221, 1

// kernel: tpu_custom_call.1
$region0: #{tpu_custom_call.1}
  #allocation0 [shape = 'u32[]', space=smem, size = 0x4, offset = 0x4, fixed_abs, tag = 'smem constant byte address 0x4 - core index']
  #allocation1 [shape = 'u32[144,128]{1,0:T(1,128)}', space=vmem, size = 0x12000, scoped, tag = 'internal scratch']
  %s0 = inlined_call_operand.vmem [shape: bf16[128,256], index: 0, kind: input, shape index: {}]
  %s1 = inlined_call_operand.vmem [shape: bf16[256,128], index: 1, kind: input, shape index: {}]
  %s2 = inlined_call_operand.vmem [shape: f32[256,1], index: 2, kind: input, shape index: {}]
  %s3 = inlined_call_operand.vmem [shape: bf16[256,256], index: 3, kind: input, shape index: {}]
  %s4 = inlined_call_operand.vmem [shape: f32[256,1], index: 4, kind: input, shape index: {}]
  %s5 = inlined_call_operand.vmem [shape: bf16[256,256], index: 5, kind: input, shape index: {}]
  %s6 = inlined_call_operand.vmem [shape: f32[256,1], index: 6, kind: input, shape index: {}]
  %s7 = inlined_call_operand.vmem [shape: bf16[256,256], index: 7, kind: input, shape index: {}]
  %s8 = inlined_call_operand.vmem [shape: f32[256,1], index: 8, kind: input, shape index: {}]
  %s9 = inlined_call_operand.vmem [shape: bf16[8,256], index: 9, kind: input, shape index: {}]
  %s10 = inlined_call_operand.vmem [shape: f32[8,1], index: 10, kind: input, shape index: {}]
  %s11 = inlined_call_operand.hbm [shape: f32[1,256], index: 11, kind: output, shape index: {}]
  %s12 = sld [smem:[#allocation0]]
  $region118: #{tpu_custom_call.1} parent=0
    _
  %s14 = ssub.s32 1, %s12
  %s15 = scalar_select 0, %s14, %s12
  $region1: #{tpu_custom_call.1} parent=0
    #allocation2 [shape = 'u8[65536]{0}', space=vmem, size = 0x10000, scoped, tag = 'input window, operand 0']
    #allocation3 [shape = 'u8[1024]{0}', space=vmem, size = 0x400, scoped, tag = 'output window, operand 0']
    #allocation4 [shape = 's32[2]{0}', space=sflag, size = 0x8, scoped, tag = 'scoped memory for tpu_custom_call.1']
    %16 = vsyncpa [#allocation4], 0
    %s17 = scalar_lea.sflag [#allocation4], 1
    %18 = vsyncpa %s17, 0
    loop: start=0, step=1, limit=4
    $region2: #{tpu_custom_call.1} parent=1 // loop_pre_header
      _
    $region3: #{tpu_custom_call.1} parent=1 // loop_header
      %s20 = sphi 0, %s24
      %p21 = scmp.ge.s32.totalorder %s20, 4
      %s30 = sphi 0, %s32
      %s33 = sphi 0, %s30
      %s34 = sphi 0, %s33
      %s50 = sphi 0, %s34
      %s54 = sphi 0, %s54
      %s56 = sphi 0, %s54
      %s57 = sphi 0, %s56
      %s71 = sphi 0, %s57
      %s75 = sphi 0, %s75
      %s77 = sphi 0, %s75
      %s78 = sphi 0, %s77
      %s92 = sphi 0, %s78
      %s96 = sphi 0, %s96
      %s98 = sphi 0, %s96
      %s99 = sphi 0, %s98
      %s113 = sphi 0, %s99
      %s117 = sphi 0, %s117
      %s119 = sphi 0, %s117
      %s120 = sphi 0, %s119
      %s134 = sphi 0, %s120
      %s138 = sphi 0, %s138
      %s140 = sphi 0, %s138
      %s141 = sphi 0, %s140
      %s155 = sphi 0, %s141
      %s159 = sphi 0, %s159
      %s161 = sphi 0, %s159
      %s162 = sphi 0, %s161
      %s176 = sphi 0, %s162
      %s180 = sphi 0, %s180
      %s182 = sphi 0, %s180
      %s183 = sphi 0, %s182
      %s197 = sphi 0, %s183
      %s201 = sphi 0, %s201
      %s203 = sphi 0, %s201
      %s204 = sphi 0, %s203
      %s218 = sphi 0, %s204
      %s222 = sphi 0, %s222
      %s224 = sphi 0, %s222
      %s225 = sphi 0, %s224
      %s239 = sphi 0, %s225
      %s243 = sphi 0, %s243
      %s245 = sphi 0, %s243
      %s246 = sphi 0, %s245
      %s260 = sphi 0, %s246
      %s266 = sphi 0, %s268
      %s269 = sphi 0, %s266
      %s270 = sphi 0, %s269
      %s286 = sphi 0, %s270
    $region4: #{tpu_custom_call.1} parent=1 // loop_header_branch
      %23 = sbr.rel (%p21) target = $region8
    $region5: #{tpu_custom_call.1} parent=1 // loop_body
      %s25 = ssub.s32 %s20, 1
      %s26 = ssub.s32 %s20, 2
      %s27 = sadd.s32 %s20, 1
      %s28 = ssub.s32 %s20, %s27
      %p29 = scmp.eq.s32.totalorder %s28, 0
      %s31 = sadd.s32 %s30, 1
      %s32 = scalar_select %p29, %s30, %s31
      %p35 = pneg %p29
      %p36 = scmp.eq.s32.totalorder %s20, 1
      %p37 = por %p35, %p36
      %p38 = scmp.ne.s32.totalorder %s30, %s33
      %p39 = scmp.eq.s32.totalorder %s20, 0
      %p40 = por %p38, %p39
      %p41 = scmp.ne.s32.totalorder %s30, %s33
      %p42 = scmp.eq.s32.totalorder %s25, 1
      %p43 = por %p41, %p42
      %p44 = scmp.ne.s32.totalorder %s33, %s34
      %p45 = scmp.eq.s32.totalorder %s25, 0
      %p46 = por %p44, %p45
      %p47 = scmp.ne.s32.totalorder %s33, %s34
      %p48 = scmp.eq.s32.totalorder %s26, 1
      %p49 = por %p47, %p48
      %p51 = scmp.ne.s32.totalorder %s34, %s50
      %p52 = scmp.eq.s32.totalorder %s26, 0
      %p53 = por %p51, %p52
      %s55 = sadd.s32 %s54, 1
      %p58 = scmp.eq.s32.totalorder %s20, 1
      %p59 = scmp.ne.s32.totalorder %s54, %s56
      %p60 = scmp.eq.s32.totalorder %s20, 0
      %p61 = por %p59, %p60
      %p62 = scmp.ne.s32.totalorder %s54, %s56
      %p63 = scmp.eq.s32.totalorder %s25, 1
      %p64 = por %p62, %p63
      %p65 = scmp.ne.s32.totalorder %s56, %s57
      %p66 = scmp.eq.s32.totalorder %s25, 0
      %p67 = por %p65, %p66
      %p68 = scmp.ne.s32.totalorder %s56, %s57
      %p69 = scmp.eq.s32.totalorder %s26, 1
      %p70 = por %p68, %p69
      %p72 = scmp.ne.s32.totalorder %s57, %s71
      %p73 = scmp.eq.s32.totalorder %s26, 0
      %p74 = por %p72, %p73
      %s76 = sadd.s32 %s75, 1
      %p79 = scmp.eq.s32.totalorder %s20, 1
      %p80 = scmp.ne.s32.totalorder %s75, %s77
      %p81 = scmp.eq.s32.totalorder %s20, 0
      %p82 = por %p80, %p81
      %p83 = scmp.ne.s32.totalorder %s75, %s77
      %p84 = scmp.eq.s32.totalorder %s25, 1
      %p85 = por %p83, %p84
      %p86 = scmp.ne.s32.totalorder %s77, %s78
      %p87 = scmp.eq.s32.totalorder %s25, 0
      %p88 = por %p86, %p87
      %p89 = scmp.ne.s32.totalorder %s77, %s78
      %p90 = scmp.eq.s32.totalorder %s26, 1
      %p91 = por %p89, %p90
      %p93 = scmp.ne.s32.totalorder %s78, %s92
      %p94 = scmp.eq.s32.totalorder %s26, 0
      %p95 = por %p93, %p94
      %s97 = sadd.s32 %s96, 1
      %p100 = scmp.eq.s32.totalorder %s20, 1
      %p101 = scmp.ne.s32.totalorder %s96, %s98
      %p102 = scmp.eq.s32.totalorder %s20, 0
      %p103 = por %p101, %p102
      %p104 = scmp.ne.s32.totalorder %s96, %s98
      %p105 = scmp.eq.s32.totalorder %s25, 1
      %p106 = por %p104, %p105
      %p107 = scmp.ne.s32.totalorder %s98, %s99
      %p108 = scmp.eq.s32.totalorder %s25, 0
      %p109 = por %p107, %p108
      %p110 = scmp.ne.s32.totalorder %s98, %s99
      %p111 = scmp.eq.s32.totalorder %s26, 1
      %p112 = por %p110, %p111
      %p114 = scmp.ne.s32.totalorder %s99, %s113
      %p115 = scmp.eq.s32.totalorder %s26, 0
      %p116 = por %p114, %p115
      %s118 = sadd.s32 %s117, 1
      %p121 = scmp.eq.s32.totalorder %s20, 1
      %p122 = scmp.ne.s32.totalorder %s117, %s119
      %p123 = scmp.eq.s32.totalorder %s20, 0
      %p124 = por %p122, %p123
      %p125 = scmp.ne.s32.totalorder %s117, %s119
      %p126 = scmp.eq.s32.totalorder %s25, 1
      %p127 = por %p125, %p126
      %p128 = scmp.ne.s32.totalorder %s119, %s120
      %p129 = scmp.eq.s32.totalorder %s25, 0
      %p130 = por %p128, %p129
      %p131 = scmp.ne.s32.totalorder %s119, %s120
      %p132 = scmp.eq.s32.totalorder %s26, 1
      %p133 = por %p131, %p132
      %p135 = scmp.ne.s32.totalorder %s120, %s134
      %p136 = scmp.eq.s32.totalorder %s26, 0
      %p137 = por %p135, %p136
      %s139 = sadd.s32 %s138, 1
      %p142 = scmp.eq.s32.totalorder %s20, 1
      %p143 = scmp.ne.s32.totalorder %s138, %s140
      %p144 = scmp.eq.s32.totalorder %s20, 0
      %p145 = por %p143, %p144
      %p146 = scmp.ne.s32.totalorder %s138, %s140
      %p147 = scmp.eq.s32.totalorder %s25, 1
      %p148 = por %p146, %p147
      %p149 = scmp.ne.s32.totalorder %s140, %s141
      %p150 = scmp.eq.s32.totalorder %s25, 0
      %p151 = por %p149, %p150
      %p152 = scmp.ne.s32.totalorder %s140, %s141
      %p153 = scmp.eq.s32.totalorder %s26, 1
      %p154 = por %p152, %p153
      %p156 = scmp.ne.s32.totalorder %s141, %s155
      %p157 = scmp.eq.s32.totalorder %s26, 0
      %p158 = por %p156, %p157
      %s160 = sadd.s32 %s159, 1
      %p163 = scmp.eq.s32.totalorder %s20, 1
      %p164 = scmp.ne.s32.totalorder %s159, %s161
      %p165 = scmp.eq.s32.totalorder %s20, 0
      %p166 = por %p164, %p165
      %p167 = scmp.ne.s32.totalorder %s159, %s161
      %p168 = scmp.eq.s32.totalorder %s25, 1
      %p169 = por %p167, %p168
      %p170 = scmp.ne.s32.totalorder %s161, %s162
      %p171 = scmp.eq.s32.totalorder %s25, 0
      %p172 = por %p170, %p171
      %p173 = scmp.ne.s32.totalorder %s161, %s162
      %p174 = scmp.eq.s32.totalorder %s26, 1
      %p175 = por %p173, %p174
      %p177 = scmp.ne.s32.totalorder %s162, %s176
      %p178 = scmp.eq.s32.totalorder %s26, 0
      %p179 = por %p177, %p178
      %s181 = sadd.s32 %s180, 1
      %p184 = scmp.eq.s32.totalorder %s20, 1
      %p185 = scmp.ne.s32.totalorder %s180, %s182
      %p186 = scmp.eq.s32.totalorder %s20, 0
      %p187 = por %p185, %p186
      %p188 = scmp.ne.s32.totalorder %s180, %s182
      %p189 = scmp.eq.s32.totalorder %s25, 1
      %p190 = por %p188, %p189
      %p191 = scmp.ne.s32.totalorder %s182, %s183
      %p192 = scmp.eq.s32.totalorder %s25, 0
      %p193 = por %p191, %p192
      %p194 = scmp.ne.s32.totalorder %s182, %s183
      %p195 = scmp.eq.s32.totalorder %s26, 1
      %p196 = por %p194, %p195
      %p198 = scmp.ne.s32.totalorder %s183, %s197
      %p199 = scmp.eq.s32.totalorder %s26, 0
      %p200 = por %p198, %p199
      %s202 = sadd.s32 %s201, 1
      %p205 = scmp.eq.s32.totalorder %s20, 1
      %p206 = scmp.ne.s32.totalorder %s201, %s203
      %p207 = scmp.eq.s32.totalorder %s20, 0
      %p208 = por %p206, %p207
      %p209 = scmp.ne.s32.totalorder %s201, %s203
      %p210 = scmp.eq.s32.totalorder %s25, 1
      %p211 = por %p209, %p210
      %p212 = scmp.ne.s32.totalorder %s203, %s204
      %p213 = scmp.eq.s32.totalorder %s25, 0
      %p214 = por %p212, %p213
      %p215 = scmp.ne.s32.totalorder %s203, %s204
      %p216 = scmp.eq.s32.totalorder %s26, 1
      %p217 = por %p215, %p216
      %p219 = scmp.ne.s32.totalorder %s204, %s218
      %p220 = scmp.eq.s32.totalorder %s26, 0
      %p221 = por %p219, %p220
      %s223 = sadd.s32 %s222, 1
      %p226 = scmp.eq.s32.totalorder %s20, 1
      %p227 = scmp.ne.s32.totalorder %s222, %s224
      %p228 = scmp.eq.s32.totalorder %s20, 0
      %p229 = por %p227, %p228
      %p230 = scmp.ne.s32.totalorder %s222, %s224
      %p231 = scmp.eq.s32.totalorder %s25, 1
      %p232 = por %p230, %p231
      %p233 = scmp.ne.s32.totalorder %s224, %s225
      %p234 = scmp.eq.s32.totalorder %s25, 0
      %p235 = por %p233, %p234
      %p236 = scmp.ne.s32.totalorder %s224, %s225
      %p237 = scmp.eq.s32.totalorder %s26, 1
      %p238 = por %p236, %p237
      %p240 = scmp.ne.s32.totalorder %s225, %s239
      %p241 = scmp.eq.s32.totalorder %s26, 0
      %p242 = por %p240, %p241
      %s244 = sadd.s32 %s243, 1
      %p247 = scmp.eq.s32.totalorder %s20, 1
      %p248 = scmp.ne.s32.totalorder %s243, %s245
      %p249 = scmp.eq.s32.totalorder %s20, 0
      %p250 = por %p248, %p249
      %p251 = scmp.ne.s32.totalorder %s243, %s245
      %p252 = scmp.eq.s32.totalorder %s25, 1
      %p253 = por %p251, %p252
      %p254 = scmp.ne.s32.totalorder %s245, %s246
      %p255 = scmp.eq.s32.totalorder %s25, 0
      %p256 = por %p254, %p255
      %p257 = scmp.ne.s32.totalorder %s245, %s246
      %p258 = scmp.eq.s32.totalorder %s26, 1
      %p259 = por %p257, %p258
      %p261 = scmp.ne.s32.totalorder %s246, %s260
      %p262 = scmp.eq.s32.totalorder %s26, 0
      %p263 = por %p261, %p262
      %s264 = ssub.s32 %s20, %s27
      %p265 = scmp.eq.s32.totalorder %s264, 0
      %s267 = sadd.s32 %s266, 1
      %s268 = scalar_select %p265, %s266, %s267
      %p271 = pneg %p265
      %p272 = scmp.eq.s32.totalorder %s20, 1
      %p273 = por %p271, %p272
      %p274 = scmp.ne.s32.totalorder %s266, %s269
      %p275 = scmp.eq.s32.totalorder %s20, 0
      %p276 = por %p274, %p275
      %p277 = scmp.ne.s32.totalorder %s266, %s269
      %p278 = scmp.eq.s32.totalorder %s25, 1
      %p279 = por %p277, %p278
      %p280 = scmp.ne.s32.totalorder %s269, %s270
      %p281 = scmp.eq.s32.totalorder %s25, 0
      %p282 = por %p280, %p281
      %p283 = scmp.ne.s32.totalorder %s269, %s270
      %p284 = scmp.eq.s32.totalorder %s26, 1
      %p285 = por %p283, %p284
      %p287 = scmp.ne.s32.totalorder %s270, %s286
      %p288 = scmp.eq.s32.totalorder %s26, 0
      %p289 = por %p287, %p288
      %p290 = scmp.le.s32.totalorder 1, %s20
      %p291 = scmp.lt.s32.totalorder %s20, 3
      %p292 = pnand %p290, %p291
      %p293 = pneg %p292
      // Predicated region
      $region9: #{tpu_custom_call.1} parent=5 // pred_check
        _
      $region10: #{tpu_custom_call.1} parent=5 // pred_check_branch
        %295 = sbr.rel (%p292) target = $region12
      $region11: #{tpu_custom_call.1} parent=5 // pred_region
        %s296 = ssub.s32 %s20, 1
        // Predicated region
        $region13: #{tpu_custom_call.1} parent=11 // pred_check
          %p297 = pneg %p67
        $region14: #{tpu_custom_call.1} parent=11 // pred_check_branch
          %299 = sbr.rel (%p297) target = $region16
        $region15: #{tpu_custom_call.1} parent=11 // pred_region
          _
        $region16: #{tpu_custom_call.1} parent=11 // pred_fallthru
          _
        // Predicated region
        $region17: #{tpu_custom_call.1} parent=11 // pred_check
          %p300 = pneg %p88
        $region18: #{tpu_custom_call.1} parent=11 // pred_check_branch
          %302 = sbr.rel (%p300) target = $region20
        $region19: #{tpu_custom_call.1} parent=11 // pred_region
          _
        $region20: #{tpu_custom_call.1} parent=11 // pred_fallthru
          _
        // Predicated region
        $region21: #{tpu_custom_call.1} parent=11 // pred_check
          %p303 = pneg %p109
        $region22: #{tpu_custom_call.1} parent=11 // pred_check_branch
          %305 = sbr.rel (%p303) target = $region24
        $region23: #{tpu_custom_call.1} parent=11 // pred_region
          _
        $region24: #{tpu_custom_call.1} parent=11 // pred_fallthru
          _
        // Predicated region
        $region25: #{tpu_custom_call.1} parent=11 // pred_check
          %p306 = pneg %p130
        $region26: #{tpu_custom_call.1} parent=11 // pred_check_branch
          %308 = sbr.rel (%p306) target = $region28
        $region27: #{tpu_custom_call.1} parent=11 // pred_region
          _
        $region28: #{tpu_custom_call.1} parent=11 // pred_fallthru
          _
        // Predicated region
        $region29: #{tpu_custom_call.1} parent=11 // pred_check
          %p309 = pneg %p151
        $region30: #{tpu_custom_call.1} parent=11 // pred_check_branch
          %311 = sbr.rel (%p309) target = $region32
        $region31: #{tpu_custom_call.1} parent=11 // pred_region
          _
        $region32: #{tpu_custom_call.1} parent=11 // pred_fallthru
          _
        // Predicated region
        $region33: #{tpu_custom_call.1} parent=11 // pred_check
          %p312 = pneg %p172
        $region34: #{tpu_custom_call.1} parent=11 // pred_check_branch
          %314 = sbr.rel (%p312) target = $region36
        $region35: #{tpu_custom_call.1} parent=11 // pred_region
          _
        $region36: #{tpu_custom_call.1} parent=11 // pred_fallthru
          _
        // Predicated region
        $region37: #{tpu_custom_call.1} parent=11 // pred_check
          %p315 = pneg %p193
        $region38: #{tpu_custom_call.1} parent=11 // pred_check_branch
          %317 = sbr.rel (%p315) target = $region40
        $region39: #{tpu_custom_call.1} parent=11 // pred_region
          _
        $region40: #{tpu_custom_call.1} parent=11 // pred_fallthru
          _
        // Predicated region
        $region41: #{tpu_custom_call.1} parent=11 // pred_check
          %p318 = pneg %p214
        $region42: #{tpu_custom_call.1} parent=11 // pred_check_branch
          %320 = sbr.rel (%p318) target = $region44
        $region43: #{tpu_custom_call.1} parent=11 // pred_region
          _
        $region44: #{tpu_custom_call.1} parent=11 // pred_fallthru
          _
        // Predicated region
        $region45: #{tpu_custom_call.1} parent=11 // pred_check
          %p321 = pneg %p235
        $region46: #{tpu_custom_call.1} parent=11 // pred_check_branch
          %323 = sbr.rel (%p321) target = $region48
        $region47: #{tpu_custom_call.1} parent=11 // pred_region
          _
        $region48: #{tpu_custom_call.1} parent=11 // pred_fallthru
          _
        // Predicated region
        $region49: #{tpu_custom_call.1} parent=11 // pred_check
          %p324 = pneg %p256
        $region50: #{tpu_custom_call.1} parent=11 // pred_check_branch
          %326 = sbr.rel (%p324) target = $region52
        $region51: #{tpu_custom_call.1} parent=11 // pred_region
          _
        $region52: #{tpu_custom_call.1} parent=11 // pred_fallthru
          _
      $region12: #{tpu_custom_call.1} parent=5 // pred_fallthru
        _
      %p327 = scmp.lt.s32.totalorder %s20, 2
      // Predicated region
      $region53: #{tpu_custom_call.1} parent=5 // pred_check
        %p328 = pneg %p327
      $region54: #{tpu_custom_call.1} parent=5 // pred_check_branch
        %330 = sbr.rel (%p328) target = $region56
      $region55: #{tpu_custom_call.1} parent=5 // pred_region
        // Predicated region
        $region57: #{tpu_custom_call.1} parent=55 // pred_check
          %p331 = pneg %p40
        $region58: #{tpu_custom_call.1} parent=55 // pred_check_branch
          %333 = sbr.rel (%p331) target = $region60
        $region59: #{tpu_custom_call.1} parent=55 // pred_region
          %s334 = sand.u32 %s30, 1
          %s335 = sand.u32 %s30, 1
          %s336 = smul.addr %s335, 64
          %s337 = scalar_lea.vmem [#allocation2], %s336
          %s338 = smul.addr %s20, 4
          %s339 = scalar_lea.vmem %s0, %s338
          // Predicated region
          $region61: #{tpu_custom_call.1} parent=59 // pred_check
            _
          $region62: #{tpu_custom_call.1} parent=59 // pred_check_branch
            %341 = sbr.rel (0) target = $region64
          $region63: #{tpu_custom_call.1} parent=59 // pred_region
            // Predicated region
            $region65: #{tpu_custom_call.1} parent=63 // pred_check
              _
            $region66: #{tpu_custom_call.1} parent=63 // pred_check_branch
              %343 = sbr.rel target = $region68
            $region67: #{tpu_custom_call.1} parent=63 // pred_region
              // Predicated region
              $region80: #{tpu_custom_call.1} parent=67 // pred_check
                _
              $region81: #{tpu_custom_call.1} parent=67 // pred_check_branch
                %388 = sbr.rel (0) target = $region83
              $region82: #{tpu_custom_call.1} parent=67 // pred_region
                loop: start=0, step=1, limit=1
                $region84: #{tpu_custom_call.1} parent=82 // loop_pre_header
                  _
                $region85: #{tpu_custom_call.1} parent=82 // loop_header
                  %s390 = sphi 0, %s394
                  %p391 = scmp.ge.s32.totalorder %s390, 1
                  %s395 = sphi %s339, %s339
                  %s396 = sphi %s337, %s337
                $region86: #{tpu_custom_call.1} parent=82 // loop_header_branch
                  %393 = sbr.rel (%p391) target = $region90
                $region87: #{tpu_custom_call.1} parent=82 // loop_body
                  _
                $region88: #{tpu_custom_call.1} parent=82 // loop_footer
                  %s394 = sadd.s32 1, %s390
                $region89: #{tpu_custom_call.1} parent=82 // loop_footer_branch
                  %389 = sbr.rel target = $region85
                $region90: #{tpu_custom_call.1} parent=82 // loop_exit
                  _
                loop: start=0, step=1, limit=1
                $region91: #{tpu_custom_call.1} parent=82 // loop_pre_header
                  _
                $region92: #{tpu_custom_call.1} parent=82 // loop_header
                  %s399 = sphi 0, %s403
                  %p400 = scmp.ge.s32.totalorder %s399, 1
                  %s404 = sphi %s339, %s339
                  %s405 = sphi %s337, %s337
                $region93: #{tpu_custom_call.1} parent=82 // loop_header_branch
                  %402 = sbr.rel (%p400) target = $region97
                $region94: #{tpu_custom_call.1} parent=82 // loop_body
                  %v406 = vld [vmem:[%s404] sm:$0xf]
                  %407 = vst [vmem:[%s405] sm:$0xf] %v406
                  %v408 = vld [vmem:[%s404 + $0x8] sm:$0xf]
                  %409 = vst [vmem:[%s405 + $0x4] sm:$0xf] %v408
                  %v410 = vld [vmem:[%s404 + $0x10] sm:$0xf]
                  %411 = vst [vmem:[%s405 + $0x8] sm:$0xf] %v410
                  %v412 = vld [vmem:[%s404 + $0x18] sm:$0xf]
                  %413 = vst [vmem:[%s405 + $0xc] sm:$0xf] %v412
                  %v414 = vld [vmem:[%s404 + $0x20] sm:$0xf]
                  %415 = vst [vmem:[%s405 + $0x10] sm:$0xf] %v414
                  %v416 = vld [vmem:[%s404 + $0x28] sm:$0xf]
                  %417 = vst [vmem:[%s405 + $0x14] sm:$0xf] %v416
                  %v418 = vld [vmem:[%s404 + $0x30] sm:$0xf]
                  %419 = vst [vmem:[%s405 + $0x18] sm:$0xf] %v418
                  %v420 = vld [vmem:[%s404 + $0x38] sm:$0xf]
                  %421 = vst [vmem:[%s405 + $0x1c] sm:$0xf] %v420
                  %v422 = vld [vmem:[%s404 + $0x40] sm:$0xf]
                  %423 = vst [vmem:[%s405 + $0x20] sm:$0xf] %v422
                  %v424 = vld [vmem:[%s404 + $0x48] sm:$0xf]
                  %425 = vst [vmem:[%s405 + $0x24] sm:$0xf] %v424
                  %v426 = vld [vmem:[%s404 + $0x50] sm:$0xf]
                  %427 = vst [vmem:[%s405 + $0x28] sm:$0xf] %v426
                  %v428 = vld [vmem:[%s404 + $0x58] sm:$0xf]
                  %429 = vst [vmem:[%s405 + $0x2c] sm:$0xf] %v428
                  %v430 = vld [vmem:[%s404 + $0x60] sm:$0xf]
                  %431 = vst [vmem:[%s405 + $0x30] sm:$0xf] %v430
                  %v432 = vld [vmem:[%s404 + $0x68] sm:$0xf]
                  %433 = vst [vmem:[%s405 + $0x34] sm:$0xf] %v432
                  %v434 = vld [vmem:[%s404 + $0x70] sm:$0xf]
                  %435 = vst [vmem:[%s405 + $0x38] sm:$0xf] %v434
                  %v436 = vld [vmem:[%s404 + $0x78] sm:$0xf]
                  %437 = vst [vmem:[%s405 + $0x3c] sm:$0xf] %v436
                $region95: #{tpu_custom_call.1} parent=82 // loop_footer
                  %s403 = sadd.s32 1, %s399
                $region96: #{tpu_custom_call.1} parent=82 // loop_footer_branch
                  %398 = sbr.rel target = $region92
                $region97: #{tpu_custom_call.1} parent=82 // loop_exit
                  _
              $region83: #{tpu_custom_call.1} parent=67 // pred_fallthru
                _
            $region68: #{tpu_custom_call.1} parent=63 // pred_fallthru
              _
            // Predicated region
            $region69: #{tpu_custom_call.1} parent=63 // pred_check
              _
            $region70: #{tpu_custom_call.1} parent=63 // pred_check_branch
              %345 = sbr.rel (0) target = $region72
            $region71: #{tpu_custom_call.1} parent=63 // pred_region
              loop: start=0, step=1, limit=1
              $region73: #{tpu_custom_call.1} parent=71 // loop_pre_header
                _
              $region74: #{tpu_custom_call.1} parent=71 // loop_header
                %s348 = sphi 0, %s352
                %p349 = scmp.ge.s32.totalorder %s348, 1
                %s353 = sphi %s339, %s339
                %s354 = sphi %s337, %s337
              $region75: #{tpu_custom_call.1} parent=71 // loop_header_branch
                %351 = sbr.rel (%p349) target = $region79
              $region76: #{tpu_custom_call.1} parent=71 // loop_body
                %v355 = vld [vmem:[%s353] sm:$0xf]
                %356 = vst [vmem:[%s354] sm:$0xf] %v355
                %v357 = vld [vmem:[%s353 + $0x8] sm:$0xf]
                %358 = vst [vmem:[%s354 + $0x4] sm:$0xf] %v357
                %v359 = vld [vmem:[%s353 + $0x10] sm:$0xf]
                %360 = vst [vmem:[%s354 + $0x8] sm:$0xf] %v359
                %v361 = vld [vmem:[%s353 + $0x18] sm:$0xf]
                %362 = vst [vmem:[%s354 + $0xc] sm:$0xf] %v361
                %v363 = vld [vmem:[%s353 + $0x20] sm:$0xf]
                %364 = vst [vmem:[%s354 + $0x10] sm:$0xf] %v363
                %v365 = vld [vmem:[%s353 + $0x28] sm:$0xf]
                %366 = vst [vmem:[%s354 + $0x14] sm:$0xf] %v365
                %v367 = vld [vmem:[%s353 + $0x30] sm:$0xf]
                %368 = vst [vmem:[%s354 + $0x18] sm:$0xf] %v367
                %v369 = vld [vmem:[%s353 + $0x38] sm:$0xf]
                %370 = vst [vmem:[%s354 + $0x1c] sm:$0xf] %v369
                %v371 = vld [vmem:[%s353 + $0x40] sm:$0xf]
                %372 = vst [vmem:[%s354 + $0x20] sm:$0xf] %v371
                %v373 = vld [vmem:[%s353 + $0x48] sm:$0xf]
                %374 = vst [vmem:[%s354 + $0x24] sm:$0xf] %v373
                %v375 = vld [vmem:[%s353 + $0x50] sm:$0xf]
                %376 = vst [vmem:[%s354 + $0x28] sm:$0xf] %v375
                %v377 = vld [vmem:[%s353 + $0x58] sm:$0xf]
                %378 = vst [vmem:[%s354 + $0x2c] sm:$0xf] %v377
                %v379 = vld [vmem:[%s353 + $0x60] sm:$0xf]
                %380 = vst [vmem:[%s354 + $0x30] sm:$0xf] %v379
                %v381 = vld [vmem:[%s353 + $0x68] sm:$0xf]
                %382 = vst [vmem:[%s354 + $0x34] sm:$0xf] %v381
                %v383 = vld [vmem:[%s353 + $0x70] sm:$0xf]
                %384 = vst [vmem:[%s354 + $0x38] sm:$0xf] %v383
                %v385 = vld [vmem:[%s353 + $0x78] sm:$0xf]
                %386 = vst [vmem:[%s354 + $0x3c] sm:$0xf] %v385
              $region77: #{tpu_custom_call.1} parent=71 // loop_footer
                %s352 = sadd.s32 1, %s348
              $region78: #{tpu_custom_call.1} parent=71 // loop_footer_branch
                %347 = sbr.rel target = $region74
              $region79: #{tpu_custom_call.1} parent=71 // loop_exit
                _
            $region72: #{tpu_custom_call.1} parent=63 // pred_fallthru
              _
          $region64: #{tpu_custom_call.1} parent=59 // pred_fallthru
            _
          %438 = vnop
        $region60: #{tpu_custom_call.1} parent=55 // pred_fallthru
          _
      $region56: #{tpu_custom_call.1} parent=5 // pred_fallthru
        _
      %p439 = scmp.le.s32.totalorder 1, %s20
      %p440 = scmp.lt.s32.totalorder %s20, 3
      %p441 = pnand %p439, %p440
      %p442 = pneg %p441
      // Predicated region
      $region98: #{tpu_custom_call.1} parent=5 // pred_check
        _
      $region99: #{tpu_custom_call.1} parent=5 // pred_check_branch
        %444 = sbr.rel (%p441) target = $region101
      $region100: #{tpu_custom_call.1} parent=5 // pred_region
        %s445 = ssub.s32 %s20, 1
        %s446 = sand.u32 %s33, 1
        %s447 = sand.u32 %s33, 1
        %s448 = smul.addr %s447, 64
        %s449 = scalar_lea.vmem [#allocation2], %s448
        // Predicated region
        $region102: #{tpu_custom_call.1} parent=100 // pred_check
          %p450 = pneg %p46
        $region103: #{tpu_custom_call.1} parent=100 // pred_check_branch
          %452 = sbr.rel (%p450) target = $region105
        $region104: #{tpu_custom_call.1} parent=100 // pred_region
          _
        $region105: #{tpu_custom_call.1} parent=100 // pred_fallthru
          _
        %s453 = sand.u32 %s33, 1
        %s454 = sand.u32 %s33, 1
        %s455 = smul.addr %s454, 64
        %s456 = scalar_lea.vmem [#allocation2], %s455
        %p457 = pneg %p46
        %p458 = pneg %p43
        %p459 = pneg %p67
        %p460 = pneg %p64
        %p461 = pneg %p88
        %p462 = pneg %p85
        %p463 = pneg %p109
        %p464 = pneg %p106
        %p465 = pneg %p130
        %p466 = pneg %p127
        %p467 = pneg %p151
        %p468 = pneg %p148
        %p469 = pneg %p172
        %p470 = pneg %p169
        %p471 = pneg %p193
        %p472 = pneg %p190
        %p473 = pneg %p214
        %p474 = pneg %p211
        %p475 = pneg %p235
        %p476 = pneg %p232
        %p477 = pneg %p256
        %p478 = pneg %p253
        %p479 = pneg %p282
        %p480 = pneg %p279
        %s481 = sand.u32 %s269, 1
        %s482 = scalar_lea.sflag [#allocation4], %s481
        %s483 = sand.u32 %s269, 1
        %s484 = scalar_lea.vmem [#allocation3], %s483
        %v486 = vld [vmem:[%s1] sm:$0xf]
        %v487 = vld [vmem:[%s1 + $0x4] sm:$0xf]
        %v488 = vld [vmem:[%s1 + $0x8] sm:$0xf]
        %v489 = vld [vmem:[%s1 + $0xc] sm:$0xf]
        %v490 = vld [vmem:[%s1 + $0x10] sm:$0xf]
        %v491 = vld [vmem:[%s1 + $0x14] sm:$0xf]
        %v492 = vld [vmem:[%s1 + $0x18] sm:$0xf]
        %v493 = vld [vmem:[%s1 + $0x1c] sm:$0xf]
        %v494 = vld [vmem:[%s1 + $0x20] sm:$0xf]
        %v495 = vld [vmem:[%s1 + $0x24] sm:$0xf]
        %v496 = vld [vmem:[%s1 + $0x28] sm:$0xf]
        %v497 = vld [vmem:[%s1 + $0x2c] sm:$0xf]
        %v498 = vld [vmem:[%s1 + $0x30] sm:$0xf]
        %v499 = vld [vmem:[%s1 + $0x34] sm:$0xf]
        %v500 = vld [vmem:[%s1 + $0x38] sm:$0xf]
        %v501 = vld [vmem:[%s1 + $0x3c] sm:$0xf]
        %v502 = vld [vmem:[%s1 + $0x40] sm:$0xf]
        %v503 = vld [vmem:[%s1 + $0x44] sm:$0xf]
        %v504 = vld [vmem:[%s1 + $0x48] sm:$0xf]
        %v505 = vld [vmem:[%s1 + $0x4c] sm:$0xf]
        %v506 = vld [vmem:[%s1 + $0x50] sm:$0xf]
        %v507 = vld [vmem:[%s1 + $0x54] sm:$0xf]
        %v508 = vld [vmem:[%s1 + $0x58] sm:$0xf]
        %v509 = vld [vmem:[%s1 + $0x5c] sm:$0xf]
        %v510 = vld [vmem:[%s1 + $0x60] sm:$0xf]
        %v511 = vld [vmem:[%s1 + $0x64] sm:$0xf]
        %v512 = vld [vmem:[%s1 + $0x68] sm:$0xf]
        %v513 = vld [vmem:[%s1 + $0x6c] sm:$0xf]
        %v514 = vld [vmem:[%s1 + $0x70] sm:$0xf]
        %v515 = vld [vmem:[%s1 + $0x74] sm:$0xf]
        %v516 = vld [vmem:[%s1 + $0x78] sm:$0xf]
        %v517 = vld [vmem:[%s1 + $0x7c] sm:$0xf]
        %v518 = vld [vmem:[%s449] sm:$0xf]
        %v519 = vld [vmem:[%s449 + $0x4] sm:$0xf]
        %v520 = vld [vmem:[%s449 + $0x8] sm:$0xf]
        %v521 = vld [vmem:[%s449 + $0xc] sm:$0xf]
        %v522 = vld [vmem:[%s449 + $0x10] sm:$0xf]
        %v523 = vld [vmem:[%s449 + $0x14] sm:$0xf]
        %v524 = vld [vmem:[%s449 + $0x18] sm:$0xf]
        %v525 = vld [vmem:[%s449 + $0x1c] sm:$0xf]
        %v526 = vld [vmem:[%s449 + $0x20] sm:$0xf]
        %v527 = vld [vmem:[%s449 + $0x24] sm:$0xf]
        %v528 = vld [vmem:[%s449 + $0x28] sm:$0xf]
        %v529 = vld [vmem:[%s449 + $0x2c] sm:$0xf]
        %v530 = vld [vmem:[%s449 + $0x30] sm:$0xf]
        %v531 = vld [vmem:[%s449 + $0x34] sm:$0xf]
        %v532 = vld [vmem:[%s449 + $0x38] sm:$0xf]
        %v533 = vld [vmem:[%s449 + $0x3c] sm:$0xf]
        %v534 = vld [vmem:[%s2] sm:$0xff]
        %v535 = vld [vmem:[%s2 + $0x8] sm:$0xff]
        %v536 = vld [vmem:[%s2 + $0x10] sm:$0xff]
        %v537 = vld [vmem:[%s2 + $0x18] sm:$0xff]
        %v538 = vld [vmem:[%s2 + $0x20] sm:$0xff]
        %v539 = vld [vmem:[%s2 + $0x28] sm:$0xff]
        %v540 = vld [vmem:[%s2 + $0x30] sm:$0xff]
        %v541 = vld [vmem:[%s2 + $0x38] sm:$0xff]
        %v542 = vld [vmem:[%s2 + $0x40] sm:$0xff]
        %v543 = vld [vmem:[%s2 + $0x48] sm:$0xff]
        %v544 = vld [vmem:[%s2 + $0x50] sm:$0xff]
        %v545 = vld [vmem:[%s2 + $0x58] sm:$0xff]
        %v546 = vld [vmem:[%s2 + $0x60] sm:$0xff]
        %v547 = vld [vmem:[%s2 + $0x68] sm:$0xff]
        %v548 = vld [vmem:[%s2 + $0x70] sm:$0xff]
        %v549 = vld [vmem:[%s2 + $0x78] sm:$0xff]
        %v550 = vld [vmem:[%s2 + $0x80] sm:$0xff]
        %v551 = vld [vmem:[%s2 + $0x88] sm:$0xff]
        %v552 = vld [vmem:[%s2 + $0x90] sm:$0xff]
        %v553 = vld [vmem:[%s2 + $0x98] sm:$0xff]
        %v554 = vld [vmem:[%s2 + $0xa0] sm:$0xff]
        %v555 = vld [vmem:[%s2 + $0xa8] sm:$0xff]
        %v556 = vld [vmem:[%s2 + $0xb0] sm:$0xff]
        %v557 = vld [vmem:[%s2 + $0xb8] sm:$0xff]
        %v558 = vld [vmem:[%s2 + $0xc0] sm:$0xff]
        %v559 = vld [vmem:[%s2 + $0xc8] sm:$0xff]
        %v560 = vld [vmem:[%s2 + $0xd0] sm:$0xff]
        %v561 = vld [vmem:[%s2 + $0xd8] sm:$0xff]
        %v562 = vld [vmem:[%s2 + $0xe0] sm:$0xff]
        %v563 = vld [vmem:[%s2 + $0xe8] sm:$0xff]
        %v564 = vld [vmem:[%s2 + $0xf0] sm:$0xff]
        %v565 = vld [vmem:[%s2 + $0xf8] sm:$0xff]
        %567 = vset.pattern.permute.xlu0 0
        %568 = vperm.xlu0 %567, %v534
        %v569 = vpop.permute.xlu0 %568
        %572 = vset.pattern.permute.xlu0 0
        %573 = vperm.xlu0 %572, %v535
        %v574 = vpop.permute.xlu0 %573
        %577 = vset.pattern.permute.xlu0 0
        %578 = vperm.xlu0 %577, %v536
        %v579 = vpop.permute.xlu0 %578
        %582 = vset.pattern.permute.xlu0 0
        %583 = vperm.xlu0 %582, %v537
        %v584 = vpop.permute.xlu0 %583
        %587 = vset.pattern.permute.xlu0 0
        %588 = vperm.xlu0 %587, %v538
        %v589 = vpop.permute.xlu0 %588
        %592 = vset.pattern.permute.xlu0 0
        %593 = vperm.xlu0 %592, %v539
        %v594 = vpop.permute.xlu0 %593
        %597 = vset.pattern.permute.xlu0 0
        %598 = vperm.xlu0 %597, %v540
        %v599 = vpop.permute.xlu0 %598
        %602 = vset.pattern.permute.xlu0 0
        %603 = vperm.xlu0 %602, %v541
        %v604 = vpop.permute.xlu0 %603
        %607 = vset.pattern.permute.xlu0 0
        %608 = vperm.xlu0 %607, %v542
        %v609 = vpop.permute.xlu0 %608
        %612 = vset.pattern.permute.xlu0 0
        %613 = vperm.xlu0 %612, %v543
        %v614 = vpop.permute.xlu0 %613
        %617 = vset.pattern.permute.xlu0 0
        %618 = vperm.xlu0 %617, %v544
        %v619 = vpop.permute.xlu0 %618
        %622 = vset.pattern.permute.xlu0 0
        %623 = vperm.xlu0 %622, %v545
        %v624 = vpop.permute.xlu0 %623
        %627 = vset.pattern.permute.xlu0 0
        %628 = vperm.xlu0 %627, %v546
        %v629 = vpop.permute.xlu0 %628
        %632 = vset.pattern.permute.xlu0 0
        %633 = vperm.xlu0 %632, %v547
        %v634 = vpop.permute.xlu0 %633
        %637 = vset.pattern.permute.xlu0 0
        %638 = vperm.xlu0 %637, %v548
        %v639 = vpop.permute.xlu0 %638
        %642 = vset.pattern.permute.xlu0 0
        %643 = vperm.xlu0 %642, %v549
        %v644 = vpop.permute.xlu0 %643
        %647 = vset.pattern.permute.xlu0 0
        %648 = vperm.xlu0 %647, %v550
        %v649 = vpop.permute.xlu0 %648
        %652 = vset.pattern.permute.xlu0 0
        %653 = vperm.xlu0 %652, %v551
        %v654 = vpop.permute.xlu0 %653
        %657 = vset.pattern.permute.xlu0 0
        %658 = vperm.xlu0 %657, %v552
        %v659 = vpop.permute.xlu0 %658
        %662 = vset.pattern.permute.xlu0 0
        %663 = vperm.xlu0 %662, %v553
        %v664 = vpop.permute.xlu0 %663
        %667 = vset.pattern.permute.xlu0 0
        %668 = vperm.xlu0 %667, %v554
        %v669 = vpop.permute.xlu0 %668
        %672 = vset.pattern.permute.xlu0 0
        %673 = vperm.xlu0 %672, %v555
        %v674 = vpop.permute.xlu0 %673
        %677 = vset.pattern.permute.xlu0 0
        %678 = vperm.xlu0 %677, %v556
        %v679 = vpop.permute.xlu0 %678
        %682 = vset.pattern.permute.xlu0 0
        %683 = vperm.xlu0 %682, %v557
        %v684 = vpop.permute.xlu0 %683
        %687 = vset.pattern.permute.xlu0 0
        %688 = vperm.xlu0 %687, %v558
        %v689 = vpop.permute.xlu0 %688
        %692 = vset.pattern.permute.xlu0 0
        %693 = vperm.xlu0 %692, %v559
        %v694 = vpop.permute.xlu0 %693
        %697 = vset.pattern.permute.xlu0 0
        %698 = vperm.xlu0 %697, %v560
        %v699 = vpop.permute.xlu0 %698
        %702 = vset.pattern.permute.xlu0 0
        %703 = vperm.xlu0 %702, %v561
        %v704 = vpop.permute.xlu0 %703
        %707 = vset.pattern.permute.xlu0 0
        %708 = vperm.xlu0 %707, %v562
        %v709 = vpop.permute.xlu0 %708
        %712 = vset.pattern.permute.xlu0 0
        %713 = vperm.xlu0 %712, %v563
        %v714 = vpop.permute.xlu0 %713
        %717 = vset.pattern.permute.xlu0 0
        %718 = vperm.xlu0 %717, %v564
        %v719 = vpop.permute.xlu0 %718
        %722 = vset.pattern.permute.xlu0 0
        %723 = vperm.xlu0 %722, %v565
        %v724 = vpop.permute.xlu0 %723
        %v758 = vunpack.c.l.b16 %v486
        %v759 = vunpack.c.l.b16 %v487
        %v760 = vunpack.c.l.b16 %v488
        %v761 = vunpack.c.l.b16 %v489
        %v762 = vunpack.c.l.b16 %v490
        %v763 = vunpack.c.l.b16 %v491
        %v764 = vunpack.c.l.b16 %v492
        %v765 = vunpack.c.l.b16 %v493
        %v766 = vunpack.c.l.b16 %v494
        %v767 = vunpack.c.l.b16 %v495
        %v768 = vunpack.c.l.b16 %v496
        %v769 = vunpack.c.l.b16 %v497
        %v770 = vunpack.c.l.b16 %v498
        %v771 = vunpack.c.l.b16 %v499
        %v772 = vunpack.c.l.b16 %v500
        %v773 = vunpack.c.l.b16 %v501
        %v774 = vunpack.c.l.b16 %v502
        %v775 = vunpack.c.l.b16 %v503
        %v776 = vunpack.c.l.b16 %v504
        %v777 = vunpack.c.l.b16 %v505
        %v778 = vunpack.c.l.b16 %v506
        %v779 = vunpack.c.l.b16 %v507
        %v780 = vunpack.c.l.b16 %v508
        %v781 = vunpack.c.l.b16 %v509
        %v782 = vunpack.c.l.b16 %v510
        %v783 = vunpack.c.l.b16 %v511
        %v784 = vunpack.c.l.b16 %v512
        %v785 = vunpack.c.l.b16 %v513
        %v786 = vunpack.c.l.b16 %v514
        %v787 = vunpack.c.l.b16 %v515
        %v788 = vunpack.c.l.b16 %v516
        %v789 = vunpack.c.l.b16 %v517
        %v790 = vpack.c.b16 %v759, %v758
        %v791 = vpack.c.b16 %v761, %v760
        %v792 = vpack.c.b16 %v763, %v762
        %v793 = vpack.c.b16 %v765, %v764
        %v794 = vpack.c.b16 %v767, %v766
        %v795 = vpack.c.b16 %v769, %v768
        %v796 = vpack.c.b16 %v771, %v770
        %v797 = vpack.c.b16 %v773, %v772
        %v798 = vpack.c.b16 %v775, %v774
        %v799 = vpack.c.b16 %v777, %v776
        %v800 = vpack.c.b16 %v779, %v778
        %v801 = vpack.c.b16 %v781, %v780
        %v802 = vpack.c.b16 %v783, %v782
        %v803 = vpack.c.b16 %v785, %v784
        %v804 = vpack.c.b16 %v787, %v786
        %v805 = vpack.c.b16 %v789, %v788
        %v838 = vunpack.c.l.b16 %v518
        %v839 = vunpack.c.l.b16 %v519
        %v840 = vunpack.c.l.b16 %v520
        %v841 = vunpack.c.l.b16 %v521
        %v842 = vunpack.c.l.b16 %v522
        %v843 = vunpack.c.l.b16 %v523
        %v844 = vunpack.c.l.b16 %v524
        %v845 = vunpack.c.l.b16 %v525
        %v846 = vunpack.c.l.b16 %v526
        %v847 = vunpack.c.l.b16 %v527
        %v848 = vunpack.c.l.b16 %v528
        %v849 = vunpack.c.l.b16 %v529
        %v850 = vunpack.c.l.b16 %v530
        %v851 = vunpack.c.l.b16 %v531
        %v852 = vunpack.c.l.b16 %v532
        %v853 = vunpack.c.l.b16 %v533
        %v854 = vpack.c.b16 %v839, %v838
        %v855 = vpack.c.b16 %v841, %v840
        %v856 = vpack.c.b16 %v843, %v842
        %v857 = vpack.c.b16 %v845, %v844
        %v858 = vpack.c.b16 %v847, %v846
        %v859 = vpack.c.b16 %v849, %v848
        %v860 = vpack.c.b16 %v851, %v850
        %v861 = vpack.c.b16 %v853, %v852
        %870 = vmatprep.subr.bf16.mxu0 0
        %871 = vmatpush1.bf16.msra.mxu0 %v854
        %872 = vmatprep.subr.bf16.mxu0 0
        %873 = vmatpush1.bf16.msra.mxu0 %v855
        %874 = vmatprep.subr.bf16.mxu0 0
        %875 = vmatpush1.bf16.msra.mxu0 %v856
        %876 = vmatprep.subr.bf16.mxu0 0
        %877 = vmatpush1.bf16.msra.mxu0 %v857
        %878 = vmatprep.subr.bf16.mxu0 0
        %879 = vmatpush1.bf16.msra.mxu0 %v858
        %880 = vmatprep.subr.bf16.mxu0 0
        %881 = vmatpush1.bf16.msra.mxu0 %v859
        %882 = vmatprep.subr.bf16.mxu0 0
        %883 = vmatpush1.bf16.msra.mxu0 %v860
        %884 = vmatprep.subr.bf16.mxu0 0
        %885 = vmatpush1.bf16.msra.mxu0 %v861
        %886 = vmatprep.subr.bf16.mxu0 0
        %887 = vmatpush1.bf16.msra.mxu0 0
        %888 = vmatprep.subr.bf16.mxu0 0
        %889 = vmatpush1.bf16.msra.mxu0 0
        %890 = vmatprep.subr.bf16.mxu0 0
        %891 = vmatpush1.bf16.msra.mxu0 0
        %892 = vmatprep.subr.bf16.mxu0 0
        %893 = vmatpush1.bf16.msra.mxu0 0
        %894 = vmatprep.subr.bf16.mxu0 0
        %895 = vmatpush1.bf16.msra.mxu0 0
        %896 = vmatprep.subr.bf16.mxu0 0
        %897 = vmatpush1.bf16.msra.mxu0 0
        %898 = vmatprep.subr.bf16.mxu0 0
        %899 = vmatpush1.bf16.msra.mxu0 0
        %900 = vmatprep.subr.bf16.mxu0 0
        %901 = vmatpush1.bf16.msra.mxu0 0
        %902 = vmatprep.mubr.bf16.mxu0 0
        %903 = vmatmul.mubr.bf16.gmra.mrb[0].mxu0 %v790
        %v904 = vpop.f32.mrb[0].mxu0
        %v905 = vadd.f32 %v569, %v904
        %v906 = vpop.f32.mrb[0].mxu0
        %v907 = vpop.f32.mrb[0].mxu0
        %v908 = vadd.f32 %v574, %v907
        %v909 = vpop.f32.mrb[0].mxu0
        %910 = vmatprep.mubr.bf16.mxu0 0
        %911 = vmatmul.mubr.bf16.gmra.mrb[0].mxu0 %v791
        %v912 = vpop.f32.mrb[0].mxu0
        %v913 = vadd.f32 %v579, %v912
        %v914 = vpop.f32.mrb[0].mxu0
        %v915 = vpop.f32.mrb[0].mxu0
        %v916 = vadd.f32 %v584, %v915
        %v917 = vpop.f32.mrb[0].mxu0
        %918 = vmatprep.mubr.bf16.mxu0 0
        %919 = vmatmul.mubr.bf16.gmra.mrb[0].mxu0 %v792
        %v920 = vpop.f32.mrb[0].mxu0
        %v921 = vadd.f32 %v589, %v920
        %v922 = vpop.f32.mrb[0].mxu0
        %v923 = vpop.f32.mrb[0].mxu0
        %v924 = vadd.f32 %v594, %v923
        %v925 = vpop.f32.mrb[0].mxu0
        %926 = vmatprep.mubr.bf16.mxu0 0
        %927 = vmatmul.mubr.bf16.gmra.mrb[0].mxu0 %v793
        %v928 = vpop.f32.mrb[0].mxu0
        %v929 = vadd.f32 %v599, %v928
        %v930 = vpop.f32.mrb[0].mxu0
        %v931 = vpop.f32.mrb[0].mxu0
        %v932 = vadd.f32 %v604, %v931
        %v933 = vpop.f32.mrb[0].mxu0
        %934 = vmatprep.mubr.bf16.mxu0 0
        %935 = vmatmul.mubr.bf16.gmra.mrb[0].mxu0 %v794
        %v936 = vpop.f32.mrb[0].mxu0
        %v937 = vadd.f32 %v609, %v936
        %v938 = vpop.f32.mrb[0].mxu0
        %v939 = vpop.f32.mrb[0].mxu0
        %v940 = vadd.f32 %v614, %v939
        %v941 = vpop.f32.mrb[0].mxu0
        %942 = vmatprep.mubr.bf16.mxu0 0
        %943 = vmatmul.mubr.bf16.gmra.mrb[0].mxu0 %v795
        %v944 = vpop.f32.mrb[0].mxu0
        %v945 = vadd.f32 %v619, %v944
        %v946 = vpop.f32.mrb[0].mxu0
        %v947 = vpop.f32.mrb[0].mxu0
        %v948 = vadd.f32 %v624, %v947
        %v949 = vpop.f32.mrb[0].mxu0
        %950 = vmatprep.mubr.bf16.mxu0 0
        %951 = vmatmul.mubr.bf16.gmra.mrb[0].mxu0 %v796
        %v952 = vpop.f32.mrb[0].mxu0
        %v953 = vadd.f32 %v629, %v952
        %v954 = vpop.f32.mrb[0].mxu0
        %v955 = vpop.f32.mrb[0].mxu0
        %v956 = vadd.f32 %v634, %v955
        %v957 = vpop.f32.mrb[0].mxu0
        %958 = vmatprep.mubr.bf16.mxu0 0
        %959 = vmatmul.mubr.bf16.gmra.mrb[0].mxu0 %v797
        %v960 = vpop.f32.mrb[0].mxu0
        %v961 = vadd.f32 %v639, %v960
        %v962 = vpop.f32.mrb[0].mxu0
        %v963 = vpop.f32.mrb[0].mxu0
        %v964 = vadd.f32 %v644, %v963
        %v965 = vpop.f32.mrb[0].mxu0
        %966 = vmatprep.mubr.bf16.mxu0 0
        %967 = vmatmul.mubr.bf16.gmra.mrb[0].mxu0 %v798
        %v968 = vpop.f32.mrb[0].mxu0
        %v969 = vadd.f32 %v649, %v968
        %v970 = vpop.f32.mrb[0].mxu0
        %v971 = vpop.f32.mrb[0].mxu0
        %v972 = vadd.f32 %v654, %v971
        %v973 = vpop.f32.mrb[0].mxu0
        %974 = vmatprep.mubr.bf16.mxu0 0
        %975 = vmatmul.mubr.bf16.gmra.mrb[0].mxu0 %v799
        %v976 = vpop.f32.mrb[0].mxu0
        %v977 = vadd.f32 %v659, %v976
        %v978 = vpop.f32.mrb[0].mxu0
        %v979 = vpop.f32.mrb[0].mxu0
        %v980 = vadd.f32 %v664, %v979
        %v981 = vpop.f32.mrb[0].mxu0
        %982 = vmatprep.mubr.bf16.mxu0 0
        %983 = vmatmul.mubr.bf16.gmra.mrb[0].mxu0 %v800
        %v984 = vpop.f32.mrb[0].mxu0
        %v985 = vadd.f32 %v669, %v984
        %v986 = vpop.f32.mrb[0].mxu0
        %v987 = vpop.f32.mrb[0].mxu0
        %v988 = vadd.f32 %v674, %v987
        %v989 = vpop.f32.mrb[0].mxu0
        %990 = vmatprep.mubr.bf16.mxu0 0
        %991 = vmatmul.mubr.bf16.gmra.mrb[0].mxu0 %v801
        %v992 = vpop.f32.mrb[0].mxu0
        %v993 = vadd.f32 %v679, %v992
        %v994 = vpop.f32.mrb[0].mxu0
        %v995 = vpop.f32.mrb[0].mxu0
        %v996 = vadd.f32 %v684, %v995
        %v997 = vpop.f32.mrb[0].mxu0
        %998 = vmatprep.mubr.bf16.mxu0 0
        %999 = vmatmul.mubr.bf16.gmra.mrb[0].mxu0 %v802
        %v1000 = vpop.f32.mrb[0].mxu0
        %v1001 = vadd.f32 %v689, %v1000
        %v1002 = vpop.f32.mrb[0].mxu0
        %v1003 = vpop.f32.mrb[0].mxu0
        %v1004 = vadd.f32 %v694, %v1003
        %v1005 = vpop.f32.mrb[0].mxu0
        %1006 = vmatprep.mubr.bf16.mxu0 0
        %1007 = vmatmul.mubr.bf16.gmra.mrb[0].mxu0 %v803
        %v1008 = vpop.f32.mrb[0].mxu0
        %v1009 = vadd.f32 %v699, %v1008
        %v1010 = vpop.f32.mrb[0].mxu0
        %v1011 = vpop.f32.mrb[0].mxu0
        %v1012 = vadd.f32 %v704, %v1011
        %v1013 = vpop.f32.mrb[0].mxu0
        %1014 = vmatprep.mubr.bf16.mxu0 0
        %1015 = vmatmul.mubr.bf16.gmra.mrb[0].mxu0 %v804
        %v1016 = vpop.f32.mrb[0].mxu0
        %v1017 = vadd.f32 %v709, %v1016
        %v1018 = vpop.f32.mrb[0].mxu0
        %v1019 = vpop.f32.mrb[0].mxu0
        %v1020 = vadd.f32 %v714, %v1019
        %v1021 = vpop.f32.mrb[0].mxu0
        %1022 = vmatprep.mubr.bf16.mxu0 0
        %1023 = vmatmul.mubr.bf16.gmra.mrb[0].mxu0 %v805
        %v1024 = vpop.f32.mrb[0].mxu0
        %v1025 = vadd.f32 %v719, %v1024
        %v1026 = vpop.f32.mrb[0].mxu0
        %v1027 = vpop.f32.mrb[0].mxu0
        %v1028 = vadd.f32 %v724, %v1027
        %v1029 = vpop.f32.mrb[0].mxu0
        %1030 = vdwg.mxu0
        %vm1031 = vcmp.ge.f32.partialorder %v905, 0.0
        %vm1032 = vcmp.ge.f32.partialorder %v908, 0.0
        %vm1033 = vcmp.ge.f32.partialorder %v913, 0.0
        %vm1034 = vcmp.ge.f32.partialorder %v916, 0.0
        %vm1035 = vcmp.ge.f32.partialorder %v921, 0.0
        %vm1036 = vcmp.ge.f32.partialorder %v924, 0.0
        %vm1037 = vcmp.ge.f32.partialorder %v929, 0.0
        %vm1038 = vcmp.ge.f32.partialorder %v932, 0.0
        %vm1039 = vcmp.ge.f32.partialorder %v937, 0.0
        %vm1040 = vcmp.ge.f32.partialorder %v940, 0.0
        %vm1041 = vcmp.ge.f32.partialorder %v945, 0.0
        %vm1042 = vcmp.ge.f32.partialorder %v948, 0.0
        %vm1043 = vcmp.ge.f32.partialorder %v953, 0.0
        %vm1044 = vcmp.ge.f32.partialorder %v956, 0.0
        %vm1045 = vcmp.ge.f32.partialorder %v961, 0.0
        %vm1046 = vcmp.ge.f32.partialorder %v964, 0.0
        %vm1047 = vcmp.ge.f32.partialorder %v969, 0.0
        %vm1048 = vcmp.ge.f32.partialorder %v972, 0.0
        %vm1049 = vcmp.ge.f32.partialorder %v977, 0.0
        %vm1050 = vcmp.ge.f32.partialorder %v980, 0.0
        %vm1051 = vcmp.ge.f32.partialorder %v985, 0.0
        %vm1052 = vcmp.ge.f32.partialorder %v988, 0.0
        %vm1053 = vcmp.ge.f32.partialorder %v993, 0.0
        %vm1054 = vcmp.ge.f32.partialorder %v996, 0.0
        %vm1055 = vcmp.ge.f32.partialorder %v1001, 0.0
        %vm1056 = vcmp.ge.f32.partialorder %v1004, 0.0
        %vm1057 = vcmp.ge.f32.partialorder %v1009, 0.0
        %vm1058 = vcmp.ge.f32.partialorder %v1012, 0.0
        %vm1059 = vcmp.ge.f32.partialorder %v1017, 0.0
        %vm1060 = vcmp.ge.f32.partialorder %v1020, 0.0
        %vm1061 = vcmp.ge.f32.partialorder %v1025, 0.0
        %vm1062 = vcmp.ge.f32.partialorder %v1028, 0.0
        %v1063 = vmul.f32 %v905, 0.2
        %v1064 = vmul.f32 %v908, 0.2
        %v1065 = vmul.f32 %v913, 0.2
        %v1066 = vmul.f32 %v916, 0.2
        %v1067 = vmul.f32 %v921, 0.2
        %v1068 = vmul.f32 %v924, 0.2
        %v1069 = vmul.f32 %v929, 0.2
        %v1070 = vmul.f32 %v932, 0.2
        %v1071 = vmul.f32 %v937, 0.2
        %v1072 = vmul.f32 %v940, 0.2
        %v1073 = vmul.f32 %v945, 0.2
        %v1074 = vmul.f32 %v948, 0.2
        %v1075 = vmul.f32 %v953, 0.2
        %v1076 = vmul.f32 %v956, 0.2
        %v1077 = vmul.f32 %v961, 0.2
        %v1078 = vmul.f32 %v964, 0.2
        %v1079 = vmul.f32 %v969, 0.2
        %v1080 = vmul.f32 %v972, 0.2
        %v1081 = vmul.f32 %v977, 0.2
        %v1082 = vmul.f32 %v980, 0.2
        %v1083 = vmul.f32 %v985, 0.2
        %v1084 = vmul.f32 %v988, 0.2
        %v1085 = vmul.f32 %v993, 0.2
        %v1086 = vmul.f32 %v996, 0.2
        %v1087 = vmul.f32 %v1001, 0.2
        %v1088 = vmul.f32 %v1004, 0.2
        %v1089 = vmul.f32 %v1009, 0.2
        %v1090 = vmul.f32 %v1012, 0.2
        %v1091 = vmul.f32 %v1017, 0.2
        %v1092 = vmul.f32 %v1020, 0.2
        %v1093 = vmul.f32 %v1025, 0.2
        %v1094 = vmul.f32 %v1028, 0.2
        %v1095 = vsel %vm1031, %v905, %v1063
        %v1096 = vsel %vm1032, %v908, %v1064
        %v1097 = vsel %vm1033, %v913, %v1065
        %v1098 = vsel %vm1034, %v916, %v1066
        %v1099 = vsel %vm1035, %v921, %v1067
        %v1100 = vsel %vm1036, %v924, %v1068
        %v1101 = vsel %vm1037, %v929, %v1069
        %v1102 = vsel %vm1038, %v932, %v1070
        %v1103 = vsel %vm1039, %v937, %v1071
        %v1104 = vsel %vm1040, %v940, %v1072
        %v1105 = vsel %vm1041, %v945, %v1073
        %v1106 = vsel %vm1042, %v948, %v1074
        %v1107 = vsel %vm1043, %v953, %v1075
        %v1108 = vsel %vm1044, %v956, %v1076
        %v1109 = vsel %vm1045, %v961, %v1077
        %v1110 = vsel %vm1046, %v964, %v1078
        %v1111 = vsel %vm1047, %v969, %v1079
        %v1112 = vsel %vm1048, %v972, %v1080
        %v1113 = vsel %vm1049, %v977, %v1081
        %v1114 = vsel %vm1050, %v980, %v1082
        %v1115 = vsel %vm1051, %v985, %v1083
        %v1116 = vsel %vm1052, %v988, %v1084
        %v1117 = vsel %vm1053, %v993, %v1085
        %v1118 = vsel %vm1054, %v996, %v1086
        %v1119 = vsel %vm1055, %v1001, %v1087
        %v1120 = vsel %vm1056, %v1004, %v1088
        %v1121 = vsel %vm1057, %v1009, %v1089
        %v1122 = vsel %vm1058, %v1012, %v1090
        %v1123 = vsel %vm1059, %v1017, %v1091
        %v1124 = vsel %vm1060, %v1020, %v1092
        %v1125 = vsel %vm1061, %v1025, %v1093
        %v1126 = vsel %vm1062, %v1028, %v1094
        %v1127 = vld [vmem:[%s3] sm:$0xff]
        %v1128 = vld [vmem:[%s3 + $0x8] sm:$0xff]
        %v1129 = vld [vmem:[%s3 + $0x10] sm:$0xff]
        %v1130 = vld [vmem:[%s3 + $0x18] sm:$0xff]
        %v1131 = vld [vmem:[%s3 + $0x20] sm:$0xff]
        %v1132 = vld [vmem:[%s3 + $0x28] sm:$0xff]
        %v1133 = vld [vmem:[%s3 + $0x30] sm:$0xff]
        %v1134 = vld [vmem:[%s3 + $0x38] sm:$0xff]
        %v1135 = vld [vmem:[%s3 + $0x40] sm:$0xff]
        %v1136 = vld [vmem:[%s3 + $0x48] sm:$0xff]
        %v1137 = vld [vmem:[%s3 + $0x50] sm:$0xff]
        %v1138 = vld [vmem:[%s3 + $0x58] sm:$0xff]
        %v1139 = vld [vmem:[%s3 + $0x60] sm:$0xff]
        %v1140 = vld [vmem:[%s3 + $0x68] sm:$0xff]
        %v1141 = vld [vmem:[%s3 + $0x70] sm:$0xff]
        %v1142 = vld [vmem:[%s3 + $0x78] sm:$0xff]
        %v1143 = vld [vmem:[%s3 + $0x80] sm:$0xff]
        %v1144 = vld [vmem:[%s3 + $0x88] sm:$0xff]
        %v1145 = vld [vmem:[%s3 + $0x90] sm:$0xff]
        %v1146 = vld [vmem:[%s3 + $0x98] sm:$0xff]
        %v1147 = vld [vmem:[%s3 + $0xa0] sm:$0xff]
        %v1148 = vld [vmem:[%s3 + $0xa8] sm:$0xff]
        %v1149 = vld [vmem:[%s3 + $0xb0] sm:$0xff]
        %v1150 = vld [vmem:[%s3 + $0xb8] sm:$0xff]
        %v1151 = vld [vmem:[%s3 + $0xc0] sm:$0xff]
        %v1152 = vld [vmem:[%s3 + $0xc8] sm:$0xff]
        %v1153 = vld [vmem:[%s3 + $0xd0] sm:$0xff]
        %v1154 = vld [vmem:[%s3 + $0xd8] sm:$0xff]
        %v1155 = vld [vmem:[%s3 + $0xe0] sm:$0xff]
        %v1156 = vld [vmem:[%s3 + $0xe8] sm:$0xff]
        %v1157 = vld [vmem:[%s3 + $0xf0] sm:$0xff]
        %v1158 = vld [vmem:[%s3 + $0xf8] sm:$0xff]
        %v1159 = vpack.c.bf16 %v1096, %v1095
        %v1160 = vpack.c.bf16 %v1098, %v1097
        %v1161 = vpack.c.bf16 %v1100, %v1099
        %v1162 = vpack.c.bf16 %v1102, %v1101
        %v1163 = vpack.c.bf16 %v1104, %v1103
        %v1164 = vpack.c.bf16 %v1106, %v1105
        %v1165 = vpack.c.bf16 %v1108, %v1107
        %v1166 = vpack.c.bf16 %v1110, %v1109
        %v1167 = vpack.c.bf16 %v1112, %v1111
        %v1168 = vpack.c.bf16 %v1114, %v1113
        %v1169 = vpack.c.bf16 %v1116, %v1115
        %v1170 = vpack.c.bf16 %v1118, %v1117
        %v1171 = vpack.c.bf16 %v1120, %v1119
        %v1172 = vpack.c.bf16 %v1122, %v1121
        %v1173 = vpack.c.bf16 %v1124, %v1123
        %v1174 = vpack.c.bf16 %v1126, %v1125
        %v1175 = vld [vmem:[%s4] sm:$0xff]
        %v1176 = vld [vmem:[%s4 + $0x8] sm:$0xff]
        %v1177 = vld [vmem:[%s4 + $0x10] sm:$0xff]
        %v1178 = vld [vmem:[%s4 + $0x18] sm:$0xff]
        %v1179 = vld [vmem:[%s4 + $0x20] sm:$0xff]
        %v1180 = vld [vmem:[%s4 + $0x28] sm:$0xff]
        %v1181 = vld [vmem:[%s4 + $0x30] sm:$0xff]
        %v1182 = vld [vmem:[%s4 + $0x38] sm:$0xff]
        %v1183 = vld [vmem:[%s4 + $0x40] sm:$0xff]
        %v1184 = vld [vmem:[%s4 + $0x48] sm:$0xff]
        %v1185 = vld [vmem:[%s4 + $0x50] sm:$0xff]
        %v1186 = vld [vmem:[%s4 + $0x58] sm:$0xff]
        %v1187 = vld [vmem:[%s4 + $0x60] sm:$0xff]
        %v1188 = vld [vmem:[%s4 + $0x68] sm:$0xff]
        %v1189 = vld [vmem:[%s4 + $0x70] sm:$0xff]
        %v1190 = vld [vmem:[%s4 + $0x78] sm:$0xff]
        %v1191 = vld [vmem:[%s4 + $0x80] sm:$0xff]
        %v1192 = vld [vmem:[%s4 + $0x88] sm:$0xff]
        %v1193 = vld [vmem:[%s4 + $0x90] sm:$0xff]
        %v1194 = vld [vmem:[%s4 + $0x98] sm:$0xff]
        %v1195 = vld [vmem:[%s4 + $0xa0] sm:$0xff]
        %v1196 = vld [vmem:[%s4 + $0xa8] sm:$0xff]
        %v1197 = vld [vmem:[%s4 + $0xb0] sm:$0xff]
        %v1198 = vld [vmem:[%s4 + $0xb8] sm:$0xff]
        %v1199 = vld [vmem:[%s4 + $0xc0] sm:$0xff]
        %v1200 = vld [vmem:[%s4 + $0xc8] sm:$0xff]
        %v1201 = vld [vmem:[%s4 + $0xd0] sm:$0xff]
        %v1202 = vld [vmem:[%s4 + $0xd8] sm:$0xff]
        %v1203 = vld [vmem:[%s4 + $0xe0] sm:$0xff]
        %v1204 = vld [vmem:[%s4 + $0xe8] sm:$0xff]
        %v1205 = vld [vmem:[%s4 + $0xf0] sm:$0xff]
        %v1206 = vld [vmem:[%s4 + $0xf8] sm:$0xff]
        %1208 = vset.pattern.permute.xlu0 0
        %1209 = vperm.xlu0 %1208, %v1175
        %v1210 = vpop.permute.xlu0 %1209
        %1213 = vset.pattern.permute.xlu0 0
        %1214 = vperm.xlu0 %1213, %v1176
        %v1215 = vpop.permute.xlu0 %1214
        %1218 = vset.pattern.permute.xlu0 0
        %1219 = vperm.xlu0 %1218, %v1177
        %v1220 = vpop.permute.xlu0 %1219
        %1223 = vset.pattern.permute.xlu0 0
        %1224 = vperm.xlu0 %1223, %v1178
        %v1225 = vpop.permute.xlu0 %1224
        %1228 = vset.pattern.permute.xlu0 0
        %1229 = vperm.xlu0 %1228, %v1179
        %v1230 = vpop.permute.xlu0 %1229
        %1233 = vset.pattern.permute.xlu0 0
        %1234 = vperm.xlu0 %1233, %v1180
        %v1235 = vpop.permute.xlu0 %1234
        %1238 = vset.pattern.permute.xlu0 0
        %1239 = vperm.xlu0 %1238, %v1181
        %v1240 = vpop.permute.xlu0 %1239
        %1243 = vset.pattern.permute.xlu0 0
        %1244 = vperm.xlu0 %1243, %v1182
        %v1245 = vpop.permute.xlu0 %1244
        %1248 = vset.pattern.permute.xlu0 0
        %1249 = vperm.xlu0 %1248, %v1183
        %v1250 = vpop.permute.xlu0 %1249
        %1253 = vset.pattern.permute.xlu0 0
        %1254 = vperm.xlu0 %1253, %v1184
        %v1255 = vpop.permute.xlu0 %1254
        %1258 = vset.pattern.permute.xlu0 0
        %1259 = vperm.xlu0 %1258, %v1185
        %v1260 = vpop.permute.xlu0 %1259
        %1263 = vset.pattern.permute.xlu0 0
        %1264 = vperm.xlu0 %1263, %v1186
        %v1265 = vpop.permute.xlu0 %1264
        %1268 = vset.pattern.permute.xlu0 0
        %1269 = vperm.xlu0 %1268, %v1187
        %v1270 = vpop.permute.xlu0 %1269
        %1273 = vset.pattern.permute.xlu0 0
        %1274 = vperm.xlu0 %1273, %v1188
        %v1275 = vpop.permute.xlu0 %1274
        %1278 = vset.pattern.permute.xlu0 0
        %1279 = vperm.xlu0 %1278, %v1189
        %v1280 = vpop.permute.xlu0 %1279
        %1283 = vset.pattern.permute.xlu0 0
        %1284 = vperm.xlu0 %1283, %v1190
        %v1285 = vpop.permute.xlu0 %1284
        %1288 = vset.pattern.permute.xlu0 0
        %1289 = vperm.xlu0 %1288, %v1191
        %v1290 = vpop.permute.xlu0 %1289
        %1293 = vset.pattern.permute.xlu0 0
        %1294 = vperm.xlu0 %1293, %v1192
        %v1295 = vpop.permute.xlu0 %1294
        %1298 = vset.pattern.permute.xlu0 0
        %1299 = vperm.xlu0 %1298, %v1193
        %v1300 = vpop.permute.xlu0 %1299
        %1303 = vset.pattern.permute.xlu0 0
        %1304 = vperm.xlu0 %1303, %v1194
        %v1305 = vpop.permute.xlu0 %1304
        %1308 = vset.pattern.permute.xlu0 0
        %1309 = vperm.xlu0 %1308, %v1195
        %v1310 = vpop.permute.xlu0 %1309
        %1313 = vset.pattern.permute.xlu0 0
        %1314 = vperm.xlu0 %1313, %v1196
        %v1315 = vpop.permute.xlu0 %1314
        %1318 = vset.pattern.permute.xlu0 0
        %1319 = vperm.xlu0 %1318, %v1197
        %v1320 = vpop.permute.xlu0 %1319
        %1323 = vset.pattern.permute.xlu0 0
        %1324 = vperm.xlu0 %1323, %v1198
        %v1325 = vpop.permute.xlu0 %1324
        %1328 = vset.pattern.permute.xlu0 0
        %1329 = vperm.xlu0 %1328, %v1199
        %v1330 = vpop.permute.xlu0 %1329
        %1333 = vset.pattern.permute.xlu0 0
        %1334 = vperm.xlu0 %1333, %v1200
        %v1335 = vpop.permute.xlu0 %1334
        %1338 = vset.pattern.permute.xlu0 0
        %1339 = vperm.xlu0 %1338, %v1201
        %v1340 = vpop.permute.xlu0 %1339
        %1343 = vset.pattern.permute.xlu0 0
        %1344 = vperm.xlu0 %1343, %v1202
        %v1345 = vpop.permute.xlu0 %1344
        %1348 = vset.pattern.permute.xlu0 0
        %1349 = vperm.xlu0 %1348, %v1203
        %v1350 = vpop.permute.xlu0 %1349
        %1353 = vset.pattern.permute.xlu0 0
        %1354 = vperm.xlu0 %1353, %v1204
        %v1355 = vpop.permute.xlu0 %1354
        %1358 = vset.pattern.permute.xlu0 0
        %1359 = vperm.xlu0 %1358, %v1205
        %v1360 = vpop.permute.xlu0 %1359
        %1363 = vset.pattern.permute.xlu0 0
        %1364 = vperm.xlu0 %1363, %v1206
        %v1365 = vpop.permute.xlu0 %1364
        %v1399 = vunpack.c.l.b16 %v1127
        %v1400 = vunpack.c.h.b16 %v1127
        %v1401 = vunpack.c.l.b16 %v1128
        %v1402 = vunpack.c.h.b16 %v1128
        %v1403 = vunpack.c.l.b16 %v1129
        %v1404 = vunpack.c.h.b16 %v1129
        %v1405 = vunpack.c.l.b16 %v1130
        %v1406 = vunpack.c.h.b16 %v1130
        %v1407 = vunpack.c.l.b16 %v1131
        %v1408 = vunpack.c.h.b16 %v1131
        %v1409 = vunpack.c.l.b16 %v1132
        %v1410 = vunpack.c.h.b16 %v1132
        %v1411 = vunpack.c.l.b16 %v1133
        %v1412 = vunpack.c.h.b16 %v1133
        %v1413 = vunpack.c.l.b16 %v1134
        %v1414 = vunpack.c.h.b16 %v1134
        %v1415 = vunpack.c.l.b16 %v1135
        %v1416 = vunpack.c.h.b16 %v1135
        %v1417 = vunpack.c.l.b16 %v1136
        %v1418 = vunpack.c.h.b16 %v1136
        %v1419 = vunpack.c.l.b16 %v1137
        %v1420 = vunpack.c.h.b16 %v1137
        %v1421 = vunpack.c.l.b16 %v1138
        %v1422 = vunpack.c.h.b16 %v1138
        %v1423 = vunpack.c.l.b16 %v1139
        %v1424 = vunpack.c.h.b16 %v1139
        %v1425 = vunpack.c.l.b16 %v1140
        %v1426 = vunpack.c.h.b16 %v1140
        %v1427 = vunpack.c.l.b16 %v1141
        %v1428 = vunpack.c.h.b16 %v1141
        %v1429 = vunpack.c.l.b16 %v1142
        %v1430 = vunpack.c.h.b16 %v1142
        %v1431 = vunpack.c.l.b16 %v1143
        %v1432 = vunpack.c.h.b16 %v1143
        %v1433 = vunpack.c.l.b16 %v1144
        %v1434 = vunpack.c.h.b16 %v1144
        %v1435 = vunpack.c.l.b16 %v1145
        %v1436 = vunpack.c.h.b16 %v1145
        %v1437 = vunpack.c.l.b16 %v1146
        %v1438 = vunpack.c.h.b16 %v1146
        %v1439 = vunpack.c.l.b16 %v1147
        %v1440 = vunpack.c.h.b16 %v1147
        %v1441 = vunpack.c.l.b16 %v1148
        %v1442 = vunpack.c.h.b16 %v1148
        %v1443 = vunpack.c.l.b16 %v1149
        %v1444 = vunpack.c.h.b16 %v1149
        %v1445 = vunpack.c.l.b16 %v1150
        %v1446 = vunpack.c.h.b16 %v1150
        %v1447 = vunpack.c.l.b16 %v1151
        %v1448 = vunpack.c.h.b16 %v1151
        %v1449 = vunpack.c.l.b16 %v1152
        %v1450 = vunpack.c.h.b16 %v1152
        %v1451 = vunpack.c.l.b16 %v1153
        %v1452 = vunpack.c.h.b16 %v1153
        %v1453 = vunpack.c.l.b16 %v1154
        %v1454 = vunpack.c.h.b16 %v1154
        %v1455 = vunpack.c.l.b16 %v1155
        %v1456 = vunpack.c.h.b16 %v1155
        %v1457 = vunpack.c.l.b16 %v1156
        %v1458 = vunpack.c.h.b16 %v1156
        %v1459 = vunpack.c.l.b16 %v1157
        %v1460 = vunpack.c.h.b16 %v1157
        %v1461 = vunpack.c.l.b16 %v1158
        %v1462 = vunpack.c.h.b16 %v1158
        %v1463 = vpack.c.b16 %v1401, %v1399
        %v1464 = vpack.c.b16 %v1402, %v1400
        %v1465 = vpack.c.b16 %v1405, %v1403
        %v1466 = vpack.c.b16 %v1406, %v1404
        %v1467 = vpack.c.b16 %v1409, %v1407
        %v1468 = vpack.c.b16 %v1410, %v1408
        %v1469 = vpack.c.b16 %v1413, %v1411
        %v1470 = vpack.c.b16 %v1414, %v1412
        %v1471 = vpack.c.b16 %v1417, %v1415
        %v1472 = vpack.c.b16 %v1418, %v1416
        %v1473 = vpack.c.b16 %v1421, %v1419
        %v1474 = vpack.c.b16 %v1422, %v1420
        %v1475 = vpack.c.b16 %v1425, %v1423
        %v1476 = vpack.c.b16 %v1426, %v1424
        %v1477 = vpack.c.b16 %v1429, %v1427
        %v1478 = vpack.c.b16 %v1430, %v1428
        %v1479 = vpack.c.b16 %v1433, %v1431
        %v1480 = vpack.c.b16 %v1434, %v1432
        %v1481 = vpack.c.b16 %v1437, %v1435
        %v1482 = vpack.c.b16 %v1438, %v1436
        %v1483 = vpack.c.b16 %v1441, %v1439
        %v1484 = vpack.c.b16 %v1442, %v1440
        %v1485 = vpack.c.b16 %v1445, %v1443
        %v1486 = vpack.c.b16 %v1446, %v1444
        %v1487 = vpack.c.b16 %v1449, %v1447
        %v1488 = vpack.c.b16 %v1450, %v1448
        %v1489 = vpack.c.b16 %v1453, %v1451
        %v1490 = vpack.c.b16 %v1454, %v1452
        %v1491 = vpack.c.b16 %v1457, %v1455
        %v1492 = vpack.c.b16 %v1458, %v1456
        %v1493 = vpack.c.b16 %v1461, %v1459
        %v1494 = vpack.c.b16 %v1462, %v1460
        %1527 = vmatprep.subr.bf16.mxu0 0
        %1528 = vmatpush1.bf16.msra.mxu0 %v1159
        %1529 = vmatprep.subr.bf16.mxu0 0
        %1530 = vmatpush1.bf16.msra.mxu0 %v1160
        %1531 = vmatprep.subr.bf16.mxu0 0
        %1532 = vmatpush1.bf16.msra.mxu0 %v1161
        %1533 = vmatprep.subr.bf16.mxu0 0
        %1534 = vmatpush1.bf16.msra.mxu0 %v1162
        %1535 = vmatprep.subr.bf16.mxu0 0
        %1536 = vmatpush1.bf16.msra.mxu0 %v1163
        %1537 = vmatprep.subr.bf16.mxu0 0
        %1538 = vmatpush1.bf16.msra.mxu0 %v1164
        %1539 = vmatprep.subr.bf16.mxu0 0
        %1540 = vmatpush1.bf16.msra.mxu0 %v1165
        %1541 = vmatprep.subr.bf16.mxu0 0
        %1542 = vmatpush1.bf16.msra.mxu0 %v1166
        %1543 = vmatprep.subr.bf16.mxu0 0
        %1544 = vmatpush1.bf16.msra.mxu0 %v1167
        %1545 = vmatprep.subr.bf16.mxu0 0
        %1546 = vmatpush1.bf16.msra.mxu0 %v1168
        %1547 = vmatprep.subr.bf16.mxu0 0
        %1548 = vmatpush1.bf16.msra.mxu0 %v1169
        %1549 = vmatprep.subr.bf16.mxu0 0
        %1550 = vmatpush1.bf16.msra.mxu0 %v1170
        %1551 = vmatprep.subr.bf16.mxu0 0
        %1552 = vmatpush1.bf16.msra.mxu0 %v1171
        %1553 = vmatprep.subr.bf16.mxu0 0
        %1554 = vmatpush1.bf16.msra.mxu0 %v1172
        %1555 = vmatprep.subr.bf16.mxu0 0
        %1556 = vmatpush1.bf16.msra.mxu0 %v1173
        %1557 = vmatprep.subr.bf16.mxu0 0
        %1558 = vmatpush1.bf16.msra.mxu0 %v1174
        %1559 = vmatprep.mubr.bf16.mxu0 %v1464
        %1560 = vmatmul.mubr.bf16.gmra.mrb[0].mxu0 %v1463
        %v1561 = vpop.f32.mrb[0].mxu0
        %v1562 = vadd.f32 %v1210, %v1561
        %v1563 = vpop.f32.mrb[0].mxu0
        %v1564 = vpop.f32.mrb[0].mxu0
        %v1565 = vadd.f32 %v1215, %v1564
        %v1566 = vpop.f32.mrb[0].mxu0
        %1567 = vmatprep.mubr.bf16.mxu0 %v1466
        %1568 = vmatmul.mubr.bf16.gmra.mrb[0].mxu0 %v1465
        %v1569 = vpop.f32.mrb[0].mxu0
        %v1570 = vadd.f32 %v1220, %v1569
        %v1571 = vpop.f32.mrb[0].mxu0
        %v1572 = vpop.f32.mrb[0].mxu0
        %v1573 = vadd.f32 %v1225, %v1572
        %v1574 = vpop.f32.mrb[0].mxu0
        %1575 = vmatprep.mubr.bf16.mxu0 %v1468
        %1576 = vmatmul.mubr.bf16.gmra.mrb[0].mxu0 %v1467
        %v1577 = vpop.f32.mrb[0].mxu0
        %v1578 = vadd.f32 %v1230, %v1577
        %v1579 = vpop.f32.mrb[0].mxu0
        %v1580 = vpop.f32.mrb[0].mxu0
        %v1581 = vadd.f32 %v1235, %v1580
        %v1582 = vpop.f32.mrb[0].mxu0
        %1583 = vmatprep.mubr.bf16.mxu0 %v1470
        %1584 = vmatmul.mubr.bf16.gmra.mrb[0].mxu0 %v1469
        %v1585 = vpop.f32.mrb[0].mxu0
        %v1586 = vadd.f32 %v1240, %v1585
        %v1587 = vpop.f32.mrb[0].mxu0
        %v1588 = vpop.f32.mrb[0].mxu0
        %v1589 = vadd.f32 %v1245, %v1588
        %v1590 = vpop.f32.mrb[0].mxu0
        %1591 = vmatprep.mubr.bf16.mxu0 %v1472
        %1592 = vmatmul.mubr.bf16.gmra.mrb[0].mxu0 %v1471
        %v1593 = vpop.f32.mrb[0].mxu0
        %v1594 = vadd.f32 %v1250, %v1593
        %v1595 = vpop.f32.mrb[0].mxu0
        %v1596 = vpop.f32.mrb[0].mxu0
        %v1597 = vadd.f32 %v1255, %v1596
        %v1598 = vpop.f32.mrb[0].mxu0
        %1599 = vmatprep.mubr.bf16.mxu0 %v1474
        %1600 = vmatmul.mubr.bf16.gmra.mrb[0].mxu0 %v1473
        %v1601 = vpop.f32.mrb[0].mxu0
        %v1602 = vadd.f32 %v1260, %v1601
        %v1603 = vpop.f32.mrb[0].mxu0
        %v1604 = vpop.f32.mrb[0].mxu0
        %v1605 = vadd.f32 %v1265, %v1604
        %v1606 = vpop.f32.mrb[0].mxu0
        %1607 = vmatprep.mubr.bf16.mxu0 %v1476
        %1608 = vmatmul.mubr.bf16.gmra.mrb[0].mxu0 %v1475
        %v1609 = vpop.f32.mrb[0].mxu0
        %v1610 = vadd.f32 %v1270, %v1609
        %v1611 = vpop.f32.mrb[0].mxu0
        %v1612 = vpop.f32.mrb[0].mxu0
        %v1613 = vadd.f32 %v1275, %v1612
        %v1614 = vpop.f32.mrb[0].mxu0
        %1615 = vmatprep.mubr.bf16.mxu0 %v1478
        %1616 = vmatmul.mubr.bf16.gmra.mrb[0].mxu0 %v1477
        %v1617 = vpop.f32.mrb[0].mxu0
        %v1618 = vadd.f32 %v1280, %v1617
        %v1619 = vpop.f32.mrb[0].mxu0
        %v1620 = vpop.f32.mrb[0].mxu0
        %v1621 = vadd.f32 %v1285, %v1620
        %v1622 = vpop.f32.mrb[0].mxu0
        %1623 = vmatprep.mubr.bf16.mxu0 %v1480
        %1624 = vmatmul.mubr.bf16.gmra.mrb[0].mxu0 %v1479
        %v1625 = vpop.f32.mrb[0].mxu0
        %v1626 = vadd.f32 %v1290, %v1625
        %v1627 = vpop.f32.mrb[0].mxu0
        %v1628 = vpop.f32.mrb[0].mxu0
        %v1629 = vadd.f32 %v1295, %v1628
        %v1630 = vpop.f32.mrb[0].mxu0
        %1631 = vmatprep.mubr.bf16.mxu0 %v1482
        %1632 = vmatmul.mubr.bf16.gmra.mrb[0].mxu0 %v1481
        %v1633 = vpop.f32.mrb[0].mxu0
        %v1634 = vadd.f32 %v1300, %v1633
        %v1635 = vpop.f32.mrb[0].mxu0
        %v1636 = vpop.f32.mrb[0].mxu0
        %v1637 = vadd.f32 %v1305, %v1636
        %v1638 = vpop.f32.mrb[0].mxu0
        %1639 = vmatprep.mubr.bf16.mxu0 %v1484
        %1640 = vmatmul.mubr.bf16.gmra.mrb[0].mxu0 %v1483
        %v1641 = vpop.f32.mrb[0].mxu0
        %v1642 = vadd.f32 %v1310, %v1641
        %v1643 = vpop.f32.mrb[0].mxu0
        %v1644 = vpop.f32.mrb[0].mxu0
        %v1645 = vadd.f32 %v1315, %v1644
        %v1646 = vpop.f32.mrb[0].mxu0
        %1647 = vmatprep.mubr.bf16.mxu0 %v1486
        %1648 = vmatmul.mubr.bf16.gmra.mrb[0].mxu0 %v1485
        %v1649 = vpop.f32.mrb[0].mxu0
        %v1650 = vadd.f32 %v1320, %v1649
        %v1651 = vpop.f32.mrb[0].mxu0
        %v1652 = vpop.f32.mrb[0].mxu0
        %v1653 = vadd.f32 %v1325, %v1652
        %v1654 = vpop.f32.mrb[0].mxu0
        %1655 = vmatprep.mubr.bf16.mxu0 %v1488
        %1656 = vmatmul.mubr.bf16.gmra.mrb[0].mxu0 %v1487
        %v1657 = vpop.f32.mrb[0].mxu0
        %v1658 = vadd.f32 %v1330, %v1657
        %v1659 = vpop.f32.mrb[0].mxu0
        %v1660 = vpop.f32.mrb[0].mxu0
        %v1661 = vadd.f32 %v1335, %v1660
        %v1662 = vpop.f32.mrb[0].mxu0
        %1663 = vmatprep.mubr.bf16.mxu0 %v1490
        %1664 = vmatmul.mubr.bf16.gmra.mrb[0].mxu0 %v1489
        %v1665 = vpop.f32.mrb[0].mxu0
        %v1666 = vadd.f32 %v1340, %v1665
        %v1667 = vpop.f32.mrb[0].mxu0
        %v1668 = vpop.f32.mrb[0].mxu0
        %v1669 = vadd.f32 %v1345, %v1668
        %v1670 = vpop.f32.mrb[0].mxu0
        %1671 = vmatprep.mubr.bf16.mxu0 %v1492
        %1672 = vmatmul.mubr.bf16.gmra.mrb[0].mxu0 %v1491
        %v1673 = vpop.f32.mrb[0].mxu0
        %v1674 = vadd.f32 %v1350, %v1673
        %v1675 = vpop.f32.mrb[0].mxu0
        %v1676 = vpop.f32.mrb[0].mxu0
        %v1677 = vadd.f32 %v1355, %v1676
        %v1678 = vpop.f32.mrb[0].mxu0
        %1679 = vmatprep.mubr.bf16.mxu0 %v1494
        %1680 = vmatmul.mubr.bf16.gmra.mrb[0].mxu0 %v1493
        %v1681 = vpop.f32.mrb[0].mxu0
        %v1682 = vadd.f32 %v1360, %v1681
        %v1683 = vpop.f32.mrb[0].mxu0
        %v1684 = vpop.f32.mrb[0].mxu0
        %v1685 = vadd.f32 %v1365, %v1684
        %v1686 = vpop.f32.mrb[0].mxu0
        %1687 = vdwg.mxu0
        %vm1688 = vcmp.ge.f32.partialorder %v1562, 0.0
        %vm1689 = vcmp.ge.f32.partialorder %v1565, 0.0
        %vm1690 = vcmp.ge.f32.partialorder %v1570, 0.0
        %vm1691 = vcmp.ge.f32.partialorder %v1573, 0.0
        %vm1692 = vcmp.ge.f32.partialorder %v1578, 0.0
        %vm1693 = vcmp.ge.f32.partialorder %v1581, 0.0
        %vm1694 = vcmp.ge.f32.partialorder %v1586, 0.0
        %vm1695 = vcmp.ge.f32.partialorder %v1589, 0.0
        %vm1696 = vcmp.ge.f32.partialorder %v1594, 0.0
        %vm1697 = vcmp.ge.f32.partialorder %v1597, 0.0
        %vm1698 = vcmp.ge.f32.partialorder %v1602, 0.0
        %vm1699 = vcmp.ge.f32.partialorder %v1605, 0.0
        %vm1700 = vcmp.ge.f32.partialorder %v1610, 0.0
        %vm1701 = vcmp.ge.f32.partialorder %v1613, 0.0
        %vm1702 = vcmp.ge.f32.partialorder %v1618, 0.0
        %vm1703 = vcmp.ge.f32.partialorder %v1621, 0.0
        %vm1704 = vcmp.ge.f32.partialorder %v1626, 0.0
        %vm1705 = vcmp.ge.f32.partialorder %v1629, 0.0
        %vm1706 = vcmp.ge.f32.partialorder %v1634, 0.0
        %vm1707 = vcmp.ge.f32.partialorder %v1637, 0.0
        %vm1708 = vcmp.ge.f32.partialorder %v1642, 0.0
        %vm1709 = vcmp.ge.f32.partialorder %v1645, 0.0
        %vm1710 = vcmp.ge.f32.partialorder %v1650, 0.0
        %vm1711 = vcmp.ge.f32.partialorder %v1653, 0.0
        %vm1712 = vcmp.ge.f32.partialorder %v1658, 0.0
        %vm1713 = vcmp.ge.f32.partialorder %v1661, 0.0
        %vm1714 = vcmp.ge.f32.partialorder %v1666, 0.0
        %vm1715 = vcmp.ge.f32.partialorder %v1669, 0.0
        %vm1716 = vcmp.ge.f32.partialorder %v1674, 0.0
        %vm1717 = vcmp.ge.f32.partialorder %v1677, 0.0
        %vm1718 = vcmp.ge.f32.partialorder %v1682, 0.0
        %vm1719 = vcmp.ge.f32.partialorder %v1685, 0.0
        %v1720 = vmul.f32 %v1562, 0.2
        %v1721 = vmul.f32 %v1565, 0.2
        %v1722 = vmul.f32 %v1570, 0.2
        %v1723 = vmul.f32 %v1573, 0.2
        %v1724 = vmul.f32 %v1578, 0.2
        %v1725 = vmul.f32 %v1581, 0.2
        %v1726 = vmul.f32 %v1586, 0.2
        %v1727 = vmul.f32 %v1589, 0.2
        %v1728 = vmul.f32 %v1594, 0.2
        %v1729 = vmul.f32 %v1597, 0.2
        %v1730 = vmul.f32 %v1602, 0.2
        %v1731 = vmul.f32 %v1605, 0.2
        %v1732 = vmul.f32 %v1610, 0.2
        %v1733 = vmul.f32 %v1613, 0.2
        %v1734 = vmul.f32 %v1618, 0.2
        %v1735 = vmul.f32 %v1621, 0.2
        %v1736 = vmul.f32 %v1626, 0.2
        %v1737 = vmul.f32 %v1629, 0.2
        %v1738 = vmul.f32 %v1634, 0.2
        %v1739 = vmul.f32 %v1637, 0.2
        %v1740 = vmul.f32 %v1642, 0.2
        %v1741 = vmul.f32 %v1645, 0.2
        %v1742 = vmul.f32 %v1650, 0.2
        %v1743 = vmul.f32 %v1653, 0.2
        %v1744 = vmul.f32 %v1658, 0.2
        %v1745 = vmul.f32 %v1661, 0.2
        %v1746 = vmul.f32 %v1666, 0.2
        %v1747 = vmul.f32 %v1669, 0.2
        %v1748 = vmul.f32 %v1674, 0.2
        %v1749 = vmul.f32 %v1677, 0.2
        %v1750 = vmul.f32 %v1682, 0.2
        %v1751 = vmul.f32 %v1685, 0.2
        %v1752 = vsel %vm1688, %v1562, %v1720
        %v1753 = vsel %vm1689, %v1565, %v1721
        %v1754 = vsel %vm1690, %v1570, %v1722
        %v1755 = vsel %vm1691, %v1573, %v1723
        %v1756 = vsel %vm1692, %v1578, %v1724
        %v1757 = vsel %vm1693, %v1581, %v1725
        %v1758 = vsel %vm1694, %v1586, %v1726
        %v1759 = vsel %vm1695, %v1589, %v1727
        %v1760 = vsel %vm1696, %v1594, %v1728
        %v1761 = vsel %vm1697, %v1597, %v1729
        %v1762 = vsel %vm1698, %v1602, %v1730
        %v1763 = vsel %vm1699, %v1605, %v1731
        %v1764 = vsel %vm1700, %v1610, %v1732
        %v1765 = vsel %vm1701, %v1613, %v1733
        %v1766 = vsel %vm1702, %v1618, %v1734
        %v1767 = vsel %vm1703, %v1621, %v1735
        %v1768 = vsel %vm1704, %v1626, %v1736
        %v1769 = vsel %vm1705, %v1629, %v1737
        %v1770 = vsel %vm1706, %v1634, %v1738
        %v1771 = vsel %vm1707, %v1637, %v1739
        %v1772 = vsel %vm1708, %v1642, %v1740
        %v1773 = vsel %vm1709, %v1645, %v1741
        %v1774 = vsel %vm1710, %v1650, %v1742
        %v1775 = vsel %vm1711, %v1653, %v1743
        %v1776 = vsel %vm1712, %v1658, %v1744
        %v1777 = vsel %vm1713, %v1661, %v1745
        %v1778 = vsel %vm1714, %v1666, %v1746
        %v1779 = vsel %vm1715, %v1669, %v1747
        %v1780 = vsel %vm1716, %v1674, %v1748
        %v1781 = vsel %vm1717, %v1677, %v1749
        %v1782 = vsel %vm1718, %v1682, %v1750
        %v1783 = vsel %vm1719, %v1685, %v1751
        %v1784 = vld [vmem:[%s5] sm:$0xff]
        %v1785 = vld [vmem:[%s5 + $0x8] sm:$0xff]
        %v1786 = vld [vmem:[%s5 + $0x10] sm:$0xff]
        %v1787 = vld [vmem:[%s5 + $0x18] sm:$0xff]
        %v1788 = vld [vmem:[%s5 + $0x20] sm:$0xff]
        %v1789 = vld [vmem:[%s5 + $0x28] sm:$0xff]
        %v1790 = vld [vmem:[%s5 + $0x30] sm:$0xff]
        %v1791 = vld [vmem:[%s5 + $0x38] sm:$0xff]
        %v1792 = vld [vmem:[%s5 + $0x40] sm:$0xff]
        %v1793 = vld [vmem:[%s5 + $0x48] sm:$0xff]
        %v1794 = vld [vmem:[%s5 + $0x50] sm:$0xff]
        %v1795 = vld [vmem:[%s5 + $0x58] sm:$0xff]
        %v1796 = vld [vmem:[%s5 + $0x60] sm:$0xff]
        %v1797 = vld [vmem:[%s5 + $0x68] sm:$0xff]
        %v1798 = vld [vmem:[%s5 + $0x70] sm:$0xff]
        %v1799 = vld [vmem:[%s5 + $0x78] sm:$0xff]
        %v1800 = vld [vmem:[%s5 + $0x80] sm:$0xff]
        %v1801 = vld [vmem:[%s5 + $0x88] sm:$0xff]
        %v1802 = vld [vmem:[%s5 + $0x90] sm:$0xff]
        %v1803 = vld [vmem:[%s5 + $0x98] sm:$0xff]
        %v1804 = vld [vmem:[%s5 + $0xa0] sm:$0xff]
        %v1805 = vld [vmem:[%s5 + $0xa8] sm:$0xff]
        %v1806 = vld [vmem:[%s5 + $0xb0] sm:$0xff]
        %v1807 = vld [vmem:[%s5 + $0xb8] sm:$0xff]
        %v1808 = vld [vmem:[%s5 + $0xc0] sm:$0xff]
        %v1809 = vld [vmem:[%s5 + $0xc8] sm:$0xff]
        %v1810 = vld [vmem:[%s5 + $0xd0] sm:$0xff]
        %v1811 = vld [vmem:[%s5 + $0xd8] sm:$0xff]
        %v1812 = vld [vmem:[%s5 + $0xe0] sm:$0xff]
        %v1813 = vld [vmem:[%s5 + $0xe8] sm:$0xff]
        %v1814 = vld [vmem:[%s5 + $0xf0] sm:$0xff]
        %v1815 = vld [vmem:[%s5 + $0xf8] sm:$0xff]
        %v1816 = vpack.c.bf16 %v1753, %v1752
        %v1817 = vpack.c.bf16 %v1755, %v1754
        %v1818 = vpack.c.bf16 %v1757, %v1756
        %v1819 = vpack.c.bf16 %v1759, %v1758
        %v1820 = vpack.c.bf16 %v1761, %v1760
        %v1821 = vpack.c.bf16 %v1763, %v1762
        %v1822 = vpack.c.bf16 %v1765, %v1764
        %v1823 = vpack.c.bf16 %v1767, %v1766
        %v1824 = vpack.c.bf16 %v1769, %v1768
        %v1825 = vpack.c.bf16 %v1771, %v1770
        %v1826 = vpack.c.bf16 %v1773, %v1772
        %v1827 = vpack.c.bf16 %v1775, %v1774
        %v1828 = vpack.c.bf16 %v1777, %v1776
        %v1829 = vpack.c.bf16 %v1779, %v1778
        %v1830 = vpack.c.bf16 %v1781, %v1780
        %v1831 = vpack.c.bf16 %v1783, %v1782
        %v1832 = vld [vmem:[%s6] sm:$0xff]
        %v1833 = vld [vmem:[%s6 + $0x8] sm:$0xff]
        %v1834 = vld [vmem:[%s6 + $0x10] sm:$0xff]
        %v1835 = vld [vmem:[%s6 + $0x18] sm:$0xff]
        %v1836 = vld [vmem:[%s6 + $0x20] sm:$0xff]
        %v1837 = vld [vmem:[%s6 + $0x28] sm:$0xff]
        %v1838 = vld [vmem:[%s6 + $0x30] sm:$0xff]
        %v1839 = vld [vmem:[%s6 + $0x38] sm:$0xff]
        %v1840 = vld [vmem:[%s6 + $0x40] sm:$0xff]
        %v1841 = vld [vmem:[%s6 + $0x48] sm:$0xff]
        %v1842 = vld [vmem:[%s6 + $0x50] sm:$0xff]
        %v1843 = vld [vmem:[%s6 + $0x58] sm:$0xff]
        %v1844 = vld [vmem:[%s6 + $0x60] sm:$0xff]
        %v1845 = vld [vmem:[%s6 + $0x68] sm:$0xff]
        %v1846 = vld [vmem:[%s6 + $0x70] sm:$0xff]
        %v1847 = vld [vmem:[%s6 + $0x78] sm:$0xff]
        %v1848 = vld [vmem:[%s6 + $0x80] sm:$0xff]
        %v1849 = vld [vmem:[%s6 + $0x88] sm:$0xff]
        %v1850 = vld [vmem:[%s6 + $0x90] sm:$0xff]
        %v1851 = vld [vmem:[%s6 + $0x98] sm:$0xff]
        %v1852 = vld [vmem:[%s6 + $0xa0] sm:$0xff]
        %v1853 = vld [vmem:[%s6 + $0xa8] sm:$0xff]
        %v1854 = vld [vmem:[%s6 + $0xb0] sm:$0xff]
        %v1855 = vld [vmem:[%s6 + $0xb8] sm:$0xff]
        %v1856 = vld [vmem:[%s6 + $0xc0] sm:$0xff]
        %v1857 = vld [vmem:[%s6 + $0xc8] sm:$0xff]
        %v1858 = vld [vmem:[%s6 + $0xd0] sm:$0xff]
        %v1859 = vld [vmem:[%s6 + $0xd8] sm:$0xff]
        %v1860 = vld [vmem:[%s6 + $0xe0] sm:$0xff]
        %v1861 = vld [vmem:[%s6 + $0xe8] sm:$0xff]
        %v1862 = vld [vmem:[%s6 + $0xf0] sm:$0xff]
        %v1863 = vld [vmem:[%s6 + $0xf8] sm:$0xff]
        %1865 = vset.pattern.permute.xlu0 0
        %1866 = vperm.xlu0 %1865, %v1832
        %v1867 = vpop.permute.xlu0 %1866
        %1870 = vset.pattern.permute.xlu0 0
        %1871 = vperm.xlu0 %1870, %v1833
        %v1872 = vpop.permute.xlu0 %1871
        %1875 = vset.pattern.permute.xlu0 0
        %1876 = vperm.xlu0 %1875, %v1834
        %v1877 = vpop.permute.xlu0 %1876
        %1880 = vset.pattern.permute.xlu0 0
        %1881 = vperm.xlu0 %1880, %v1835
        %v1882 = vpop.permute.xlu0 %1881
        %1885 = vset.pattern.permute.xlu0 0
        %1886 = vperm.xlu0 %1885, %v1836
        %v1887 = vpop.permute.xlu0 %1886
        %1890 = vset.pattern.permute.xlu0 0
        %1891 = vperm.xlu0 %1890, %v1837
        %v1892 = vpop.permute.xlu0 %1891
        %1895 = vset.pattern.permute.xlu0 0
        %1896 = vperm.xlu0 %1895, %v1838
        %v1897 = vpop.permute.xlu0 %1896
        %1900 = vset.pattern.permute.xlu0 0
        %1901 = vperm.xlu0 %1900, %v1839
        %v1902 = vpop.permute.xlu0 %1901
        %1905 = vset.pattern.permute.xlu0 0
        %1906 = vperm.xlu0 %1905, %v1840
        %v1907 = vpop.permute.xlu0 %1906
        %1910 = vset.pattern.permute.xlu0 0
        %1911 = vperm.xlu0 %1910, %v1841
        %v1912 = vpop.permute.xlu0 %1911
        %1915 = vset.pattern.permute.xlu0 0
        %1916 = vperm.xlu0 %1915, %v1842
        %v1917 = vpop.permute.xlu0 %1916
        %1920 = vset.pattern.permute.xlu0 0
        %1921 = vperm.xlu0 %1920, %v1843
        %v1922 = vpop.permute.xlu0 %1921
        %1925 = vset.pattern.permute.xlu0 0
        %1926 = vperm.xlu0 %1925, %v1844
        %v1927 = vpop.permute.xlu0 %1926
        %1930 = vset.pattern.permute.xlu0 0
        %1931 = vperm.xlu0 %1930, %v1845
        %v1932 = vpop.permute.xlu0 %1931
        %1935 = vset.pattern.permute.xlu0 0
        %1936 = vperm.xlu0 %1935, %v1846
        %v1937 = vpop.permute.xlu0 %1936
        %1940 = vset.pattern.permute.xlu0 0
        %1941 = vperm.xlu0 %1940, %v1847
        %v1942 = vpop.permute.xlu0 %1941
        %1945 = vset.pattern.permute.xlu0 0
        %1946 = vperm.xlu0 %1945, %v1848
        %v1947 = vpop.permute.xlu0 %1946
        %1950 = vset.pattern.permute.xlu0 0
        %1951 = vperm.xlu0 %1950, %v1849
        %v1952 = vpop.permute.xlu0 %1951
        %1955 = vset.pattern.permute.xlu0 0
        %1956 = vperm.xlu0 %1955, %v1850
        %v1957 = vpop.permute.xlu0 %1956
        %1960 = vset.pattern.permute.xlu0 0
        %1961 = vperm.xlu0 %1960, %v1851
        %v1962 = vpop.permute.xlu0 %1961
        %1965 = vset.pattern.permute.xlu0 0
        %1966 = vperm.xlu0 %1965, %v1852
        %v1967 = vpop.permute.xlu0 %1966
        %1970 = vset.pattern.permute.xlu0 0
        %1971 = vperm.xlu0 %1970, %v1853
        %v1972 = vpop.permute.xlu0 %1971
        %1975 = vset.pattern.permute.xlu0 0
        %1976 = vperm.xlu0 %1975, %v1854
        %v1977 = vpop.permute.xlu0 %1976
        %1980 = vset.pattern.permute.xlu0 0
        %1981 = vperm.xlu0 %1980, %v1855
        %v1982 = vpop.permute.xlu0 %1981
        %1985 = vset.pattern.permute.xlu0 0
        %1986 = vperm.xlu0 %1985, %v1856
        %v1987 = vpop.permute.xlu0 %1986
        %1990 = vset.pattern.permute.xlu0 0
        %1991 = vperm.xlu0 %1990, %v1857
        %v1992 = vpop.permute.xlu0 %1991
        %1995 = vset.pattern.permute.xlu0 0
        %1996 = vperm.xlu0 %1995, %v1858
        %v1997 = vpop.permute.xlu0 %1996
        %2000 = vset.pattern.permute.xlu0 0
        %2001 = vperm.xlu0 %2000, %v1859
        %v2002 = vpop.permute.xlu0 %2001
        %2005 = vset.pattern.permute.xlu0 0
        %2006 = vperm.xlu0 %2005, %v1860
        %v2007 = vpop.permute.xlu0 %2006
        %2010 = vset.pattern.permute.xlu0 0
        %2011 = vperm.xlu0 %2010, %v1861
        %v2012 = vpop.permute.xlu0 %2011
        %2015 = vset.pattern.permute.xlu0 0
        %2016 = vperm.xlu0 %2015, %v1862
        %v2017 = vpop.permute.xlu0 %2016
        %2020 = vset.pattern.permute.xlu0 0
        %2021 = vperm.xlu0 %2020, %v1863
        %v2022 = vpop.permute.xlu0 %2021
        %v2056 = vunpack.c.l.b16 %v1784
        %v2057 = vunpack.c.h.b16 %v1784
        %v2058 = vunpack.c.l.b16 %v1785
        %v2059 = vunpack.c.h.b16 %v1785
        %v2060 = vunpack.c.l.b16 %v1786
        %v2061 = vunpack.c.h.b16 %v1786
        %v2062 = vunpack.c.l.b16 %v1787
        %v2063 = vunpack.c.h.b16 %v1787
        %v2064 = vunpack.c.l.b16 %v1788
        %v2065 = vunpack.c.h.b16 %v1788
        %v2066 = vunpack.c.l.b16 %v1789
        %v2067 = vunpack.c.h.b16 %v1789
        %v2068 = vunpack.c.l.b16 %v1790
        %v2069 = vunpack.c.h.b16 %v1790
        %v2070 = vunpack.c.l.b16 %v1791
        %v2071 = vunpack.c.h.b16 %v1791
        %v2072 = vunpack.c.l.b16 %v1792
        %v2073 = vunpack.c.h.b16 %v1792
        %v2074 = vunpack.c.l.b16 %v1793
        %v2075 = vunpack.c.h.b16 %v1793
        %v2076 = vunpack.c.l.b16 %v1794
        %v2077 = vunpack.c.h.b16 %v1794
        %v2078 = vunpack.c.l.b16 %v1795
        %v2079 = vunpack.c.h.b16 %v1795
        %v2080 = vunpack.c.l.b16 %v1796
        %v2081 = vunpack.c.h.b16 %v1796
        %v2082 = vunpack.c.l.b16 %v1797
        %v2083 = vunpack.c.h.b16 %v1797
        %v2084 = vunpack.c.l.b16 %v1798
        %v2085 = vunpack.c.h.b16 %v1798
        %v2086 = vunpack.c.l.b16 %v1799
        %v2087 = vunpack.c.h.b16 %v1799
        %v2088 = vunpack.c.l.b16 %v1800
        %v2089 = vunpack.c.h.b16 %v1800
        %v2090 = vunpack.c.l.b16 %v1801
        %v2091 = vunpack.c.h.b16 %v1801
        %v2092 = vunpack.c.l.b16 %v1802
        %v2093 = vunpack.c.h.b16 %v1802
        %v2094 = vunpack.c.l.b16 %v1803
        %v2095 = vunpack.c.h.b16 %v1803
        %v2096 = vunpack.c.l.b16 %v1804
        %v2097 = vunpack.c.h.b16 %v1804
        %v2098 = vunpack.c.l.b16 %v1805
        %v2099 = vunpack.c.h.b16 %v1805
        %v2100 = vunpack.c.l.b16 %v1806
        %v2101 = vunpack.c.h.b16 %v1806
        %v2102 = vunpack.c.l.b16 %v1807
        %v2103 = vunpack.c.h.b16 %v1807
        %v2104 = vunpack.c.l.b16 %v1808
        %v2105 = vunpack.c.h.b16 %v1808
        %v2106 = vunpack.c.l.b16 %v1809
        %v2107 = vunpack.c.h.b16 %v1809
        %v2108 = vunpack.c.l.b16 %v1810
        %v2109 = vunpack.c.h.b16 %v1810
        %v2110 = vunpack.c.l.b16 %v1811
        %v2111 = vunpack.c.h.b16 %v1811
        %v2112 = vunpack.c.l.b16 %v1812
        %v2113 = vunpack.c.h.b16 %v1812
        %v2114 = vunpack.c.l.b16 %v1813
        %v2115 = vunpack.c.h.b16 %v1813
        %v2116 = vunpack.c.l.b16 %v1814
        %v2117 = vunpack.c.h.b16 %v1814
        %v2118 = vunpack.c.l.b16 %v1815
        %v2119 = vunpack.c.h.b16 %v1815
        %v2120 = vpack.c.b16 %v2058, %v2056
        %v2121 = vpack.c.b16 %v2059, %v2057
        %v2122 = vpack.c.b16 %v2062, %v2060
        %v2123 = vpack.c.b16 %v2063, %v2061
        %v2124 = vpack.c.b16 %v2066, %v2064
        %v2125 = vpack.c.b16 %v2067, %v2065
        %v2126 = vpack.c.b16 %v2070, %v2068
        %v2127 = vpack.c.b16 %v2071, %v2069
        %v2128 = vpack.c.b16 %v2074, %v2072
        %v2129 = vpack.c.b16 %v2075, %v2073
        %v2130 = vpack.c.b16 %v2078, %v2076
        %v2131 = vpack.c.b16 %v2079, %v2077
        %v2132 = vpack.c.b16 %v2082, %v2080
        %v2133 = vpack.c.b16 %v2083, %v2081
        %v2134 = vpack.c.b16 %v2086, %v2084
        %v2135 = vpack.c.b16 %v2087, %v2085
        %v2136 = vpack.c.b16 %v2090, %v2088
        %v2137 = vpack.c.b16 %v2091, %v2089
        %v2138 = vpack.c.b16 %v2094, %v2092
        %v2139 = vpack.c.b16 %v2095, %v2093
        %v2140 = vpack.c.b16 %v2098, %v2096
        %v2141 = vpack.c.b16 %v2099, %v2097
        %v2142 = vpack.c.b16 %v2102, %v2100
        %v2143 = vpack.c.b16 %v2103, %v2101
        %v2144 = vpack.c.b16 %v2106, %v2104
        %v2145 = vpack.c.b16 %v2107, %v2105
        %v2146 = vpack.c.b16 %v2110, %v2108
        %v2147 = vpack.c.b16 %v2111, %v2109
        %v2148 = vpack.c.b16 %v2114, %v2112
        %v2149 = vpack.c.b16 %v2115, %v2113
        %v2150 = vpack.c.b16 %v2118, %v2116
        %v2151 = vpack.c.b16 %v2119, %v2117
        %2184 = vmatprep.subr.bf16.mxu0 0
        %2185 = vmatpush1.bf16.msra.mxu0 %v1816
        %2186 = vmatprep.subr.bf16.mxu0 0
        %2187 = vmatpush1.bf16.msra.mxu0 %v1817
        %2188 = vmatprep.subr.bf16.mxu0 0
        %2189 = vmatpush1.bf16.msra.mxu0 %v1818
        %2190 = vmatprep.subr.bf16.mxu0 0
        %2191 = vmatpush1.bf16.msra.mxu0 %v1819
        %2192 = vmatprep.subr.bf16.mxu0 0
        %2193 = vmatpush1.bf16.msra.mxu0 %v1820
        %2194 = vmatprep.subr.bf16.mxu0 0
        %2195 = vmatpush1.bf16.msra.mxu0 %v1821
        %2196 = vmatprep.subr.bf16.mxu0 0
        %2197 = vmatpush1.bf16.msra.mxu0 %v1822
        %2198 = vmatprep.subr.bf16.mxu0 0
        %2199 = vmatpush1.bf16.msra.mxu0 %v1823
        %2200 = vmatprep.subr.bf16.mxu0 0
        %2201 = vmatpush1.bf16.msra.mxu0 %v1824
        %2202 = vmatprep.subr.bf16.mxu0 0
        %2203 = vmatpush1.bf16.msra.mxu0 %v1825
        %2204 = vmatprep.subr.bf16.mxu0 0
        %2205 = vmatpush1.bf16.msra.mxu0 %v1826
        %2206 = vmatprep.subr.bf16.mxu0 0
        %2207 = vmatpush1.bf16.msra.mxu0 %v1827
        %2208 = vmatprep.subr.bf16.mxu0 0
        %2209 = vmatpush1.bf16.msra.mxu0 %v1828
        %2210 = vmatprep.subr.bf16.mxu0 0
        %2211 = vmatpush1.bf16.msra.mxu0 %v1829
        %2212 = vmatprep.subr.bf16.mxu0 0
        %2213 = vmatpush1.bf16.msra.mxu0 %v1830
        %2214 = vmatprep.subr.bf16.mxu0 0
        %2215 = vmatpush1.bf16.msra.mxu0 %v1831
        %2216 = vmatprep.mubr.bf16.mxu0 %v2121
        %2217 = vmatmul.mubr.bf16.gmra.mrb[0].mxu0 %v2120
        %v2218 = vpop.f32.mrb[0].mxu0
        %v2219 = vadd.f32 %v1867, %v2218
        %v2220 = vpop.f32.mrb[0].mxu0
        %v2221 = vpop.f32.mrb[0].mxu0
        %v2222 = vadd.f32 %v1872, %v2221
        %v2223 = vpop.f32.mrb[0].mxu0
        %2224 = vmatprep.mubr.bf16.mxu0 %v2123
        %2225 = vmatmul.mubr.bf16.gmra.mrb[0].mxu0 %v2122
        %v2226 = vpop.f32.mrb[0].mxu0
        %v2227 = vadd.f32 %v1877, %v2226
        %v2228 = vpop.f32.mrb[0].mxu0
        %v2229 = vpop.f32.mrb[0].mxu0
        %v2230 = vadd.f32 %v1882, %v2229
        %v2231 = vpop.f32.mrb[0].mxu0
        %2232 = vmatprep.mubr.bf16.mxu0 %v2125
        %2233 = vmatmul.mubr.bf16.gmra.mrb[0].mxu0 %v2124
        %v2234 = vpop.f32.mrb[0].mxu0
        %v2235 = vadd.f32 %v1887, %v2234
        %v2236 = vpop.f32.mrb[0].mxu0
        %v2237 = vpop.f32.mrb[0].mxu0
        %v2238 = vadd.f32 %v1892, %v2237
        %v2239 = vpop.f32.mrb[0].mxu0
        %2240 = vmatprep.mubr.bf16.mxu0 %v2127
        %2241 = vmatmul.mubr.bf16.gmra.mrb[0].mxu0 %v2126
        %v2242 = vpop.f32.mrb[0].mxu0
        %v2243 = vadd.f32 %v1897, %v2242
        %v2244 = vpop.f32.mrb[0].mxu0
        %v2245 = vpop.f32.mrb[0].mxu0
        %v2246 = vadd.f32 %v1902, %v2245
        %v2247 = vpop.f32.mrb[0].mxu0
        %2248 = vmatprep.mubr.bf16.mxu0 %v2129
        %2249 = vmatmul.mubr.bf16.gmra.mrb[0].mxu0 %v2128
        %v2250 = vpop.f32.mrb[0].mxu0
        %v2251 = vadd.f32 %v1907, %v2250
        %v2252 = vpop.f32.mrb[0].mxu0
        %v2253 = vpop.f32.mrb[0].mxu0
        %v2254 = vadd.f32 %v1912, %v2253
        %v2255 = vpop.f32.mrb[0].mxu0
        %2256 = vmatprep.mubr.bf16.mxu0 %v2131
        %2257 = vmatmul.mubr.bf16.gmra.mrb[0].mxu0 %v2130
        %v2258 = vpop.f32.mrb[0].mxu0
        %v2259 = vadd.f32 %v1917, %v2258
        %v2260 = vpop.f32.mrb[0].mxu0
        %v2261 = vpop.f32.mrb[0].mxu0
        %v2262 = vadd.f32 %v1922, %v2261
        %v2263 = vpop.f32.mrb[0].mxu0
        %2264 = vmatprep.mubr.bf16.mxu0 %v2133
        %2265 = vmatmul.mubr.bf16.gmra.mrb[0].mxu0 %v2132
        %v2266 = vpop.f32.mrb[0].mxu0
        %v2267 = vadd.f32 %v1927, %v2266
        %v2268 = vpop.f32.mrb[0].mxu0
        %v2269 = vpop.f32.mrb[0].mxu0
        %v2270 = vadd.f32 %v1932, %v2269
        %v2271 = vpop.f32.mrb[0].mxu0
        %2272 = vmatprep.mubr.bf16.mxu0 %v2135
        %2273 = vmatmul.mubr.bf16.gmra.mrb[0].mxu0 %v2134
        %v2274 = vpop.f32.mrb[0].mxu0
        %v2275 = vadd.f32 %v1937, %v2274
        %v2276 = vpop.f32.mrb[0].mxu0
        %v2277 = vpop.f32.mrb[0].mxu0
        %v2278 = vadd.f32 %v1942, %v2277
        %v2279 = vpop.f32.mrb[0].mxu0
        %2280 = vmatprep.mubr.bf16.mxu0 %v2137
        %2281 = vmatmul.mubr.bf16.gmra.mrb[0].mxu0 %v2136
        %v2282 = vpop.f32.mrb[0].mxu0
        %v2283 = vadd.f32 %v1947, %v2282
        %v2284 = vpop.f32.mrb[0].mxu0
        %v2285 = vpop.f32.mrb[0].mxu0
        %v2286 = vadd.f32 %v1952, %v2285
        %v2287 = vpop.f32.mrb[0].mxu0
        %2288 = vmatprep.mubr.bf16.mxu0 %v2139
        %2289 = vmatmul.mubr.bf16.gmra.mrb[0].mxu0 %v2138
        %v2290 = vpop.f32.mrb[0].mxu0
        %v2291 = vadd.f32 %v1957, %v2290
        %v2292 = vpop.f32.mrb[0].mxu0
        %v2293 = vpop.f32.mrb[0].mxu0
        %v2294 = vadd.f32 %v1962, %v2293
        %v2295 = vpop.f32.mrb[0].mxu0
        %2296 = vmatprep.mubr.bf16.mxu0 %v2141
        %2297 = vmatmul.mubr.bf16.gmra.mrb[0].mxu0 %v2140
        %v2298 = vpop.f32.mrb[0].mxu0
        %v2299 = vadd.f32 %v1967, %v2298
        %v2300 = vpop.f32.mrb[0].mxu0
        %v2301 = vpop.f32.mrb[0].mxu0
        %v2302 = vadd.f32 %v1972, %v2301
        %v2303 = vpop.f32.mrb[0].mxu0
        %2304 = vmatprep.mubr.bf16.mxu0 %v2143
        %2305 = vmatmul.mubr.bf16.gmra.mrb[0].mxu0 %v2142
        %v2306 = vpop.f32.mrb[0].mxu0
        %v2307 = vadd.f32 %v1977, %v2306
        %v2308 = vpop.f32.mrb[0].mxu0
        %v2309 = vpop.f32.mrb[0].mxu0
        %v2310 = vadd.f32 %v1982, %v2309
        %v2311 = vpop.f32.mrb[0].mxu0
        %2312 = vmatprep.mubr.bf16.mxu0 %v2145
        %2313 = vmatmul.mubr.bf16.gmra.mrb[0].mxu0 %v2144
        %v2314 = vpop.f32.mrb[0].mxu0
        %v2315 = vadd.f32 %v1987, %v2314
        %v2316 = vpop.f32.mrb[0].mxu0
        %v2317 = vpop.f32.mrb[0].mxu0
        %v2318 = vadd.f32 %v1992, %v2317
        %v2319 = vpop.f32.mrb[0].mxu0
        %2320 = vmatprep.mubr.bf16.mxu0 %v2147
        %2321 = vmatmul.mubr.bf16.gmra.mrb[0].mxu0 %v2146
        %v2322 = vpop.f32.mrb[0].mxu0
        %v2323 = vadd.f32 %v1997, %v2322
        %v2324 = vpop.f32.mrb[0].mxu0
        %v2325 = vpop.f32.mrb[0].mxu0
        %v2326 = vadd.f32 %v2002, %v2325
        %v2327 = vpop.f32.mrb[0].mxu0
        %2328 = vmatprep.mubr.bf16.mxu0 %v2149
        %2329 = vmatmul.mubr.bf16.gmra.mrb[0].mxu0 %v2148
        %v2330 = vpop.f32.mrb[0].mxu0
        %v2331 = vadd.f32 %v2007, %v2330
        %v2332 = vpop.f32.mrb[0].mxu0
        %v2333 = vpop.f32.mrb[0].mxu0
        %v2334 = vadd.f32 %v2012, %v2333
        %v2335 = vpop.f32.mrb[0].mxu0
        %2336 = vmatprep.mubr.bf16.mxu0 %v2151
        %2337 = vmatmul.mubr.bf16.gmra.mrb[0].mxu0 %v2150
        %v2338 = vpop.f32.mrb[0].mxu0
        %v2339 = vadd.f32 %v2017, %v2338
        %v2340 = vpop.f32.mrb[0].mxu0
        %v2341 = vpop.f32.mrb[0].mxu0
        %v2342 = vadd.f32 %v2022, %v2341
        %v2343 = vpop.f32.mrb[0].mxu0
        %2344 = vdwg.mxu0
        %vm2345 = vcmp.ge.f32.partialorder %v2219, 0.0
        %vm2346 = vcmp.ge.f32.partialorder %v2222, 0.0
        %vm2347 = vcmp.ge.f32.partialorder %v2227, 0.0
        %vm2348 = vcmp.ge.f32.partialorder %v2230, 0.0
        %vm2349 = vcmp.ge.f32.partialorder %v2235, 0.0
        %vm2350 = vcmp.ge.f32.partialorder %v2238, 0.0
        %vm2351 = vcmp.ge.f32.partialorder %v2243, 0.0
        %vm2352 = vcmp.ge.f32.partialorder %v2246, 0.0
        %vm2353 = vcmp.ge.f32.partialorder %v2251, 0.0
        %vm2354 = vcmp.ge.f32.partialorder %v2254, 0.0
        %vm2355 = vcmp.ge.f32.partialorder %v2259, 0.0
        %vm2356 = vcmp.ge.f32.partialorder %v2262, 0.0
        %vm2357 = vcmp.ge.f32.partialorder %v2267, 0.0
        %vm2358 = vcmp.ge.f32.partialorder %v2270, 0.0
        %vm2359 = vcmp.ge.f32.partialorder %v2275, 0.0
        %vm2360 = vcmp.ge.f32.partialorder %v2278, 0.0
        %vm2361 = vcmp.ge.f32.partialorder %v2283, 0.0
        %vm2362 = vcmp.ge.f32.partialorder %v2286, 0.0
        %vm2363 = vcmp.ge.f32.partialorder %v2291, 0.0
        %vm2364 = vcmp.ge.f32.partialorder %v2294, 0.0
        %vm2365 = vcmp.ge.f32.partialorder %v2299, 0.0
        %vm2366 = vcmp.ge.f32.partialorder %v2302, 0.0
        %vm2367 = vcmp.ge.f32.partialorder %v2307, 0.0
        %vm2368 = vcmp.ge.f32.partialorder %v2310, 0.0
        %vm2369 = vcmp.ge.f32.partialorder %v2315, 0.0
        %vm2370 = vcmp.ge.f32.partialorder %v2318, 0.0
        %vm2371 = vcmp.ge.f32.partialorder %v2323, 0.0
        %vm2372 = vcmp.ge.f32.partialorder %v2326, 0.0
        %vm2373 = vcmp.ge.f32.partialorder %v2331, 0.0
        %vm2374 = vcmp.ge.f32.partialorder %v2334, 0.0
        %vm2375 = vcmp.ge.f32.partialorder %v2339, 0.0
        %vm2376 = vcmp.ge.f32.partialorder %v2342, 0.0
        %v2377 = vmul.f32 %v2219, 0.2
        %v2378 = vmul.f32 %v2222, 0.2
        %v2379 = vmul.f32 %v2227, 0.2
        %v2380 = vmul.f32 %v2230, 0.2
        %v2381 = vmul.f32 %v2235, 0.2
        %v2382 = vmul.f32 %v2238, 0.2
        %v2383 = vmul.f32 %v2243, 0.2
        %v2384 = vmul.f32 %v2246, 0.2
        %v2385 = vmul.f32 %v2251, 0.2
        %v2386 = vmul.f32 %v2254, 0.2
        %v2387 = vmul.f32 %v2259, 0.2
        %v2388 = vmul.f32 %v2262, 0.2
        %v2389 = vmul.f32 %v2267, 0.2
        %v2390 = vmul.f32 %v2270, 0.2
        %v2391 = vmul.f32 %v2275, 0.2
        %v2392 = vmul.f32 %v2278, 0.2
        %v2393 = vmul.f32 %v2283, 0.2
        %v2394 = vmul.f32 %v2286, 0.2
        %v2395 = vmul.f32 %v2291, 0.2
        %v2396 = vmul.f32 %v2294, 0.2
        %v2397 = vmul.f32 %v2299, 0.2
        %v2398 = vmul.f32 %v2302, 0.2
        %v2399 = vmul.f32 %v2307, 0.2
        %v2400 = vmul.f32 %v2310, 0.2
        %v2401 = vmul.f32 %v2315, 0.2
        %v2402 = vmul.f32 %v2318, 0.2
        %v2403 = vmul.f32 %v2323, 0.2
        %v2404 = vmul.f32 %v2326, 0.2
        %v2405 = vmul.f32 %v2331, 0.2
        %v2406 = vmul.f32 %v2334, 0.2
        %v2407 = vmul.f32 %v2339, 0.2
        %v2408 = vmul.f32 %v2342, 0.2
        %v2409 = vsel %vm2345, %v2219, %v2377
        %v2410 = vsel %vm2346, %v2222, %v2378
        %v2411 = vsel %vm2347, %v2227, %v2379
        %v2412 = vsel %vm2348, %v2230, %v2380
        %v2413 = vsel %vm2349, %v2235, %v2381
        %v2414 = vsel %vm2350, %v2238, %v2382
        %v2415 = vsel %vm2351, %v2243, %v2383
        %v2416 = vsel %vm2352, %v2246, %v2384
        %v2417 = vsel %vm2353, %v2251, %v2385
        %v2418 = vsel %vm2354, %v2254, %v2386
        %v2419 = vsel %vm2355, %v2259, %v2387
        %v2420 = vsel %vm2356, %v2262, %v2388
        %v2421 = vsel %vm2357, %v2267, %v2389
        %v2422 = vsel %vm2358, %v2270, %v2390
        %v2423 = vsel %vm2359, %v2275, %v2391
        %v2424 = vsel %vm2360, %v2278, %v2392
        %v2425 = vsel %vm2361, %v2283, %v2393
        %v2426 = vsel %vm2362, %v2286, %v2394
        %v2427 = vsel %vm2363, %v2291, %v2395
        %v2428 = vsel %vm2364, %v2294, %v2396
        %v2429 = vsel %vm2365, %v2299, %v2397
        %v2430 = vsel %vm2366, %v2302, %v2398
        %v2431 = vsel %vm2367, %v2307, %v2399
        %v2432 = vsel %vm2368, %v2310, %v2400
        %v2433 = vsel %vm2369, %v2315, %v2401
        %v2434 = vsel %vm2370, %v2318, %v2402
        %v2435 = vsel %vm2371, %v2323, %v2403
        %v2436 = vsel %vm2372, %v2326, %v2404
        %v2437 = vsel %vm2373, %v2331, %v2405
        %v2438 = vsel %vm2374, %v2334, %v2406
        %v2439 = vsel %vm2375, %v2339, %v2407
        %v2440 = vsel %vm2376, %v2342, %v2408
        %v2441 = vld [vmem:[%s7] sm:$0xff]
        %v2442 = vld [vmem:[%s7 + $0x8] sm:$0xff]
        %v2443 = vld [vmem:[%s7 + $0x10] sm:$0xff]
        %v2444 = vld [vmem:[%s7 + $0x18] sm:$0xff]
        %v2445 = vld [vmem:[%s7 + $0x20] sm:$0xff]
        %v2446 = vld [vmem:[%s7 + $0x28] sm:$0xff]
        %v2447 = vld [vmem:[%s7 + $0x30] sm:$0xff]
        %v2448 = vld [vmem:[%s7 + $0x38] sm:$0xff]
        %v2449 = vld [vmem:[%s7 + $0x40] sm:$0xff]
        %v2450 = vld [vmem:[%s7 + $0x48] sm:$0xff]
        %v2451 = vld [vmem:[%s7 + $0x50] sm:$0xff]
        %v2452 = vld [vmem:[%s7 + $0x58] sm:$0xff]
        %v2453 = vld [vmem:[%s7 + $0x60] sm:$0xff]
        %v2454 = vld [vmem:[%s7 + $0x68] sm:$0xff]
        %v2455 = vld [vmem:[%s7 + $0x70] sm:$0xff]
        %v2456 = vld [vmem:[%s7 + $0x78] sm:$0xff]
        %v2457 = vld [vmem:[%s7 + $0x80] sm:$0xff]
        %v2458 = vld [vmem:[%s7 + $0x88] sm:$0xff]
        %v2459 = vld [vmem:[%s7 + $0x90] sm:$0xff]
        %v2460 = vld [vmem:[%s7 + $0x98] sm:$0xff]
        %v2461 = vld [vmem:[%s7 + $0xa0] sm:$0xff]
        %v2462 = vld [vmem:[%s7 + $0xa8] sm:$0xff]
        %v2463 = vld [vmem:[%s7 + $0xb0] sm:$0xff]
        %v2464 = vld [vmem:[%s7 + $0xb8] sm:$0xff]
        %v2465 = vld [vmem:[%s7 + $0xc0] sm:$0xff]
        %v2466 = vld [vmem:[%s7 + $0xc8] sm:$0xff]
        %v2467 = vld [vmem:[%s7 + $0xd0] sm:$0xff]
        %v2468 = vld [vmem:[%s7 + $0xd8] sm:$0xff]
        %v2469 = vld [vmem:[%s7 + $0xe0] sm:$0xff]
        %v2470 = vld [vmem:[%s7 + $0xe8] sm:$0xff]
        %v2471 = vld [vmem:[%s7 + $0xf0] sm:$0xff]
        %v2472 = vld [vmem:[%s7 + $0xf8] sm:$0xff]
        %v2473 = vpack.c.bf16 %v2410, %v2409
        %v2474 = vpack.c.bf16 %v2412, %v2411
        %v2475 = vpack.c.bf16 %v2414, %v2413
        %v2476 = vpack.c.bf16 %v2416, %v2415
        %v2477 = vpack.c.bf16 %v2418, %v2417
        %v2478 = vpack.c.bf16 %v2420, %v2419
        %v2479 = vpack.c.bf16 %v2422, %v2421
        %v2480 = vpack.c.bf16 %v2424, %v2423
        %v2481 = vpack.c.bf16 %v2426, %v2425
        %v2482 = vpack.c.bf16 %v2428, %v2427
        %v2483 = vpack.c.bf16 %v2430, %v2429
        %v2484 = vpack.c.bf16 %v2432, %v2431
        %v2485 = vpack.c.bf16 %v2434, %v2433
        %v2486 = vpack.c.bf16 %v2436, %v2435
        %v2487 = vpack.c.bf16 %v2438, %v2437
        %v2488 = vpack.c.bf16 %v2440, %v2439
        %v2489 = vld [vmem:[%s8] sm:$0xff]
        %v2490 = vld [vmem:[%s8 + $0x8] sm:$0xff]
        %v2491 = vld [vmem:[%s8 + $0x10] sm:$0xff]
        %v2492 = vld [vmem:[%s8 + $0x18] sm:$0xff]
        %v2493 = vld [vmem:[%s8 + $0x20] sm:$0xff]
        %v2494 = vld [vmem:[%s8 + $0x28] sm:$0xff]
        %v2495 = vld [vmem:[%s8 + $0x30] sm:$0xff]
        %v2496 = vld [vmem:[%s8 + $0x38] sm:$0xff]
        %v2497 = vld [vmem:[%s8 + $0x40] sm:$0xff]
        %v2498 = vld [vmem:[%s8 + $0x48] sm:$0xff]
        %v2499 = vld [vmem:[%s8 + $0x50] sm:$0xff]
        %v2500 = vld [vmem:[%s8 + $0x58] sm:$0xff]
        %v2501 = vld [vmem:[%s8 + $0x60] sm:$0xff]
        %v2502 = vld [vmem:[%s8 + $0x68] sm:$0xff]
        %v2503 = vld [vmem:[%s8 + $0x70] sm:$0xff]
        %v2504 = vld [vmem:[%s8 + $0x78] sm:$0xff]
        %v2505 = vld [vmem:[%s8 + $0x80] sm:$0xff]
        %v2506 = vld [vmem:[%s8 + $0x88] sm:$0xff]
        %v2507 = vld [vmem:[%s8 + $0x90] sm:$0xff]
        %v2508 = vld [vmem:[%s8 + $0x98] sm:$0xff]
        %v2509 = vld [vmem:[%s8 + $0xa0] sm:$0xff]
        %v2510 = vld [vmem:[%s8 + $0xa8] sm:$0xff]
        %v2511 = vld [vmem:[%s8 + $0xb0] sm:$0xff]
        %v2512 = vld [vmem:[%s8 + $0xb8] sm:$0xff]
        %v2513 = vld [vmem:[%s8 + $0xc0] sm:$0xff]
        %v2514 = vld [vmem:[%s8 + $0xc8] sm:$0xff]
        %v2515 = vld [vmem:[%s8 + $0xd0] sm:$0xff]
        %v2516 = vld [vmem:[%s8 + $0xd8] sm:$0xff]
        %v2517 = vld [vmem:[%s8 + $0xe0] sm:$0xff]
        %v2518 = vld [vmem:[%s8 + $0xe8] sm:$0xff]
        %v2519 = vld [vmem:[%s8 + $0xf0] sm:$0xff]
        %v2520 = vld [vmem:[%s8 + $0xf8] sm:$0xff]
        %2522 = vset.pattern.permute.xlu0 0
        %2523 = vperm.xlu0 %2522, %v2489
        %v2524 = vpop.permute.xlu0 %2523
        %2527 = vset.pattern.permute.xlu0 0
        %2528 = vperm.xlu0 %2527, %v2490
        %v2529 = vpop.permute.xlu0 %2528
        %2532 = vset.pattern.permute.xlu0 0
        %2533 = vperm.xlu0 %2532, %v2491
        %v2534 = vpop.permute.xlu0 %2533
        %2537 = vset.pattern.permute.xlu0 0
        %2538 = vperm.xlu0 %2537, %v2492
        %v2539 = vpop.permute.xlu0 %2538
        %2542 = vset.pattern.permute.xlu0 0
        %2543 = vperm.xlu0 %2542, %v2493
        %v2544 = vpop.permute.xlu0 %2543
        %2547 = vset.pattern.permute.xlu0 0
        %2548 = vperm.xlu0 %2547, %v2494
        %v2549 = vpop.permute.xlu0 %2548
        %2552 = vset.pattern.permute.xlu0 0
        %2553 = vperm.xlu0 %2552, %v2495
        %v2554 = vpop.permute.xlu0 %2553
        %2557 = vset.pattern.permute.xlu0 0
        %2558 = vperm.xlu0 %2557, %v2496
        %v2559 = vpop.permute.xlu0 %2558
        %2562 = vset.pattern.permute.xlu0 0
        %2563 = vperm.xlu0 %2562, %v2497
        %v2564 = vpop.permute.xlu0 %2563
        %2567 = vset.pattern.permute.xlu0 0
        %2568 = vperm.xlu0 %2567, %v2498
        %v2569 = vpop.permute.xlu0 %2568
        %2572 = vset.pattern.permute.xlu0 0
        %2573 = vperm.xlu0 %2572, %v2499
        %v2574 = vpop.permute.xlu0 %2573
        %2577 = vset.pattern.permute.xlu0 0
        %2578 = vperm.xlu0 %2577, %v2500
        %v2579 = vpop.permute.xlu0 %2578
        %2582 = vset.pattern.permute.xlu0 0
        %2583 = vperm.xlu0 %2582, %v2501
        %v2584 = vpop.permute.xlu0 %2583
        %2587 = vset.pattern.permute.xlu0 0
        %2588 = vperm.xlu0 %2587, %v2502
        %v2589 = vpop.permute.xlu0 %2588
        %2592 = vset.pattern.permute.xlu0 0
        %2593 = vperm.xlu0 %2592, %v2503
        %v2594 = vpop.permute.xlu0 %2593
        %2597 = vset.pattern.permute.xlu0 0
        %2598 = vperm.xlu0 %2597, %v2504
        %v2599 = vpop.permute.xlu0 %2598
        %2602 = vset.pattern.permute.xlu0 0
        %2603 = vperm.xlu0 %2602, %v2505
        %v2604 = vpop.permute.xlu0 %2603
        %2607 = vset.pattern.permute.xlu0 0
        %2608 = vperm.xlu0 %2607, %v2506
        %v2609 = vpop.permute.xlu0 %2608
        %2612 = vset.pattern.permute.xlu0 0
        %2613 = vperm.xlu0 %2612, %v2507
        %v2614 = vpop.permute.xlu0 %2613
        %2617 = vset.pattern.permute.xlu0 0
        %2618 = vperm.xlu0 %2617, %v2508
        %v2619 = vpop.permute.xlu0 %2618
        %2622 = vset.pattern.permute.xlu0 0
        %2623 = vperm.xlu0 %2622, %v2509
        %v2624 = vpop.permute.xlu0 %2623
        %2627 = vset.pattern.permute.xlu0 0
        %2628 = vperm.xlu0 %2627, %v2510
        %v2629 = vpop.permute.xlu0 %2628
        %2632 = vset.pattern.permute.xlu0 0
        %2633 = vperm.xlu0 %2632, %v2511
        %v2634 = vpop.permute.xlu0 %2633
        %2637 = vset.pattern.permute.xlu0 0
        %2638 = vperm.xlu0 %2637, %v2512
        %v2639 = vpop.permute.xlu0 %2638
        %2642 = vset.pattern.permute.xlu0 0
        %2643 = vperm.xlu0 %2642, %v2513
        %v2644 = vpop.permute.xlu0 %2643
        %2647 = vset.pattern.permute.xlu0 0
        %2648 = vperm.xlu0 %2647, %v2514
        %v2649 = vpop.permute.xlu0 %2648
        %2652 = vset.pattern.permute.xlu0 0
        %2653 = vperm.xlu0 %2652, %v2515
        %v2654 = vpop.permute.xlu0 %2653
        %2657 = vset.pattern.permute.xlu0 0
        %2658 = vperm.xlu0 %2657, %v2516
        %v2659 = vpop.permute.xlu0 %2658
        %2662 = vset.pattern.permute.xlu0 0
        %2663 = vperm.xlu0 %2662, %v2517
        %v2664 = vpop.permute.xlu0 %2663
        %2667 = vset.pattern.permute.xlu0 0
        %2668 = vperm.xlu0 %2667, %v2518
        %v2669 = vpop.permute.xlu0 %2668
        %2672 = vset.pattern.permute.xlu0 0
        %2673 = vperm.xlu0 %2672, %v2519
        %v2674 = vpop.permute.xlu0 %2673
        %2677 = vset.pattern.permute.xlu0 0
        %2678 = vperm.xlu0 %2677, %v2520
        %v2679 = vpop.permute.xlu0 %2678
        %v2713 = vunpack.c.l.b16 %v2441
        %v2714 = vunpack.c.h.b16 %v2441
        %v2715 = vunpack.c.l.b16 %v2442
        %v2716 = vunpack.c.h.b16 %v2442
        %v2717 = vunpack.c.l.b16 %v2443
        %v2718 = vunpack.c.h.b16 %v2443
        %v2719 = vunpack.c.l.b16 %v2444
        %v2720 = vunpack.c.h.b16 %v2444
        %v2721 = vunpack.c.l.b16 %v2445
        %v2722 = vunpack.c.h.b16 %v2445
        %v2723 = vunpack.c.l.b16 %v2446
        %v2724 = vunpack.c.h.b16 %v2446
        %v2725 = vunpack.c.l.b16 %v2447
        %v2726 = vunpack.c.h.b16 %v2447
        %v2727 = vunpack.c.l.b16 %v2448
        %v2728 = vunpack.c.h.b16 %v2448
        %v2729 = vunpack.c.l.b16 %v2449
        %v2730 = vunpack.c.h.b16 %v2449
        %v2731 = vunpack.c.l.b16 %v2450
        %v2732 = vunpack.c.h.b16 %v2450
        %v2733 = vunpack.c.l.b16 %v2451
        %v2734 = vunpack.c.h.b16 %v2451
        %v2735 = vunpack.c.l.b16 %v2452
        %v2736 = vunpack.c.h.b16 %v2452
        %v2737 = vunpack.c.l.b16 %v2453
        %v2738 = vunpack.c.h.b16 %v2453
        %v2739 = vunpack.c.l.b16 %v2454
        %v2740 = vunpack.c.h.b16 %v2454
        %v2741 = vunpack.c.l.b16 %v2455
        %v2742 = vunpack.c.h.b16 %v2455
        %v2743 = vunpack.c.l.b16 %v2456
        %v2744 = vunpack.c.h.b16 %v2456
        %v2745 = vunpack.c.l.b16 %v2457
        %v2746 = vunpack.c.h.b16 %v2457
        %v2747 = vunpack.c.l.b16 %v2458
        %v2748 = vunpack.c.h.b16 %v2458
        %v2749 = vunpack.c.l.b16 %v2459
        %v2750 = vunpack.c.h.b16 %v2459
        %v2751 = vunpack.c.l.b16 %v2460
        %v2752 = vunpack.c.h.b16 %v2460
        %v2753 = vunpack.c.l.b16 %v2461
        %v2754 = vunpack.c.h.b16 %v2461
        %v2755 = vunpack.c.l.b16 %v2462
        %v2756 = vunpack.c.h.b16 %v2462
        %v2757 = vunpack.c.l.b16 %v2463
        %v2758 = vunpack.c.h.b16 %v2463
        %v2759 = vunpack.c.l.b16 %v2464
        %v2760 = vunpack.c.h.b16 %v2464
        %v2761 = vunpack.c.l.b16 %v2465
        %v2762 = vunpack.c.h.b16 %v2465
        %v2763 = vunpack.c.l.b16 %v2466
        %v2764 = vunpack.c.h.b16 %v2466
        %v2765 = vunpack.c.l.b16 %v2467
        %v2766 = vunpack.c.h.b16 %v2467
        %v2767 = vunpack.c.l.b16 %v2468
        %v2768 = vunpack.c.h.b16 %v2468
        %v2769 = vunpack.c.l.b16 %v2469
        %v2770 = vunpack.c.h.b16 %v2469
        %v2771 = vunpack.c.l.b16 %v2470
        %v2772 = vunpack.c.h.b16 %v2470
        %v2773 = vunpack.c.l.b16 %v2471
        %v2774 = vunpack.c.h.b16 %v2471
        %v2775 = vunpack.c.l.b16 %v2472
        %v2776 = vunpack.c.h.b16 %v2472
        %v2777 = vpack.c.b16 %v2715, %v2713
        %v2778 = vpack.c.b16 %v2716, %v2714
        %v2779 = vpack.c.b16 %v2719, %v2717
        %v2780 = vpack.c.b16 %v2720, %v2718
        %v2781 = vpack.c.b16 %v2723, %v2721
        %v2782 = vpack.c.b16 %v2724, %v2722
        %v2783 = vpack.c.b16 %v2727, %v2725
        %v2784 = vpack.c.b16 %v2728, %v2726
        %v2785 = vpack.c.b16 %v2731, %v2729
        %v2786 = vpack.c.b16 %v2732, %v2730
        %v2787 = vpack.c.b16 %v2735, %v2733
        %v2788 = vpack.c.b16 %v2736, %v2734
        %v2789 = vpack.c.b16 %v2739, %v2737
        %v2790 = vpack.c.b16 %v2740, %v2738
        %v2791 = vpack.c.b16 %v2743, %v2741
        %v2792 = vpack.c.b16 %v2744, %v2742
        %v2793 = vpack.c.b16 %v2747, %v2745
        %v2794 = vpack.c.b16 %v2748, %v2746
        %v2795 = vpack.c.b16 %v2751, %v2749
        %v2796 = vpack.c.b16 %v2752, %v2750
        %v2797 = vpack.c.b16 %v2755, %v2753
        %v2798 = vpack.c.b16 %v2756, %v2754
        %v2799 = vpack.c.b16 %v2759, %v2757
        %v2800 = vpack.c.b16 %v2760, %v2758
        %v2801 = vpack.c.b16 %v2763, %v2761
        %v2802 = vpack.c.b16 %v2764, %v2762
        %v2803 = vpack.c.b16 %v2767, %v2765
        %v2804 = vpack.c.b16 %v2768, %v2766
        %v2805 = vpack.c.b16 %v2771, %v2769
        %v2806 = vpack.c.b16 %v2772, %v2770
        %v2807 = vpack.c.b16 %v2775, %v2773
        %v2808 = vpack.c.b16 %v2776, %v2774
        %2841 = vmatprep.subr.bf16.mxu0 0
        %2842 = vmatpush1.bf16.msra.mxu0 %v2473
        %2843 = vmatprep.subr.bf16.mxu0 0
        %2844 = vmatpush1.bf16.msra.mxu0 %v2474
        %2845 = vmatprep.subr.bf16.mxu0 0
        %2846 = vmatpush1.bf16.msra.mxu0 %v2475
        %2847 = vmatprep.subr.bf16.mxu0 0
        %2848 = vmatpush1.bf16.msra.mxu0 %v2476
        %2849 = vmatprep.subr.bf16.mxu0 0
        %2850 = vmatpush1.bf16.msra.mxu0 %v2477
        %2851 = vmatprep.subr.bf16.mxu0 0
        %2852 = vmatpush1.bf16.msra.mxu0 %v2478
        %2853 = vmatprep.subr.bf16.mxu0 0
        %2854 = vmatpush1.bf16.msra.mxu0 %v2479
        %2855 = vmatprep.subr.bf16.mxu0 0
        %2856 = vmatpush1.bf16.msra.mxu0 %v2480
        %2857 = vmatprep.subr.bf16.mxu0 0
        %2858 = vmatpush1.bf16.msra.mxu0 %v2481
        %2859 = vmatprep.subr.bf16.mxu0 0
        %2860 = vmatpush1.bf16.msra.mxu0 %v2482
        %2861 = vmatprep.subr.bf16.mxu0 0
        %2862 = vmatpush1.bf16.msra.mxu0 %v2483
        %2863 = vmatprep.subr.bf16.mxu0 0
        %2864 = vmatpush1.bf16.msra.mxu0 %v2484
        %2865 = vmatprep.subr.bf16.mxu0 0
        %2866 = vmatpush1.bf16.msra.mxu0 %v2485
        %2867 = vmatprep.subr.bf16.mxu0 0
        %2868 = vmatpush1.bf16.msra.mxu0 %v2486
        %2869 = vmatprep.subr.bf16.mxu0 0
        %2870 = vmatpush1.bf16.msra.mxu0 %v2487
        %2871 = vmatprep.subr.bf16.mxu0 0
        %2872 = vmatpush1.bf16.msra.mxu0 %v2488
        %2873 = vmatprep.mubr.bf16.mxu0 %v2778
        %2874 = vmatmul.mubr.bf16.gmra.mrb[0].mxu0 %v2777
        %v2875 = vpop.f32.mrb[0].mxu0
        %v2876 = vadd.f32 %v2524, %v2875
        %v2877 = vpop.f32.mrb[0].mxu0
        %v2878 = vpop.f32.mrb[0].mxu0
        %v2879 = vadd.f32 %v2529, %v2878
        %v2880 = vpop.f32.mrb[0].mxu0
        %2881 = vmatprep.mubr.bf16.mxu0 %v2780
        %2882 = vmatmul.mubr.bf16.gmra.mrb[0].mxu0 %v2779
        %v2883 = vpop.f32.mrb[0].mxu0
        %v2884 = vadd.f32 %v2534, %v2883
        %v2885 = vpop.f32.mrb[0].mxu0
        %v2886 = vpop.f32.mrb[0].mxu0
        %v2887 = vadd.f32 %v2539, %v2886
        %v2888 = vpop.f32.mrb[0].mxu0
        %2889 = vmatprep.mubr.bf16.mxu0 %v2782
        %2890 = vmatmul.mubr.bf16.gmra.mrb[0].mxu0 %v2781
        %v2891 = vpop.f32.mrb[0].mxu0
        %v2892 = vadd.f32 %v2544, %v2891
        %v2893 = vpop.f32.mrb[0].mxu0
        %v2894 = vpop.f32.mrb[0].mxu0
        %v2895 = vadd.f32 %v2549, %v2894
        %v2896 = vpop.f32.mrb[0].mxu0
        %2897 = vmatprep.mubr.bf16.mxu0 %v2784
        %2898 = vmatmul.mubr.bf16.gmra.mrb[0].mxu0 %v2783
        %v2899 = vpop.f32.mrb[0].mxu0
        %v2900 = vadd.f32 %v2554, %v2899
        %v2901 = vpop.f32.mrb[0].mxu0
        %v2902 = vpop.f32.mrb[0].mxu0
        %v2903 = vadd.f32 %v2559, %v2902
        %v2904 = vpop.f32.mrb[0].mxu0
        %2905 = vmatprep.mubr.bf16.mxu0 %v2786
        %2906 = vmatmul.mubr.bf16.gmra.mrb[0].mxu0 %v2785
        %v2907 = vpop.f32.mrb[0].mxu0
        %v2908 = vadd.f32 %v2564, %v2907
        %v2909 = vpop.f32.mrb[0].mxu0
        %v2910 = vpop.f32.mrb[0].mxu0
        %v2911 = vadd.f32 %v2569, %v2910
        %v2912 = vpop.f32.mrb[0].mxu0
        %2913 = vmatprep.mubr.bf16.mxu0 %v2788
        %2914 = vmatmul.mubr.bf16.gmra.mrb[0].mxu0 %v2787
        %v2915 = vpop.f32.mrb[0].mxu0
        %v2916 = vadd.f32 %v2574, %v2915
        %v2917 = vpop.f32.mrb[0].mxu0
        %v2918 = vpop.f32.mrb[0].mxu0
        %v2919 = vadd.f32 %v2579, %v2918
        %v2920 = vpop.f32.mrb[0].mxu0
        %2921 = vmatprep.mubr.bf16.mxu0 %v2790
        %2922 = vmatmul.mubr.bf16.gmra.mrb[0].mxu0 %v2789
        %v2923 = vpop.f32.mrb[0].mxu0
        %v2924 = vadd.f32 %v2584, %v2923
        %v2925 = vpop.f32.mrb[0].mxu0
        %v2926 = vpop.f32.mrb[0].mxu0
        %v2927 = vadd.f32 %v2589, %v2926
        %v2928 = vpop.f32.mrb[0].mxu0
        %2929 = vmatprep.mubr.bf16.mxu0 %v2792
        %2930 = vmatmul.mubr.bf16.gmra.mrb[0].mxu0 %v2791
        %v2931 = vpop.f32.mrb[0].mxu0
        %v2932 = vadd.f32 %v2594, %v2931
        %v2933 = vpop.f32.mrb[0].mxu0
        %v2934 = vpop.f32.mrb[0].mxu0
        %v2935 = vadd.f32 %v2599, %v2934
        %v2936 = vpop.f32.mrb[0].mxu0
        %2937 = vmatprep.mubr.bf16.mxu0 %v2794
        %2938 = vmatmul.mubr.bf16.gmra.mrb[0].mxu0 %v2793
        %v2939 = vpop.f32.mrb[0].mxu0
        %v2940 = vadd.f32 %v2604, %v2939
        %v2941 = vpop.f32.mrb[0].mxu0
        %v2942 = vpop.f32.mrb[0].mxu0
        %v2943 = vadd.f32 %v2609, %v2942
        %v2944 = vpop.f32.mrb[0].mxu0
        %2945 = vmatprep.mubr.bf16.mxu0 %v2796
        %2946 = vmatmul.mubr.bf16.gmra.mrb[0].mxu0 %v2795
        %v2947 = vpop.f32.mrb[0].mxu0
        %v2948 = vadd.f32 %v2614, %v2947
        %v2949 = vpop.f32.mrb[0].mxu0
        %v2950 = vpop.f32.mrb[0].mxu0
        %v2951 = vadd.f32 %v2619, %v2950
        %v2952 = vpop.f32.mrb[0].mxu0
        %2953 = vmatprep.mubr.bf16.mxu0 %v2798
        %2954 = vmatmul.mubr.bf16.gmra.mrb[0].mxu0 %v2797
        %v2955 = vpop.f32.mrb[0].mxu0
        %v2956 = vadd.f32 %v2624, %v2955
        %v2957 = vpop.f32.mrb[0].mxu0
        %v2958 = vpop.f32.mrb[0].mxu0
        %v2959 = vadd.f32 %v2629, %v2958
        %v2960 = vpop.f32.mrb[0].mxu0
        %2961 = vmatprep.mubr.bf16.mxu0 %v2800
        %2962 = vmatmul.mubr.bf16.gmra.mrb[0].mxu0 %v2799
        %v2963 = vpop.f32.mrb[0].mxu0
        %v2964 = vadd.f32 %v2634, %v2963
        %v2965 = vpop.f32.mrb[0].mxu0
        %v2966 = vpop.f32.mrb[0].mxu0
        %v2967 = vadd.f32 %v2639, %v2966
        %v2968 = vpop.f32.mrb[0].mxu0
        %2969 = vmatprep.mubr.bf16.mxu0 %v2802
        %2970 = vmatmul.mubr.bf16.gmra.mrb[0].mxu0 %v2801
        %v2971 = vpop.f32.mrb[0].mxu0
        %v2972 = vadd.f32 %v2644, %v2971
        %v2973 = vpop.f32.mrb[0].mxu0
        %v2974 = vpop.f32.mrb[0].mxu0
        %v2975 = vadd.f32 %v2649, %v2974
        %v2976 = vpop.f32.mrb[0].mxu0
        %2977 = vmatprep.mubr.bf16.mxu0 %v2804
        %2978 = vmatmul.mubr.bf16.gmra.mrb[0].mxu0 %v2803
        %v2979 = vpop.f32.mrb[0].mxu0
        %v2980 = vadd.f32 %v2654, %v2979
        %v2981 = vpop.f32.mrb[0].mxu0
        %v2982 = vpop.f32.mrb[0].mxu0
        %v2983 = vadd.f32 %v2659, %v2982
        %v2984 = vpop.f32.mrb[0].mxu0
        %2985 = vmatprep.mubr.bf16.mxu0 %v2806
        %2986 = vmatmul.mubr.bf16.gmra.mrb[0].mxu0 %v2805
        %v2987 = vpop.f32.mrb[0].mxu0
        %v2988 = vadd.f32 %v2664, %v2987
        %v2989 = vpop.f32.mrb[0].mxu0
        %v2990 = vpop.f32.mrb[0].mxu0
        %v2991 = vadd.f32 %v2669, %v2990
        %v2992 = vpop.f32.mrb[0].mxu0
        %2993 = vmatprep.mubr.bf16.mxu0 %v2808
        %2994 = vmatmul.mubr.bf16.gmra.mrb[0].mxu0 %v2807
        %v2995 = vpop.f32.mrb[0].mxu0
        %v2996 = vadd.f32 %v2674, %v2995
        %v2997 = vpop.f32.mrb[0].mxu0
        %v2998 = vpop.f32.mrb[0].mxu0
        %v2999 = vadd.f32 %v2679, %v2998
        %v3000 = vpop.f32.mrb[0].mxu0
        %3001 = vdwg.mxu0
        %vm3002 = vcmp.ge.f32.partialorder %v2876, 0.0
        %vm3003 = vcmp.ge.f32.partialorder %v2879, 0.0
        %vm3004 = vcmp.ge.f32.partialorder %v2884, 0.0
        %vm3005 = vcmp.ge.f32.partialorder %v2887, 0.0
        %vm3006 = vcmp.ge.f32.partialorder %v2892, 0.0
        %vm3007 = vcmp.ge.f32.partialorder %v2895, 0.0
        %vm3008 = vcmp.ge.f32.partialorder %v2900, 0.0
        %vm3009 = vcmp.ge.f32.partialorder %v2903, 0.0
        %vm3010 = vcmp.ge.f32.partialorder %v2908, 0.0
        %vm3011 = vcmp.ge.f32.partialorder %v2911, 0.0
        %vm3012 = vcmp.ge.f32.partialorder %v2916, 0.0
        %vm3013 = vcmp.ge.f32.partialorder %v2919, 0.0
        %vm3014 = vcmp.ge.f32.partialorder %v2924, 0.0
        %vm3015 = vcmp.ge.f32.partialorder %v2927, 0.0
        %vm3016 = vcmp.ge.f32.partialorder %v2932, 0.0
        %vm3017 = vcmp.ge.f32.partialorder %v2935, 0.0
        %vm3018 = vcmp.ge.f32.partialorder %v2940, 0.0
        %vm3019 = vcmp.ge.f32.partialorder %v2943, 0.0
        %vm3020 = vcmp.ge.f32.partialorder %v2948, 0.0
        %vm3021 = vcmp.ge.f32.partialorder %v2951, 0.0
        %vm3022 = vcmp.ge.f32.partialorder %v2956, 0.0
        %vm3023 = vcmp.ge.f32.partialorder %v2959, 0.0
        %vm3024 = vcmp.ge.f32.partialorder %v2964, 0.0
        %vm3025 = vcmp.ge.f32.partialorder %v2967, 0.0
        %vm3026 = vcmp.ge.f32.partialorder %v2972, 0.0
        %vm3027 = vcmp.ge.f32.partialorder %v2975, 0.0
        %vm3028 = vcmp.ge.f32.partialorder %v2980, 0.0
        %vm3029 = vcmp.ge.f32.partialorder %v2983, 0.0
        %vm3030 = vcmp.ge.f32.partialorder %v2988, 0.0
        %vm3031 = vcmp.ge.f32.partialorder %v2991, 0.0
        %vm3032 = vcmp.ge.f32.partialorder %v2996, 0.0
        %vm3033 = vcmp.ge.f32.partialorder %v2999, 0.0
        %v3034 = vmul.f32 %v2876, 0.2
        %v3035 = vmul.f32 %v2879, 0.2
        %v3036 = vmul.f32 %v2884, 0.2
        %v3037 = vmul.f32 %v2887, 0.2
        %v3038 = vmul.f32 %v2892, 0.2
        %v3039 = vmul.f32 %v2895, 0.2
        %v3040 = vmul.f32 %v2900, 0.2
        %v3041 = vmul.f32 %v2903, 0.2
        %v3042 = vmul.f32 %v2908, 0.2
        %v3043 = vmul.f32 %v2911, 0.2
        %v3044 = vmul.f32 %v2916, 0.2
        %v3045 = vmul.f32 %v2919, 0.2
        %v3046 = vmul.f32 %v2924, 0.2
        %v3047 = vmul.f32 %v2927, 0.2
        %v3048 = vmul.f32 %v2932, 0.2
        %v3049 = vmul.f32 %v2935, 0.2
        %v3050 = vmul.f32 %v2940, 0.2
        %v3051 = vmul.f32 %v2943, 0.2
        %v3052 = vmul.f32 %v2948, 0.2
        %v3053 = vmul.f32 %v2951, 0.2
        %v3054 = vmul.f32 %v2956, 0.2
        %v3055 = vmul.f32 %v2959, 0.2
        %v3056 = vmul.f32 %v2964, 0.2
        %v3057 = vmul.f32 %v2967, 0.2
        %v3058 = vmul.f32 %v2972, 0.2
        %v3059 = vmul.f32 %v2975, 0.2
        %v3060 = vmul.f32 %v2980, 0.2
        %v3061 = vmul.f32 %v2983, 0.2
        %v3062 = vmul.f32 %v2988, 0.2
        %v3063 = vmul.f32 %v2991, 0.2
        %v3064 = vmul.f32 %v2996, 0.2
        %v3065 = vmul.f32 %v2999, 0.2
        %v3066 = vsel %vm3002, %v2876, %v3034
        %v3067 = vsel %vm3003, %v2879, %v3035
        %v3068 = vsel %vm3004, %v2884, %v3036
        %v3069 = vsel %vm3005, %v2887, %v3037
        %v3070 = vsel %vm3006, %v2892, %v3038
        %v3071 = vsel %vm3007, %v2895, %v3039
        %v3072 = vsel %vm3008, %v2900, %v3040
        %v3073 = vsel %vm3009, %v2903, %v3041
        %v3074 = vsel %vm3010, %v2908, %v3042
        %v3075 = vsel %vm3011, %v2911, %v3043
        %v3076 = vsel %vm3012, %v2916, %v3044
        %v3077 = vsel %vm3013, %v2919, %v3045
        %v3078 = vsel %vm3014, %v2924, %v3046
        %v3079 = vsel %vm3015, %v2927, %v3047
        %v3080 = vsel %vm3016, %v2932, %v3048
        %v3081 = vsel %vm3017, %v2935, %v3049
        %v3082 = vsel %vm3018, %v2940, %v3050
        %v3083 = vsel %vm3019, %v2943, %v3051
        %v3084 = vsel %vm3020, %v2948, %v3052
        %v3085 = vsel %vm3021, %v2951, %v3053
        %v3086 = vsel %vm3022, %v2956, %v3054
        %v3087 = vsel %vm3023, %v2959, %v3055
        %v3088 = vsel %vm3024, %v2964, %v3056
        %v3089 = vsel %vm3025, %v2967, %v3057
        %v3090 = vsel %vm3026, %v2972, %v3058
        %v3091 = vsel %vm3027, %v2975, %v3059
        %v3092 = vsel %vm3028, %v2980, %v3060
        %v3093 = vsel %vm3029, %v2983, %v3061
        %v3094 = vsel %vm3030, %v2988, %v3062
        %v3095 = vsel %vm3031, %v2991, %v3063
        %v3096 = vsel %vm3032, %v2996, %v3064
        %v3097 = vsel %vm3033, %v2999, %v3065
        %v3098 = vld [vmem:[%s9] sm:$0xff]
        %v3099 = vpack.c.bf16 %v3067, %v3066
        %v3100 = vpack.c.bf16 %v3069, %v3068
        %v3101 = vpack.c.bf16 %v3071, %v3070
        %v3102 = vpack.c.bf16 %v3073, %v3072
        %v3103 = vpack.c.bf16 %v3075, %v3074
        %v3104 = vpack.c.bf16 %v3077, %v3076
        %v3105 = vpack.c.bf16 %v3079, %v3078
        %v3106 = vpack.c.bf16 %v3081, %v3080
        %v3107 = vpack.c.bf16 %v3083, %v3082
        %v3108 = vpack.c.bf16 %v3085, %v3084
        %v3109 = vpack.c.bf16 %v3087, %v3086
        %v3110 = vpack.c.bf16 %v3089, %v3088
        %v3111 = vpack.c.bf16 %v3091, %v3090
        %v3112 = vpack.c.bf16 %v3093, %v3092
        %v3113 = vpack.c.bf16 %v3095, %v3094
        %v3114 = vpack.c.bf16 %v3097, %v3096
        %v3115 = vld [vmem:[%s10] sm:$0xff]
        %3117 = vset.pattern.permute.xlu0 0
        %3118 = vperm.xlu0 %3117, %v3115
        %v3119 = vpop.permute.xlu0 %3118
        %v3122 = vunpack.c.l.b16 %v3098
        %v3123 = vunpack.c.h.b16 %v3098
        %v3124 = vpack.c.b16 %v3122, %v3122
        %v3125 = vpack.c.b16 %v3123, %v3123
        %3128 = vmatprep.subr.bf16.mxu0 0
        %3129 = vmatpush1.bf16.msra.mxu0 %v3099
        %3130 = vmatprep.subr.bf16.mxu0 0
        %3131 = vmatpush1.bf16.msra.mxu0 %v3100
        %3132 = vmatprep.subr.bf16.mxu0 0
        %3133 = vmatpush1.bf16.msra.mxu0 %v3101
        %3134 = vmatprep.subr.bf16.mxu0 0
        %3135 = vmatpush1.bf16.msra.mxu0 %v3102
        %3136 = vmatprep.subr.bf16.mxu0 0
        %3137 = vmatpush1.bf16.msra.mxu0 %v3103
        %3138 = vmatprep.subr.bf16.mxu0 0
        %3139 = vmatpush1.bf16.msra.mxu0 %v3104
        %3140 = vmatprep.subr.bf16.mxu0 0
        %3141 = vmatpush1.bf16.msra.mxu0 %v3105
        %3142 = vmatprep.subr.bf16.mxu0 0
        %3143 = vmatpush1.bf16.msra.mxu0 %v3106
        %3144 = vmatprep.subr.bf16.mxu0 0
        %3145 = vmatpush1.bf16.msra.mxu0 %v3107
        %3146 = vmatprep.subr.bf16.mxu0 0
        %3147 = vmatpush1.bf16.msra.mxu0 %v3108
        %3148 = vmatprep.subr.bf16.mxu0 0
        %3149 = vmatpush1.bf16.msra.mxu0 %v3109
        %3150 = vmatprep.subr.bf16.mxu0 0
        %3151 = vmatpush1.bf16.msra.mxu0 %v3110
        %3152 = vmatprep.subr.bf16.mxu0 0
        %3153 = vmatpush1.bf16.msra.mxu0 %v3111
        %3154 = vmatprep.subr.bf16.mxu0 0
        %3155 = vmatpush1.bf16.msra.mxu0 %v3112
        %3156 = vmatprep.subr.bf16.mxu0 0
        %3157 = vmatpush1.bf16.msra.mxu0 %v3113
        %3158 = vmatprep.subr.bf16.mxu0 0
        %3159 = vmatpush1.bf16.msra.mxu0 %v3114
        %3160 = vmatprep.mubr.bf16.mxu0 %v3125
        %3161 = vmatmul.mubr.bf16.gmra.mrb[0].mxu0 %v3124
        %v3162 = vpop.f32.mrb[0].mxu0
        %v3163 = vadd.f32 %v3119, %v3162
        %v3164 = vpop.f32.mrb[0].mxu0
        %v3165 = vpop.f32.mrb[0].mxu0
        %v3166 = vpop.f32.mrb[0].mxu0
        %3167 = vdwg.mxu0
        %v3169 = vrot.slane %v3163, 1
        %v3171 = vmax.f32 %v3163, %v3169
        %v3172 = vsub.f32 %v3163, %v3171
        %v3173 = vmul.f32 %v3172, 1.442695
        %v3174 = vpow.pop %v3173
        %v3175 = vadd.f32 %v3174, 0.0
        %v3177 = vrot.slane %v3171, 7
        %v3179 = vsub.f32 %v3163, %v3177
        %v3180 = vmul.f32 %v3179, 1.442695
        %v3181 = vpow.pop %v3180
        %v3183 = vrot.slane %v3181, 1
        %v3185 = vadd.f32 %v3175, %v3183
        %v3186 = vlog2.pop %v3185
        %v3187 = vmul.f32 %v3186, 0.6931472
        %v3188 = vadd.f32 %v3171, %v3187
        %3189 = vst [vmem:[%s484] sm:$0x1] %v3188
        %s3190 = sand.u32 %s269, 1
        %s3191 = scalar_lea.sflag [#allocation4], %s3190
        %s3192 = sand.u32 %s269, 1
        %s3193 = scalar_lea.vmem [#allocation3], %s3192
        // Predicated region
        $region106: #{tpu_custom_call.1} parent=100 // pred_check
          %p3194 = pneg %p279
        $region107: #{tpu_custom_call.1} parent=100 // pred_check_branch
          %3196 = sbr.rel (%p3194) target = $region109
        $region108: #{tpu_custom_call.1} parent=100 // pred_region
          %s3198 = ssub.s32 16, 16
          %3199 = vsyncadd %s3191, %s3198
          %s3200 = smul.addr %s25, 16
          %s3201 = scalar_lea.hbm %s11, %s3200
          %s3203 = sshll.u32 %s3193, 4
          %s3204 = int_to_ptr.vmem [resolvable:$true] %s3203
          %3206 = dma.vmem_to_hbm [thread:$0]  %s3204, 16, %s3201, %s3191
        $region109: #{tpu_custom_call.1} parent=100 // pred_fallthru
          _
      $region101: #{tpu_custom_call.1} parent=5 // pred_fallthru
        _
      %p3207 = scmp.le.s32.totalorder 2, %s20
      // Predicated region
      $region110: #{tpu_custom_call.1} parent=5 // pred_check
        %p3208 = pneg %p3207
      $region111: #{tpu_custom_call.1} parent=5 // pred_check_branch
        %3210 = sbr.rel (%p3208) target = $region113
      $region112: #{tpu_custom_call.1} parent=5 // pred_region
        %s3211 = ssub.s32 %s20, 2
        // Predicated region
        $region114: #{tpu_custom_call.1} parent=112 // pred_check
          %p3212 = pneg %p285
        $region115: #{tpu_custom_call.1} parent=112 // pred_check_branch
          %3214 = sbr.rel (%p3212) target = $region117
        $region116: #{tpu_custom_call.1} parent=112 // pred_region
          %s3215 = sand.u32 %s270, 1
          %s3216 = scalar_lea.sflag [#allocation4], %s3215
          %s3217 = sand.u32 %s270, 1
          %s3218 = scalar_lea.vmem [#allocation3], %s3217
          %3219 = dma.done %s3216, 16
        $region117: #{tpu_custom_call.1} parent=112 // pred_fallthru
          _
      $region113: #{tpu_custom_call.1} parent=5 // pred_fallthru
        _
    $region6: #{tpu_custom_call.1} parent=1 // loop_footer
      %s24 = sadd.s32 1, %s20
    $region7: #{tpu_custom_call.1} parent=1 // loop_footer_branch
      %19 = sbr.rel target = $region3
    $region8: #{tpu_custom_call.1} parent=1 // loop_exit
      _
    %3220 = vsyncpa [#allocation4], 1
    %s3221 = scalar_lea.sflag [#allocation4], 1
    %3222 = vsyncpa %s3221, 1

</llo_original>
